<compile_context>
chip_gen: v7x
topology: tpu7x:2x2x1
jax: 0.10.0
libtpu: 0.0.40
codegen_flags: <defaults>
</compile_context>

<pallas_src>
import functools

import jax
import jax.numpy as jnp
from jax import lax
from jax.experimental import pallas as pl
from jax.experimental.pallas import tpu as pltpu

EPS = 1e-5          # nn.InstanceNorm3d eps
NEG_SLOPE = 0.01    # nn.LeakyReLU default negative_slope


def _conv_stats_kernel(xc_ref, xp_ref, xn_ref, w_ref, b_ref, msk_ref,
                       y_ref, st_ref, col_ref, *, W, HW):
    # xc_ref : (1, Cin, S_t)        current depth tile, flattened spatial on lanes
    # xp_ref : (1, Cin, HW)         plane just below the tile (index-clamped halo)
    # xn_ref : (1, Cin, HW)         plane just above the tile (index-clamped halo)
    # w_ref  : (3, Cout, 9*Cin)     weights split per kd; columns (kh,kw)-major, cin-minor
    # b_ref  : (Cout, 1)            conv bias, f32
    # msk_ref: (9, S_ext)           0/1 H/W boundary masks over the extended slab, f32
    # y_ref  : (1, Cout, S_t)       conv+bias output tile (compute dtype)
    # st_ref : (1, 1, Cout, 2)      per-tile [sum, sum_sq] of the bias-free conv (f32)
    # col_ref: (9*Cin, S_ext)       VMEM scratch holding the 9-tap im2col operand
    Cin = xc_ref.shape[1]
    S_t = xc_ref.shape[2]
    S_ext = S_t + 2 * HW
    t = pl.program_id(1)
    n_t = pl.num_programs(1)

    # Depth zero-padding: halo planes outside [0, D) contribute zeros.
    xp = jnp.where(t == 0, jnp.zeros_like(xp_ref[0]), xp_ref[0])
    xn = jnp.where(t == n_t - 1, jnp.zeros_like(xn_ref[0]), xn_ref[0])

    # Extended slab over TD+2 planes.  All three pieces are lane-aligned (HW % 128 == 0), so
    # the concat is plain vreg copies.  Build arithmetic in f32 (v5e has no bf16 VALU); cast
    # only on the store into the compute-dtype im2col scratch.
    x_ext = jnp.concatenate([xp, xc_ref[0], xn], axis=1).astype(jnp.float32)   # (Cin, S_ext)

    cdt = col_ref.dtype
    # 9-tap (dh, dw) im2col over the extended slab.  Shifts via pltpu.roll (XLU slot);
    # circular wrap-around lanes are always masked to zero by the H/W boundary masks.
    for dh in (-1, 0, 1):
        for dw in (-1, 0, 1):
            j = (dh + 1) * 3 + (dw + 1)
            s = dh * W + dw
            sl = x_ext if s == 0 else pltpu.roll(x_ext, (-s) % S_ext, axis=1)
            if dh == 0 and dw == 0:
                # center tap: mask is all-ones -> skip the multiply
                col_ref[j * Cin:(j + 1) * Cin, :] = sl.astype(cdt)
            else:
                col_ref[j * Cin:(j + 1) * Cin, :] = (sl * msk_ref[j:j + 1, :]).astype(cdt)

    # Three accumulated MXU matmuls (one per kd = dd + 1).  Output position p reads the
    # extended-slab window starting at kd*HW, which is a multiple of 128 -> aligned RHS slice.
    acc = jnp.dot(w_ref[0], col_ref[:, 0:S_t], preferred_element_type=jnp.float32)
    acc += jnp.dot(w_ref[1], col_ref[:, HW:HW + S_t], preferred_element_type=jnp.float32)
    acc += jnp.dot(w_ref[2], col_ref[:, 2 * HW:2 * HW + S_t],
                   preferred_element_type=jnp.float32)                         # (Cout, S_t)

    # Per-tile statistics of the *bias-free* conv (bias is added back to the mean in the
    # wrapper); variance is invariant to the per-channel bias, which removes the main
    # cancellation risk of E[x^2] - mean^2.
    st_ref[0, 0, :, 0:1] = jnp.sum(acc, axis=1, keepdims=True)
    st_ref[0, 0, :, 1:2] = jnp.sum(acc * acc, axis=1, keepdims=True)

    y_ref[0] = (acc + b_ref[...]).astype(y_ref.dtype)


def _norm_lrelu_kernel(y_ref, a_ref, b_ref, o_ref):
    # Fused InstanceNorm affine (one FMA per element, in f32) + LeakyReLU, lane-dense.
    z = y_ref[0].astype(jnp.float32) * a_ref[0] + b_ref[0]
    o_ref[0] = jnp.where(z > 0, z, NEG_SLOPE * z).astype(o_ref.dtype)


def conv_dropout_insnorm_lrelu_3d(x, weight, bias, gamma, beta, *,
                                  tile_d=None, compute_dtype=jnp.bfloat16,
                                  vmem_budget_bytes=20 * 1024 * 1024):
    """Forward of ConvDropoutInsNormLRelu3d (dropout_p == 0).

    x: (N, Cin, D, H, W); weight: (Cout, Cin, 3, 3, 3); bias/gamma/beta: (Cout,).
    MXU operands and the conv intermediate use `compute_dtype` (bf16 by default);
    statistics, the norm affine, and LeakyReLU run in f32.
    """
    N, Cin, D, H, W = x.shape
    Cout = weight.shape[0]
    HW = H * W
    S = D * HW
    if HW % 128 != 0:
        raise ValueError("H*W must be a multiple of 128 (TPU lane tiling).")

    x_bytes = jnp.dtype(x.dtype).itemsize
    col_bytes = jnp.dtype(compute_dtype).itemsize
    y_bytes = col_bytes                       # conv intermediate stored in compute_dtype

    def _footprint(td):
        # Rough per-grid-step VMEM footprint (double-buffered streams + scratch + temporaries).
        s_t = td * HW
        s_ext = s_t + 2 * HW
        return (2 * (Cin * s_t + 2 * Cin * HW) * x_bytes       # x tile + halo planes
                + 2 * (Cout * s_t * y_bytes + Cout * 2 * 4)    # y tile + stats
                + 9 * Cin * s_ext * col_bytes                  # im2col scratch (single)
                + 2 * (3 * Cout * 9 * Cin * col_bytes + Cout * 4)   # weights + bias
                + 2 * 9 * s_ext * 4                            # masks
                + 4 * Cin * s_ext * 4)                         # in-kernel slab temporaries

    if tile_d is None:
        divs = [d for d in range(D, 0, -1) if D % d == 0]
        fitting = [d for d in divs if _footprint(d) <= vmem_budget_bytes] or [1]
        tile_d = fitting[0]
        # v7x has 2 TensorCores per chip: prefer an even total grid so both stay busy.
        if (N * (D // tile_d)) % 2 == 1:
            for d2 in fitting:
                if (N * (D // d2)) % 2 == 0 and 2 * d2 >= tile_d:
                    tile_d = d2
                    break
    elif D % tile_d != 0:
        raise ValueError("tile_d must divide D.")

    TD = tile_d
    n_t = D // TD
    S_t = TD * HW
    S_ext = S_t + 2 * HW
    # Stay well under every generation's physical VMEM (v7x: 64 MiB per TensorCore).
    vmem_limit = int(min(max(2 * _footprint(TD), 16 << 20), 48 << 20))

    # --- free re-layouts only (no transposes of the activations, no spatial padding) ---
    x_flat = x.reshape(N, Cin, S)
    # Weights split per kd: (3, Cout, 9*Cin), columns (kh, kw)-major / cin-minor.
    w3 = (jnp.transpose(weight, (2, 0, 3, 4, 1))
          .reshape(3, Cout, 9 * Cin).astype(compute_dtype))
    b2 = bias.reshape(Cout, 1).astype(jnp.float32)

    # Static 0/1 H/W boundary masks over the extended slab (periodic with period HW), f32.
    q = jnp.arange(S_ext, dtype=jnp.int32)
    hq = (q // W) % H
    wq = q % W
    mask9 = jnp.stack(
        [((hq + dh >= 0) & (hq + dh < H) & (wq + dw >= 0) & (wq + dw < W))
         for dh in (-1, 0, 1) for dw in (-1, 0, 1)],
        axis=0).astype(jnp.float32)                                  # (9, S_ext)

    # ---- phase 1: 3x3x3 conv + bias, plus per-tile sum / sum-of-squares ----
    conv_kernel = functools.partial(_conv_stats_kernel, W=W, HW=HW)
    y_conv, stats = pl.pallas_call(
        conv_kernel,
        out_shape=(jax.ShapeDtypeStruct((N, Cout, S), compute_dtype),
                   jax.ShapeDtypeStruct((N, n_t, Cout, 2), jnp.float32)),
        grid_spec=pltpu.PrefetchScalarGridSpec(
            num_scalar_prefetch=0,
            grid=(N, n_t),
            in_specs=[
                pl.BlockSpec((1, Cin, S_t), lambda n, t: (n, 0, t)),
                # one-plane halos via index-clamped plane-sized blocks on the same array
                pl.BlockSpec((1, Cin, HW),
                             lambda n, t: (n, 0, jnp.maximum(t * TD - 1, 0))),
                pl.BlockSpec((1, Cin, HW),
                             lambda n, t: (n, 0, jnp.minimum((t + 1) * TD, D - 1))),
                pl.BlockSpec((3, Cout, 9 * Cin), lambda n, t: (0, 0, 0)),
                pl.BlockSpec((Cout, 1), lambda n, t: (0, 0)),
                pl.BlockSpec((9, S_ext), lambda n, t: (0, 0)),
            ],
            out_specs=[
                pl.BlockSpec((1, Cout, S_t), lambda n, t: (n, 0, t)),
                pl.BlockSpec((1, 1, Cout, 2), lambda n, t: (n, t, 0, 0)),
            ],
            scratch_shapes=[pltpu.VMEM((9 * Cin, S_ext), compute_dtype)],
        ),
        compiler_params=pltpu.CompilerParams(
            dimension_semantics=("parallel", "parallel"),
            vmem_limit_bytes=vmem_limit),
    )(x_flat, x_flat, x_flat, w3, b2, mask9)

    # ---- fold InstanceNorm into per-(n, c) affine coefficients (O(N*Cout) scalars) ----
    ssum = jnp.sum(stats[..., 0], axis=1)                    # (N, Cout) bias-free sums
    ssq = jnp.sum(stats[..., 1], axis=1)
    mean0 = ssum / S                                         # mean of the bias-free conv
    var = jnp.maximum(ssq / S - mean0 * mean0, 0.0)          # invariant to the channel bias
    mean = mean0 + bias.astype(jnp.float32)[None, :]         # mean of conv + bias (= y_conv)
    a = gamma.astype(jnp.float32)[None, :] * lax.rsqrt(var + EPS)
    bcf = beta.astype(jnp.float32)[None, :] - mean * a

    # ---- phase 2: y*a + b then LeakyReLU ----
    out = pl.pallas_call(
        _norm_lrelu_kernel,
        out_shape=jax.ShapeDtypeStruct((N, Cout, S), x.dtype),
        grid_spec=pltpu.PrefetchScalarGridSpec(
            num_scalar_prefetch=0,
            grid=(N, n_t),
            in_specs=[
                pl.BlockSpec((1, Cout, S_t), lambda n, t: (n, 0, t)),
                pl.BlockSpec((1, Cout, 1), lambda n, t: (n, 0, 0)),
                pl.BlockSpec((1, Cout, 1), lambda n, t: (n, 0, 0)),
            ],
            out_specs=pl.BlockSpec((1, Cout, S_t), lambda n, t: (n, 0, t)),
        ),
        compiler_params=pltpu.CompilerParams(
            dimension_semantics=("parallel", "parallel"),
            vmem_limit_bytes=vmem_limit),
    )(y_conv, a.reshape(N, Cout, 1), bcf.reshape(N, Cout, 1))

    return out.reshape(N, Cout, D, H, W)


def _reference(x, weight, bias, gamma, beta):
    """Pure-JAX f32 reference matching the PyTorch module (eval, dropout_p=0)."""
    y = lax.conv_general_dilated(
        x, weight, window_strides=(1, 1, 1), padding=((1, 1),) * 3,
        dimension_numbers=("NCDHW", "OIDHW", "NCDHW"))
    y = y + bias[None, :, None, None, None]
    mean = jnp.mean(y, axis=(2, 3, 4), keepdims=True)
    var = jnp.mean((y - mean) ** 2, axis=(2, 3, 4), keepdims=True)
    y = (y - mean) / jnp.sqrt(var + EPS)
    y = y * gamma[None, :, None, None, None] + beta[None, :, None, None, None]
    return jnp.where(y > 0, y, NEG_SLOPE * y)


if __name__ == "__main__":
    # Small shapes consistent with the module: N=2, Cin=4, Cout=8, spatial 16^3.
    N, Cin, Cout, D, H, W = 2, 4, 8, 16, 16, 16

    key = jax.random.PRNGKey(0)
    kx, kw, kb, kg, kbe = jax.random.split(key, 5)
    x = jax.random.normal(kx, (N, Cin, D, H, W), dtype=jnp.float32)
    weight = 0.1 * jax.random.normal(kw, (Cout, Cin, 3, 3, 3), dtype=jnp.float32)
    bias = 0.1 * jax.random.normal(kb, (Cout,), dtype=jnp.float32)
    gamma = 1.0 + 0.1 * jax.random.normal(kg, (Cout,), dtype=jnp.float32)
    beta = 0.1 * jax.random.normal(kbe, (Cout,), dtype=jnp.float32)

    ref = _reference(x, weight, bias, gamma, beta)

    # Multi-tile path: tile_d=4 -> 4 depth tiles (exercises boundary + interior halo logic).
    out_tiled = jax.block_until_ready(
        jax.jit(functools.partial(conv_dropout_insnorm_lrelu_3d, tile_d=4))(
            x, weight, bias, gamma, beta))
    # Auto-tiled path: the VMEM model picks the tile (whole depth fits in one tile here).
    out_auto = jax.block_until_ready(
        jax.jit(conv_dropout_insnorm_lrelu_3d)(x, weight, bias, gamma, beta))

    assert out_tiled.shape == (N, Cout, D, H, W)
    assert out_auto.shape == (N, Cout, D, H, W)
    err_t = float(jnp.max(jnp.abs(out_tiled - ref)))
    err_a = float(jnp.max(jnp.abs(out_auto - ref)))
    # bf16 MXU operands + bf16 conv intermediate vs f32 reference: a few e-2 of rounding headroom.
    assert err_t < 5e-2, f"tiled max abs err = {err_t}"
    assert err_a < 5e-2, f"auto max abs err = {err_a}"
    print("KERNEL_OK")
</pallas_src>

<mosaic_0001>
module attributes {stable_mosaic.version = 11 : i64} {
  func.func @_conv_stats_kernel(%arg0: i32, %arg1: i32, %arg2: memref<1x4x1024xf32, #tpu.memory_space<vmem>>, %arg3: memref<1x4x256xf32, #tpu.memory_space<vmem>>, %arg4: memref<1x4x256xf32, #tpu.memory_space<vmem>>, %arg5: memref<3x8x36xbf16, #tpu.memory_space<vmem>>, %arg6: memref<8x1xf32, #tpu.memory_space<vmem>>, %arg7: memref<9x1536xf32, #tpu.memory_space<vmem>>, %arg8: memref<1x8x1024xbf16, #tpu.memory_space<vmem>>, %arg9: memref<1x1x8x2xf32, #tpu.memory_space<vmem>>, %arg10: memref<36x1536xbf16, #tpu.memory_space<vmem>>) attributes {dimension_semantics = [#tpu.dimension_semantics<parallel>, #tpu.dimension_semantics<parallel>], iteration_bounds = array<i64: 2, 4>, scalar_prefetch = 0 : i64, scratch_operands = 1 : i64, tpu.core_type = #tpu.core_type<tc>, window_params = [{transform_indices = @transform_0, window_bounds = array<i64: 1, 4, 1024>}, {transform_indices = @transform_1, window_bounds = array<i64: 1, 4, 256>}, {transform_indices = @transform_2, window_bounds = array<i64: 1, 4, 256>}, {pipeline_mode = #tpu.pipeline_mode<synchronous>, transform_indices = @transform_3, window_bounds = array<i64: 3, 8, 36>}, {pipeline_mode = #tpu.pipeline_mode<synchronous>, transform_indices = @transform_4, window_bounds = array<i64: 8, 1>}, {pipeline_mode = #tpu.pipeline_mode<synchronous>, transform_indices = @transform_5, window_bounds = array<i64: 9, 1536>}, {transform_indices = @transform_6, window_bounds = array<i64: 1, 8, 1024>}, {transform_indices = @transform_7, window_bounds = array<i64: 1, 1, 8, 2>}]} {
    %c0_i32 = arith.constant 0 : i32
    %0 = arith.cmpi eq, %arg1, %c0_i32 : i32
    %cst = arith.constant 0.000000e+00 : f32
    %1 = vector.broadcast %cst : f32 to vector<4x256xf32>
    %c0 = arith.constant 0 : index
    %c0_0 = arith.constant 0 : index
    %c0_1 = arith.constant 0 : index
    %2 = vector.load %arg3[%c0, %c0_0, %c0_1] : memref<1x4x256xf32, #tpu.memory_space<vmem>>, vector<1x4x256xf32>
    %3 = vector.shape_cast %2 : vector<1x4x256xf32> to vector<4x256xf32>
    %4 = arith.select %0, %1, %3 : vector<4x256xf32>
    %c3_i32 = arith.constant 3 : i32
    %5 = arith.cmpi eq, %arg1, %c3_i32 : i32
    %cst_2 = arith.constant 0.000000e+00 : f32
    %6 = vector.broadcast %cst_2 : f32 to vector<4x256xf32>
    %c0_3 = arith.constant 0 : index
    %c0_4 = arith.constant 0 : index
    %c0_5 = arith.constant 0 : index
    %7 = vector.load %arg4[%c0_3, %c0_4, %c0_5] : memref<1x4x256xf32, #tpu.memory_space<vmem>>, vector<1x4x256xf32>
    %8 = vector.shape_cast %7 : vector<1x4x256xf32> to vector<4x256xf32>
    %9 = arith.select %5, %6, %8 : vector<4x256xf32>
    %c0_6 = arith.constant 0 : index
    %c0_7 = arith.constant 0 : index
    %c0_8 = arith.constant 0 : index
    %10 = vector.load %arg2[%c0_6, %c0_7, %c0_8] : memref<1x4x1024xf32, #tpu.memory_space<vmem>>, vector<1x4x1024xf32>
    %11 = vector.shape_cast %10 : vector<1x4x1024xf32> to vector<4x1024xf32>
    %12 = tpu.concatenate %4, %11, %9 in 1 : vector<4x256xf32>, vector<4x1024xf32>, vector<4x256xf32> -> vector<4x1536xf32>
    %c17_i32 = arith.constant 17 : i32
    %13 = tpu.dynamic_rotate %12 by %c17_i32 dim 1 : vector<4x1536xf32>, i32 -> vector<4x1536xf32>
    %c0_9 = arith.constant 0 : index
    %c0_10 = arith.constant 0 : index
    %14 = vector.load %arg7[%c0_9, %c0_10] : memref<9x1536xf32, #tpu.memory_space<vmem>>, vector<1x1536xf32>
    %15 = vector.broadcast %14 : vector<1x1536xf32> to vector<4x1536xf32>
    %16 = arith.mulf %13, %15 : vector<4x1536xf32>
    %17 = arith.truncf %16 : vector<4x1536xf32> to vector<4x1536xbf16>
    %c0_11 = arith.constant 0 : index
    %c0_12 = arith.constant 0 : index
    %18 = vector.load %arg10[%c0_11, %c0_12] : memref<36x1536xbf16, #tpu.memory_space<vmem>>, vector<4x1536xbf16>
    tpu.vector_store %arg10[%c0_11, %c0_12], %17 {strides = array<i32>} : memref<36x1536xbf16, #tpu.memory_space<vmem>>, vector<4x1536xbf16>,
    %c16_i32 = arith.constant 16 : i32
    %19 = tpu.dynamic_rotate %12 by %c16_i32 dim 1 : vector<4x1536xf32>, i32 -> vector<4x1536xf32>
    %c1 = arith.constant 1 : index
    %c0_13 = arith.constant 0 : index
    %20 = vector.load %arg7[%c1, %c0_13] : memref<9x1536xf32, #tpu.memory_space<vmem>>, vector<1x1536xf32>
    %21 = vector.broadcast %20 : vector<1x1536xf32> to vector<4x1536xf32>
    %22 = arith.mulf %19, %21 : vector<4x1536xf32>
    %23 = arith.truncf %22 : vector<4x1536xf32> to vector<4x1536xbf16>
    %c4 = arith.constant 4 : index
    %c0_14 = arith.constant 0 : index
    %24 = vector.load %arg10[%c4, %c0_14] : memref<36x1536xbf16, #tpu.memory_space<vmem>>, vector<4x1536xbf16>
    tpu.vector_store %arg10[%c4, %c0_14], %23 {strides = array<i32>} : memref<36x1536xbf16, #tpu.memory_space<vmem>>, vector<4x1536xbf16>,
    %c15_i32 = arith.constant 15 : i32
    %25 = tpu.dynamic_rotate %12 by %c15_i32 dim 1 : vector<4x1536xf32>, i32 -> vector<4x1536xf32>
    %c2 = arith.constant 2 : index
    %c0_15 = arith.constant 0 : index
    %26 = vector.load %arg7[%c2, %c0_15] : memref<9x1536xf32, #tpu.memory_space<vmem>>, vector<1x1536xf32>
    %27 = vector.broadcast %26 : vector<1x1536xf32> to vector<4x1536xf32>
    %28 = arith.mulf %25, %27 : vector<4x1536xf32>
    %29 = arith.truncf %28 : vector<4x1536xf32> to vector<4x1536xbf16>
    %c8 = arith.constant 8 : index
    %c0_16 = arith.constant 0 : index
    %30 = vector.load %arg10[%c8, %c0_16] : memref<36x1536xbf16, #tpu.memory_space<vmem>>, vector<4x1536xbf16>
    tpu.vector_store %arg10[%c8, %c0_16], %29 {strides = array<i32>} : memref<36x1536xbf16, #tpu.memory_space<vmem>>, vector<4x1536xbf16>,
    %c1_i32 = arith.constant 1 : i32
    %31 = tpu.dynamic_rotate %12 by %c1_i32 dim 1 : vector<4x1536xf32>, i32 -> vector<4x1536xf32>
    %c3 = arith.constant 3 : index
    %c0_17 = arith.constant 0 : index
    %32 = vector.load %arg7[%c3, %c0_17] : memref<9x1536xf32, #tpu.memory_space<vmem>>, vector<1x1536xf32>
    %33 = vector.broadcast %32 : vector<1x1536xf32> to vector<4x1536xf32>
    %34 = arith.mulf %31, %33 : vector<4x1536xf32>
    %35 = arith.truncf %34 : vector<4x1536xf32> to vector<4x1536xbf16>
    %c12 = arith.constant 12 : index
    %c0_18 = arith.constant 0 : index
    %36 = vector.load %arg10[%c12, %c0_18] : memref<36x1536xbf16, #tpu.memory_space<vmem>>, vector<4x1536xbf16>
    tpu.vector_store %arg10[%c12, %c0_18], %35 {strides = array<i32>} : memref<36x1536xbf16, #tpu.memory_space<vmem>>, vector<4x1536xbf16>,
    %37 = arith.truncf %12 : vector<4x1536xf32> to vector<4x1536xbf16>
    %c16 = arith.constant 16 : index
    %c0_19 = arith.constant 0 : index
    %38 = vector.load %arg10[%c16, %c0_19] : memref<36x1536xbf16, #tpu.memory_space<vmem>>, vector<4x1536xbf16>
    tpu.vector_store %arg10[%c16, %c0_19], %37 {strides = array<i32>} : memref<36x1536xbf16, #tpu.memory_space<vmem>>, vector<4x1536xbf16>,
    %c1535_i32 = arith.constant 1535 : i32
    %39 = tpu.dynamic_rotate %12 by %c1535_i32 dim 1 : vector<4x1536xf32>, i32 -> vector<4x1536xf32>
    %c5 = arith.constant 5 : index
    %c0_20 = arith.constant 0 : index
    %40 = vector.load %arg7[%c5, %c0_20] : memref<9x1536xf32, #tpu.memory_space<vmem>>, vector<1x1536xf32>
    %41 = vector.broadcast %40 : vector<1x1536xf32> to vector<4x1536xf32>
    %42 = arith.mulf %39, %41 : vector<4x1536xf32>
    %43 = arith.truncf %42 : vector<4x1536xf32> to vector<4x1536xbf16>
    %c20 = arith.constant 20 : index
    %c0_21 = arith.constant 0 : index
    %44 = vector.load %arg10[%c20, %c0_21] : memref<36x1536xbf16, #tpu.memory_space<vmem>>, vector<4x1536xbf16>
    tpu.vector_store %arg10[%c20, %c0_21], %43 {strides = array<i32>} : memref<36x1536xbf16, #tpu.memory_space<vmem>>, vector<4x1536xbf16>,
    %c1521_i32 = arith.constant 1521 : i32
    %45 = tpu.dynamic_rotate %12 by %c1521_i32 dim 1 : vector<4x1536xf32>, i32 -> vector<4x1536xf32>
    %c6 = arith.constant 6 : index
    %c0_22 = arith.constant 0 : index
    %46 = vector.load %arg7[%c6, %c0_22] : memref<9x1536xf32, #tpu.memory_space<vmem>>, vector<1x1536xf32>
    %47 = vector.broadcast %46 : vector<1x1536xf32> to vector<4x1536xf32>
    %48 = arith.mulf %45, %47 : vector<4x1536xf32>
    %49 = arith.truncf %48 : vector<4x1536xf32> to vector<4x1536xbf16>
    %c24 = arith.constant 24 : index
    %c0_23 = arith.constant 0 : index
    %50 = vector.load %arg10[%c24, %c0_23] : memref<36x1536xbf16, #tpu.memory_space<vmem>>, vector<4x1536xbf16>
    tpu.vector_store %arg10[%c24, %c0_23], %49 {strides = array<i32>} : memref<36x1536xbf16, #tpu.memory_space<vmem>>, vector<4x1536xbf16>,
    %c1520_i32 = arith.constant 1520 : i32
    %51 = tpu.dynamic_rotate %12 by %c1520_i32 dim 1 : vector<4x1536xf32>, i32 -> vector<4x1536xf32>
    %c7 = arith.constant 7 : index
    %c0_24 = arith.constant 0 : index
    %52 = vector.load %arg7[%c7, %c0_24] : memref<9x1536xf32, #tpu.memory_space<vmem>>, vector<1x1536xf32>
    %53 = vector.broadcast %52 : vector<1x1536xf32> to vector<4x1536xf32>
    %54 = arith.mulf %51, %53 : vector<4x1536xf32>
    %55 = arith.truncf %54 : vector<4x1536xf32> to vector<4x1536xbf16>
    %c28 = arith.constant 28 : index
    %c0_25 = arith.constant 0 : index
    %56 = vector.load %arg10[%c28, %c0_25] : memref<36x1536xbf16, #tpu.memory_space<vmem>>, vector<4x1536xbf16>
    tpu.vector_store %arg10[%c28, %c0_25], %55 {strides = array<i32>} : memref<36x1536xbf16, #tpu.memory_space<vmem>>, vector<4x1536xbf16>,
    %c1519_i32 = arith.constant 1519 : i32
    %57 = tpu.dynamic_rotate %12 by %c1519_i32 dim 1 : vector<4x1536xf32>, i32 -> vector<4x1536xf32>
    %c8_26 = arith.constant 8 : index
    %c0_27 = arith.constant 0 : index
    %58 = vector.load %arg7[%c8_26, %c0_27] : memref<9x1536xf32, #tpu.memory_space<vmem>>, vector<1x1536xf32>
    %59 = vector.broadcast %58 : vector<1x1536xf32> to vector<4x1536xf32>
    %60 = arith.mulf %57, %59 : vector<4x1536xf32>
    %61 = arith.truncf %60 : vector<4x1536xf32> to vector<4x1536xbf16>
    %c32 = arith.constant 32 : index
    %c0_28 = arith.constant 0 : index
    %62 = vector.load %arg10[%c32, %c0_28] : memref<36x1536xbf16, #tpu.memory_space<vmem>>, vector<4x1536xbf16>
    tpu.vector_store %arg10[%c32, %c0_28], %61 {strides = array<i32>} : memref<36x1536xbf16, #tpu.memory_space<vmem>>, vector<4x1536xbf16>,
    %c0_29 = arith.constant 0 : index
    %c0_30 = arith.constant 0 : index
    %c0_31 = arith.constant 0 : index
    %63 = vector.load %arg5[%c0_29, %c0_30, %c0_31] : memref<3x8x36xbf16, #tpu.memory_space<vmem>>, vector<1x8x36xbf16>
    %64 = vector.shape_cast %63 : vector<1x8x36xbf16> to vector<8x36xbf16>
    %c0_32 = arith.constant 0 : index
    %c0_33 = arith.constant 0 : index
    %65 = vector.load %arg10[%c0_32, %c0_33] : memref<36x1536xbf16, #tpu.memory_space<vmem>>, vector<36x1024xbf16>
    %cst_34 = arith.constant dense<0.000000e+00> : vector<8x1024xf32>
    %66 = tpu.matmul %64, %65, %cst_34 {dimension_numbers = #tpu.dot_dimension_numbers<[1], [0], [0], [1], [0, 0, 1, 1], [], []>} : vector<8x36xbf16>, vector<36x1024xbf16>, vector<8x1024xf32> -> vector<8x1024xf32>
    %c1_35 = arith.constant 1 : index
    %c0_36 = arith.constant 0 : index
    %c0_37 = arith.constant 0 : index
    %67 = vector.load %arg5[%c1_35, %c0_36, %c0_37] : memref<3x8x36xbf16, #tpu.memory_space<vmem>>, vector<1x8x36xbf16>
    %68 = vector.shape_cast %67 : vector<1x8x36xbf16> to vector<8x36xbf16>
    %c0_38 = arith.constant 0 : index
    %c256 = arith.constant 256 : index
    %69 = vector.load %arg10[%c0_38, %c256] : memref<36x1536xbf16, #tpu.memory_space<vmem>>, vector<36x1024xbf16>
    %cst_39 = arith.constant dense<0.000000e+00> : vector<8x1024xf32>
    %70 = tpu.matmul %68, %69, %cst_39 {dimension_numbers = #tpu.dot_dimension_numbers<[1], [0], [0], [1], [0, 0, 1, 1], [], []>} : vector<8x36xbf16>, vector<36x1024xbf16>, vector<8x1024xf32> -> vector<8x1024xf32>
    %71 = arith.addf %66, %70 : vector<8x1024xf32>
    %c2_40 = arith.constant 2 : index
    %c0_41 = arith.constant 0 : index
    %c0_42 = arith.constant 0 : index
    %72 = vector.load %arg5[%c2_40, %c0_41, %c0_42] : memref<3x8x36xbf16, #tpu.memory_space<vmem>>, vector<1x8x36xbf16>
    %73 = vector.shape_cast %72 : vector<1x8x36xbf16> to vector<8x36xbf16>
    %c0_43 = arith.constant 0 : index
    %c512 = arith.constant 512 : index
    %74 = vector.load %arg10[%c0_43, %c512] : memref<36x1536xbf16, #tpu.memory_space<vmem>>, vector<36x1024xbf16>
    %cst_44 = arith.constant dense<0.000000e+00> : vector<8x1024xf32>
    %75 = tpu.matmul %73, %74, %cst_44 {dimension_numbers = #tpu.dot_dimension_numbers<[1], [0], [0], [1], [0, 0, 1, 1], [], []>} : vector<8x36xbf16>, vector<36x1024xbf16>, vector<8x1024xf32> -> vector<8x1024xf32>
    %76 = arith.addf %71, %75 : vector<8x1024xf32>
    %cst_45 = arith.constant dense<0.000000e+00> : vector<8xf32>
    %77 = vector.multi_reduction <add>, %76, %cst_45 [1] : vector<8x1024xf32> to vector<8xf32>
    %78 = vector.shape_cast %77 : vector<8xf32> to vector<8x1xf32>
    %c0_46 = arith.constant 0 : index
    %c0_47 = arith.constant 0 : index
    %c0_48 = arith.constant 0 : index
    %c0_49 = arith.constant 0 : index
    %79 = vector.load %arg9[%c0_46, %c0_47, %c0_48, %c0_49] : memref<1x1x8x2xf32, #tpu.memory_space<vmem>>, vector<1x1x8x1xf32>
    %80 = vector.shape_cast %79 : vector<1x1x8x1xf32> to vector<8x1xf32>
    %81 = vector.shape_cast %78 : vector<8x1xf32> to vector<1x1x8x1xf32>
    tpu.vector_store %arg9[%c0_46, %c0_47, %c0_48, %c0_49], %81 {strides = array<i32>} : memref<1x1x8x2xf32, #tpu.memory_space<vmem>>, vector<1x1x8x1xf32>,
    %82 = arith.mulf %76, %76 : vector<8x1024xf32>
    %cst_50 = arith.constant dense<0.000000e+00> : vector<8xf32>
    %83 = vector.multi_reduction <add>, %82, %cst_50 [1] : vector<8x1024xf32> to vector<8xf32>
    %84 = vector.shape_cast %83 : vector<8xf32> to vector<8x1xf32>
    %c0_51 = arith.constant 0 : index
    %c0_52 = arith.constant 0 : index
    %c0_53 = arith.constant 0 : index
    %c1_54 = arith.constant 1 : index
    %85 = vector.load %arg9[%c0_51, %c0_52, %c0_53, %c1_54] : memref<1x1x8x2xf32, #tpu.memory_space<vmem>>, vector<1x1x8x1xf32>
    %86 = vector.shape_cast %85 : vector<1x1x8x1xf32> to vector<8x1xf32>
    %87 = vector.shape_cast %84 : vector<8x1xf32> to vector<1x1x8x1xf32>
    tpu.vector_store %arg9[%c0_51, %c0_52, %c0_53, %c1_54], %87 {strides = array<i32>} : memref<1x1x8x2xf32, #tpu.memory_space<vmem>>, vector<1x1x8x1xf32>,
    %c0_55 = arith.constant 0 : index
    %c0_56 = arith.constant 0 : index
    %88 = vector.load %arg6[%c0_55, %c0_56] : memref<8x1xf32, #tpu.memory_space<vmem>>, vector<8x1xf32>
    %89 = vector.broadcast %88 : vector<8x1xf32> to vector<8x1024xf32>
    %90 = arith.addf %76, %89 : vector<8x1024xf32>
    %91 = arith.truncf %90 : vector<8x1024xf32> to vector<8x1024xbf16>
    %c0_57 = arith.constant 0 : index
    %c0_58 = arith.constant 0 : index
    %c0_59 = arith.constant 0 : index
    %92 = vector.load %arg8[%c0_57, %c0_58, %c0_59] : memref<1x8x1024xbf16, #tpu.memory_space<vmem>>, vector<1x8x1024xbf16>
    %93 = vector.shape_cast %92 : vector<1x8x1024xbf16> to vector<8x1024xbf16>
    %94 = vector.shape_cast %91 : vector<8x1024xbf16> to vector<1x8x1024xbf16>
    tpu.vector_store %arg8[%c0_57, %c0_58, %c0_59], %94 {strides = array<i32>} : memref<1x8x1024xbf16, #tpu.memory_space<vmem>>, vector<1x8x1024xbf16>,
    return
  }
  func.func @transform_0(%arg0: i32, %arg1: i32) -> (i32, i32, i32) {
    %c0_i32 = arith.constant 0 : i32
    %c0_i32_0 = arith.constant 0 : i32
    return %arg0, %c0_i32, %arg1 : i32, i32, i32
  }
  func.func @transform_1(%arg0: i32, %arg1: i32) -> (i32, i32, i32) {
    %c4_i32 = arith.constant 4 : i32
    %0 = arith.muli %arg1, %c4_i32 : i32
    %c1_i32 = arith.constant 1 : i32
    %1 = arith.subi %0, %c1_i32 : i32
    %c0_i32 = arith.constant 0 : i32
    %2 = arith.maxsi %1, %c0_i32 : i32
    %c0_i32_0 = arith.constant 0 : i32
    %c0_i32_1 = arith.constant 0 : i32
    return %arg0, %c0_i32_0, %2 : i32, i32, i32
  }
  func.func @transform_2(%arg0: i32, %arg1: i32) -> (i32, i32, i32) {
    %c1_i32 = arith.constant 1 : i32
    %0 = arith.addi %arg1, %c1_i32 : i32
    %c4_i32 = arith.constant 4 : i32
    %1 = arith.muli %0, %c4_i32 : i32
    %c15_i32 = arith.constant 15 : i32
    %2 = arith.minsi %1, %c15_i32 : i32
    %c0_i32 = arith.constant 0 : i32
    %c0_i32_0 = arith.constant 0 : i32
    return %arg0, %c0_i32, %2 : i32, i32, i32
  }
  func.func @transform_3(%arg0: i32, %arg1: i32) -> (i32, i32, i32) {
    %c0_i32 = arith.constant 0 : i32
    %c0_i32_0 = arith.constant 0 : i32
    %c0_i32_1 = arith.constant 0 : i32
    %c0_i32_2 = arith.constant 0 : i32
    return %c0_i32, %c0_i32_0, %c0_i32_1 : i32, i32, i32
  }
  func.func @transform_4(%arg0: i32, %arg1: i32) -> (i32, i32) {
    %c0_i32 = arith.constant 0 : i32
    %c0_i32_0 = arith.constant 0 : i32
    %c0_i32_1 = arith.constant 0 : i32
    return %c0_i32, %c0_i32_0 : i32, i32
  }
  func.func @transform_5(%arg0: i32, %arg1: i32) -> (i32, i32) {
    %c0_i32 = arith.constant 0 : i32
    %c0_i32_0 = arith.constant 0 : i32
    %c0_i32_1 = arith.constant 0 : i32
    return %c0_i32, %c0_i32_0 : i32, i32
  }
  func.func @transform_6(%arg0: i32, %arg1: i32) -> (i32, i32, i32) {
    %c0_i32 = arith.constant 0 : i32
    %c0_i32_0 = arith.constant 0 : i32
    return %arg0, %c0_i32, %arg1 : i32, i32, i32
  }
  func.func @transform_7(%arg0: i32, %arg1: i32) -> (i32, i32, i32, i32) {
    %c0_i32 = arith.constant 0 : i32
    %c0_i32_0 = arith.constant 0 : i32
    %c0_i32_1 = arith.constant 0 : i32
    return %arg0, %arg1, %c0_i32, %c0_i32_0 : i32, i32, i32, i32
  }
}

module attributes {stable_mosaic.version = 11 : i64} {
  func.func @_norm_lrelu_kernel(%arg0: i32, %arg1: i32, %arg2: memref<1x8x1024xbf16, #tpu.memory_space<vmem>>, %arg3: memref<1x8x1xf32, #tpu.memory_space<vmem>>, %arg4: memref<1x8x1xf32, #tpu.memory_space<vmem>>, %arg5: memref<1x8x1024xf32, #tpu.memory_space<vmem>>) attributes {dimension_semantics = [#tpu.dimension_semantics<parallel>, #tpu.dimension_semantics<parallel>], iteration_bounds = array<i64: 2, 4>, scalar_prefetch = 0 : i64, scratch_operands = 0 : i64, tpu.core_type = #tpu.core_type<tc>, window_params = [{transform_indices = @transform_0, window_bounds = array<i64: 1, 8, 1024>}, {transform_indices = @transform_1, window_bounds = array<i64: 1, 8, 1>}, {transform_indices = @transform_2, window_bounds = array<i64: 1, 8, 1>}, {transform_indices = @transform_3, window_bounds = array<i64: 1, 8, 1024>}]} {
    %c0 = arith.constant 0 : index
    %c0_0 = arith.constant 0 : index
    %c0_1 = arith.constant 0 : index
    %0 = vector.load %arg2[%c0, %c0_0, %c0_1] : memref<1x8x1024xbf16, #tpu.memory_space<vmem>>, vector<1x8x1024xbf16>
    %1 = vector.shape_cast %0 : vector<1x8x1024xbf16> to vector<8x1024xbf16>
    %2 = arith.extf %1 : vector<8x1024xbf16> to vector<8x1024xf32>
    %c0_2 = arith.constant 0 : index
    %c0_3 = arith.constant 0 : index
    %c0_4 = arith.constant 0 : index
    %3 = vector.load %arg3[%c0_2, %c0_3, %c0_4] : memref<1x8x1xf32, #tpu.memory_space<vmem>>, vector<1x8x1xf32>
    %4 = vector.shape_cast %3 : vector<1x8x1xf32> to vector<8x1xf32>
    %5 = vector.broadcast %4 : vector<8x1xf32> to vector<8x1024xf32>
    %6 = arith.mulf %2, %5 : vector<8x1024xf32>
    %c0_5 = arith.constant 0 : index
    %c0_6 = arith.constant 0 : index
    %c0_7 = arith.constant 0 : index
    %7 = vector.load %arg4[%c0_5, %c0_6, %c0_7] : memref<1x8x1xf32, #tpu.memory_space<vmem>>, vector<1x8x1xf32>
    %8 = vector.shape_cast %7 : vector<1x8x1xf32> to vector<8x1xf32>
    %9 = vector.broadcast %8 : vector<8x1xf32> to vector<8x1024xf32>
    %10 = arith.addf %6, %9 : vector<8x1024xf32>
    %cst = arith.constant 0.000000e+00 : f32
    %11 = vector.broadcast %cst : f32 to vector<8x1024xf32>
    %12 = arith.cmpf ogt, %10, %11 : vector<8x1024xf32>
    %cst_8 = arith.constant 0.00999999977 : f32
    %13 = vector.broadcast %cst_8 : f32 to vector<8x1024xf32>
    %14 = arith.mulf %13, %10 : vector<8x1024xf32>
    %15 = arith.select %12, %10, %14 : vector<8x1024xi1>, vector<8x1024xf32>
    %c0_9 = arith.constant 0 : index
    %c0_10 = arith.constant 0 : index
    %c0_11 = arith.constant 0 : index
    %16 = vector.load %arg5[%c0_9, %c0_10, %c0_11] : memref<1x8x1024xf32, #tpu.memory_space<vmem>>, vector<1x8x1024xf32>
    %17 = vector.shape_cast %16 : vector<1x8x1024xf32> to vector<8x1024xf32>
    %18 = vector.shape_cast %15 : vector<8x1024xf32> to vector<1x8x1024xf32>
    tpu.vector_store %arg5[%c0_9, %c0_10, %c0_11], %18 {strides = array<i32>} : memref<1x8x1024xf32, #tpu.memory_space<vmem>>, vector<1x8x1024xf32>,
    return
  }
  func.func @transform_0(%arg0: i32, %arg1: i32) -> (i32, i32, i32) {
    %c0_i32 = arith.constant 0 : i32
    %c0_i32_0 = arith.constant 0 : i32
    return %arg0, %c0_i32, %arg1 : i32, i32, i32
  }
  func.func @transform_1(%arg0: i32, %arg1: i32) -> (i32, i32, i32) {
    %c0_i32 = arith.constant 0 : i32
    %c0_i32_0 = arith.constant 0 : i32
    %c0_i32_1 = arith.constant 0 : i32
    return %arg0, %c0_i32, %c0_i32_0 : i32, i32, i32
  }
  func.func @transform_2(%arg0: i32, %arg1: i32) -> (i32, i32, i32) {
    %c0_i32 = arith.constant 0 : i32
    %c0_i32_0 = arith.constant 0 : i32
    %c0_i32_1 = arith.constant 0 : i32
    return %arg0, %c0_i32, %c0_i32_0 : i32, i32, i32
  }
  func.func @transform_3(%arg0: i32, %arg1: i32) -> (i32, i32, i32) {
    %c0_i32 = arith.constant 0 : i32
    %c0_i32_0 = arith.constant 0 : i32
    return %arg0, %c0_i32, %arg1 : i32, i32, i32
  }
}

</mosaic_0001>

<llo_original>
// kernel: conv_dropout_insnorm_lrelu_3d.3
$region0: #{conv_dropout_insnorm_lrelu_3d.3}
  #allocation0 [shape = 'u32[]', space=smem, size = 0x4, offset = 0x4, fixed_abs, tag = 'smem constant byte address 0x4 - core index']
  #allocation1 [shape = 'u32[144,128]{1,0:T(1,128)}', space=vmem, size = 0x12000, scoped, tag = 'internal scratch']
  %s0 = inlined_call_operand.vmem [shape: bf16[2,8,4096], index: 0, kind: input, shape index: {}]
  %s1 = inlined_call_operand.vmem [shape: f32[2,8,1], index: 1, kind: input, shape index: {}]
  %s2 = inlined_call_operand.vmem [shape: f32[2,8,1], index: 2, kind: input, shape index: {}]
  %s3 = inlined_call_operand.vmem [shape: f32[2,8,4096], index: 3, kind: output, shape index: {}]
  %s4 = sld [smem:[#allocation0]]
  $region45: #{conv_dropout_insnorm_lrelu_3d.3} parent=0
    _
  %s6 = ssub.s32 1, %s4
  %s7 = scalar_select 0, %s6, %s4
  loop: start=0, step=1, limit=10
  $region2: #{conv_dropout_insnorm_lrelu_3d.3} parent=0 // loop_pre_header
    _
  $region3: #{conv_dropout_insnorm_lrelu_3d.3} parent=0 // loop_header
    %s9 = sphi 0, %s13
    %p10 = scmp.ge.s32.totalorder %s9, 10
    %s16 = sphi 0, %s28
    %s17 = sphi 0, %s24
    %s18 = sphi 0, %s16
    %s19 = sphi 0, %s17
    %s20 = sphi 0, %s18
    %s21 = sphi 0, %s19
    %s33 = sphi 0, %s35
    %s36 = sphi 0, %s33
    %s37 = sphi 0, %s36
    %s53 = sphi 0, %s37
    %s59 = sphi 0, %s61
    %s62 = sphi 0, %s59
    %s63 = sphi 0, %s62
    %s79 = sphi 0, %s63
    %s85 = sphi 0, %s87
    %s88 = sphi 0, %s85
    %s89 = sphi 0, %s88
    %s105 = sphi 0, %s89
    %s113 = sphi 0, %s115
    %s116 = sphi 0, %s113
    %s117 = sphi 0, %s116
    %s133 = sphi 0, %s117
  $region4: #{conv_dropout_insnorm_lrelu_3d.3} parent=0 // loop_header_branch
    %12 = sbr.rel (%p10) target = $region8
  $region5: #{conv_dropout_insnorm_lrelu_3d.3} parent=0 // loop_body
    %s14 = ssub.s32 %s9, 1
    %s15 = ssub.s32 %s9, 2
    %s22 = sadd.s32 1, %s17
    %p23 = scmp.ge.s32.totalorder %s22, 4
    %s24 = scalar_select %p23, 0, %s22
    %s25 = sadd.s32 1, %s16
    %s26 = scalar_select %p23, %s25, %s16
    %p27 = scmp.ge.s32.totalorder %s26, 2
    %s28 = scalar_select %p27, 0, %s26
    %s29 = ssub.s32 %s16, %s28
    %s30 = ssub.s32 %s17, %s24
    %s31 = sor.u32 %s29, %s30
    %p32 = scmp.eq.s32.totalorder %s31, 0
    %s34 = sadd.s32 %s33, 1
    %s35 = scalar_select %p32, %s33, %s34
    %p38 = pneg %p32
    %p39 = scmp.eq.s32.totalorder %s9, 7
    %p40 = por %p38, %p39
    %p41 = scmp.ne.s32.totalorder %s33, %s36
    %p42 = scmp.eq.s32.totalorder %s9, 0
    %p43 = por %p41, %p42
    %p44 = scmp.ne.s32.totalorder %s33, %s36
    %p45 = scmp.eq.s32.totalorder %s14, 7
    %p46 = por %p44, %p45
    %p47 = scmp.ne.s32.totalorder %s36, %s37
    %p48 = scmp.eq.s32.totalorder %s14, 0
    %p49 = por %p47, %p48
    %p50 = scmp.ne.s32.totalorder %s36, %s37
    %p51 = scmp.eq.s32.totalorder %s15, 7
    %p52 = por %p50, %p51
    %p54 = scmp.ne.s32.totalorder %s37, %s53
    %p55 = scmp.eq.s32.totalorder %s15, 0
    %p56 = por %p54, %p55
    %s57 = ssub.s32 %s16, %s28
    %p58 = scmp.eq.s32.totalorder %s57, 0
    %s60 = sadd.s32 %s59, 1
    %s61 = scalar_select %p58, %s59, %s60
    %p64 = pneg %p58
    %p65 = scmp.eq.s32.totalorder %s9, 7
    %p66 = por %p64, %p65
    %p67 = scmp.ne.s32.totalorder %s59, %s62
    %p68 = scmp.eq.s32.totalorder %s9, 0
    %p69 = por %p67, %p68
    %p70 = scmp.ne.s32.totalorder %s59, %s62
    %p71 = scmp.eq.s32.totalorder %s14, 7
    %p72 = por %p70, %p71
    %p73 = scmp.ne.s32.totalorder %s62, %s63
    %p74 = scmp.eq.s32.totalorder %s14, 0
    %p75 = por %p73, %p74
    %p76 = scmp.ne.s32.totalorder %s62, %s63
    %p77 = scmp.eq.s32.totalorder %s15, 7
    %p78 = por %p76, %p77
    %p80 = scmp.ne.s32.totalorder %s63, %s79
    %p81 = scmp.eq.s32.totalorder %s15, 0
    %p82 = por %p80, %p81
    %s83 = ssub.s32 %s16, %s28
    %p84 = scmp.eq.s32.totalorder %s83, 0
    %s86 = sadd.s32 %s85, 1
    %s87 = scalar_select %p84, %s85, %s86
    %p90 = pneg %p84
    %p91 = scmp.eq.s32.totalorder %s9, 7
    %p92 = por %p90, %p91
    %p93 = scmp.ne.s32.totalorder %s85, %s88
    %p94 = scmp.eq.s32.totalorder %s9, 0
    %p95 = por %p93, %p94
    %p96 = scmp.ne.s32.totalorder %s85, %s88
    %p97 = scmp.eq.s32.totalorder %s14, 7
    %p98 = por %p96, %p97
    %p99 = scmp.ne.s32.totalorder %s88, %s89
    %p100 = scmp.eq.s32.totalorder %s14, 0
    %p101 = por %p99, %p100
    %p102 = scmp.ne.s32.totalorder %s88, %s89
    %p103 = scmp.eq.s32.totalorder %s15, 7
    %p104 = por %p102, %p103
    %p106 = scmp.ne.s32.totalorder %s89, %s105
    %p107 = scmp.eq.s32.totalorder %s15, 0
    %p108 = por %p106, %p107
    %s109 = ssub.s32 %s16, %s28
    %s110 = ssub.s32 %s17, %s24
    %s111 = sor.u32 %s109, %s110
    %p112 = scmp.eq.s32.totalorder %s111, 0
    %s114 = sadd.s32 %s113, 1
    %s115 = scalar_select %p112, %s113, %s114
    %p118 = pneg %p112
    %p119 = scmp.eq.s32.totalorder %s9, 7
    %p120 = por %p118, %p119
    %p121 = scmp.ne.s32.totalorder %s113, %s116
    %p122 = scmp.eq.s32.totalorder %s9, 0
    %p123 = por %p121, %p122
    %p124 = scmp.ne.s32.totalorder %s113, %s116
    %p125 = scmp.eq.s32.totalorder %s14, 7
    %p126 = por %p124, %p125
    %p127 = scmp.ne.s32.totalorder %s116, %s117
    %p128 = scmp.eq.s32.totalorder %s14, 0
    %p129 = por %p127, %p128
    %p130 = scmp.ne.s32.totalorder %s116, %s117
    %p131 = scmp.eq.s32.totalorder %s15, 7
    %p132 = por %p130, %p131
    %p134 = scmp.ne.s32.totalorder %s117, %s133
    %p135 = scmp.eq.s32.totalorder %s15, 0
    %p136 = por %p134, %p135
    %p137 = scmp.le.s32.totalorder 1, %s9
    %p138 = scmp.lt.s32.totalorder %s9, 9
    %p139 = pnand %p137, %p138
    %p140 = pneg %p139
    // Predicated region
    $region9: #{conv_dropout_insnorm_lrelu_3d.3} parent=5 // pred_check
      _
    $region10: #{conv_dropout_insnorm_lrelu_3d.3} parent=5 // pred_check_branch
      %142 = sbr.rel (%p139) target = $region12
    $region11: #{conv_dropout_insnorm_lrelu_3d.3} parent=5 // pred_region
      %s143 = ssub.s32 %s9, 1
    $region12: #{conv_dropout_insnorm_lrelu_3d.3} parent=5 // pred_fallthru
      _
    %p144 = scmp.lt.s32.totalorder %s9, 8
    // Predicated region
    $region13: #{conv_dropout_insnorm_lrelu_3d.3} parent=5 // pred_check
      %p145 = pneg %p144
    $region14: #{conv_dropout_insnorm_lrelu_3d.3} parent=5 // pred_check_branch
      %147 = sbr.rel (%p145) target = $region16
    $region15: #{conv_dropout_insnorm_lrelu_3d.3} parent=5 // pred_region
      // Predicated region
      $region17: #{conv_dropout_insnorm_lrelu_3d.3} parent=15 // pred_check
        %p148 = pneg %p43
      $region18: #{conv_dropout_insnorm_lrelu_3d.3} parent=15 // pred_check_branch
        %150 = sbr.rel (%p148) target = $region20
      $region19: #{conv_dropout_insnorm_lrelu_3d.3} parent=15 // pred_region
        %s151 = smul.u32 8, %s17
        %p152 = scmp.lt.s32.totalorder %s16, 1
        %s153 = scalar_select %p152, %s16, 1
        %p154 = scmp.lt.s32.totalorder %s151, 31
        %s155 = scalar_select %p154, %s151, 31
        %s156 = smul.addr %s153, 32
        %s157 = sadd.s32 %s155, %s156
        %s158 = smul.addr %s157, 4
        %s159 = scalar_lea.vmem %s0, %s158
        %s160 = smul.u32 8, %s17
      $region20: #{conv_dropout_insnorm_lrelu_3d.3} parent=15 // pred_fallthru
        _
      // Predicated region
      $region21: #{conv_dropout_insnorm_lrelu_3d.3} parent=15 // pred_check
        %p161 = pneg %p69
      $region22: #{conv_dropout_insnorm_lrelu_3d.3} parent=15 // pred_check_branch
        %163 = sbr.rel (%p161) target = $region24
      $region23: #{conv_dropout_insnorm_lrelu_3d.3} parent=15 // pred_region
        %p164 = scmp.lt.s32.totalorder %s16, 1
        %s165 = scalar_select %p164, %s16, 1
        %s166 = smul.addr %s165, 8
        %s167 = scalar_lea.vmem %s1, %s166
      $region24: #{conv_dropout_insnorm_lrelu_3d.3} parent=15 // pred_fallthru
        _
      // Predicated region
      $region25: #{conv_dropout_insnorm_lrelu_3d.3} parent=15 // pred_check
        %p168 = pneg %p95
      $region26: #{conv_dropout_insnorm_lrelu_3d.3} parent=15 // pred_check_branch
        %170 = sbr.rel (%p168) target = $region28
      $region27: #{conv_dropout_insnorm_lrelu_3d.3} parent=15 // pred_region
        %p171 = scmp.lt.s32.totalorder %s16, 1
        %s172 = scalar_select %p171, %s16, 1
        %s173 = smul.addr %s172, 8
        %s174 = scalar_lea.vmem %s2, %s173
      $region28: #{conv_dropout_insnorm_lrelu_3d.3} parent=15 // pred_fallthru
        _
    $region16: #{conv_dropout_insnorm_lrelu_3d.3} parent=5 // pred_fallthru
      _
    %p175 = scmp.le.s32.totalorder 1, %s9
    %p176 = scmp.lt.s32.totalorder %s9, 9
    %p177 = pnand %p175, %p176
    %p178 = pneg %p177
    // Predicated region
    $region29: #{conv_dropout_insnorm_lrelu_3d.3} parent=5 // pred_check
      _
    $region30: #{conv_dropout_insnorm_lrelu_3d.3} parent=5 // pred_check_branch
      %180 = sbr.rel (%p177) target = $region32
    $region31: #{conv_dropout_insnorm_lrelu_3d.3} parent=5 // pred_region
      %s181 = ssub.s32 %s9, 1
      %s182 = smul.u32 8, %s19
      %p183 = scmp.lt.s32.totalorder %s18, 1
      %s184 = scalar_select %p183, %s18, 1
      %p185 = scmp.lt.s32.totalorder %s182, 31
      %s186 = scalar_select %p185, %s182, 31
      %s187 = smul.addr %s184, 32
      %s188 = sadd.s32 %s186, %s187
      %s189 = smul.addr %s188, 4
      %s190 = scalar_lea.vmem %s0, %s189
      %p191 = pneg %p49
      %p192 = pneg %p46
      %p193 = scmp.lt.s32.totalorder %s18, 1
      %s194 = scalar_select %p193, %s18, 1
      %s195 = smul.addr %s194, 8
      %s196 = scalar_lea.vmem %s1, %s195
      %p197 = pneg %p75
      %p198 = pneg %p72
      %p199 = scmp.lt.s32.totalorder %s18, 1
      %s200 = scalar_select %p199, %s18, 1
      %s201 = smul.addr %s200, 8
      %s202 = scalar_lea.vmem %s2, %s201
      %p203 = pneg %p101
      %p204 = pneg %p98
      %p205 = pneg %p129
      %p206 = pneg %p126
      %s207 = smul.u32 8, %s19
      %p208 = scmp.lt.s32.totalorder %s18, 1
      %s209 = scalar_select %p208, %s18, 1
      %p210 = scmp.lt.s32.totalorder %s207, 31
      %s211 = scalar_select %p210, %s207, 31
      %s212 = smul.addr %s209, 32
      %s213 = sadd.s32 %s211, %s212
      %s214 = smul.addr %s213, 8
      %s215 = scalar_lea.vmem %s3, %s214
      %s216 = smul.u32 8, %s19
      %p217 = scmp.lt.s32.totalorder %s18, 1
      %s218 = scalar_select %p217, %s18, 1
      %p219 = scmp.lt.s32.totalorder %s216, 31
      %s220 = scalar_select %p219, %s216, 31
      %s221 = smul.addr %s218, 32
      %s222 = sadd.s32 %s220, %s221
      %s223 = smul.addr %s222, 4
      %s224 = scalar_lea.vmem %s0, %s223
      %s225 = smul.u32 8, %s19
      %p226 = scmp.lt.s32.totalorder %s18, 1
      %s227 = scalar_select %p226, %s18, 1
      %s228 = smul.addr %s227, 8
      %s229 = scalar_lea.vmem %s1, %s228
      %p230 = scmp.lt.s32.totalorder %s18, 1
      %s231 = scalar_select %p230, %s18, 1
      %s232 = smul.addr %s231, 8
      %s233 = scalar_lea.vmem %s2, %s232
      %s234 = smul.u32 8, %s19
      %p235 = scmp.lt.s32.totalorder %s18, 1
      %s236 = scalar_select %p235, %s18, 1
      %p237 = scmp.lt.s32.totalorder %s234, 31
      %s238 = scalar_select %p237, %s234, 31
      %s239 = smul.addr %s236, 32
      %s240 = sadd.s32 %s238, %s239
      %s241 = smul.addr %s240, 8
      %s242 = scalar_lea.vmem %s3, %s241
      %s243 = smul.u32 8, %s19
      %v244 = vld [vmem:[%s224] sm:$0xff]
      %v245 = vld [vmem:[%s224 + $0x8] sm:$0xff]
      %v246 = vld [vmem:[%s224 + $0x10] sm:$0xff]
      %v247 = vld [vmem:[%s224 + $0x18] sm:$0xff]
      %v248 = vunpack.c.l.bf16 %v244
      %v249 = vunpack.c.h.bf16 %v244
      %v250 = vunpack.c.l.bf16 %v245
      %v251 = vunpack.c.h.bf16 %v245
      %v252 = vunpack.c.l.bf16 %v246
      %v253 = vunpack.c.h.bf16 %v246
      %v254 = vunpack.c.l.bf16 %v247
      %v255 = vunpack.c.h.bf16 %v247
      %v256 = vld [vmem:[%s229] sm:$0xff]
      %258 = vset.pattern.permute.xlu0 0
      %259 = vperm.xlu0 %258, %v256
      %v260 = vpop.permute.xlu0 %259
      %v262 = vmul.f32 %v248, %v260
      %v263 = vmul.f32 %v249, %v260
      %v264 = vmul.f32 %v250, %v260
      %v265 = vmul.f32 %v251, %v260
      %v266 = vmul.f32 %v252, %v260
      %v267 = vmul.f32 %v253, %v260
      %v268 = vmul.f32 %v254, %v260
      %v269 = vmul.f32 %v255, %v260
      %v270 = vld [vmem:[%s233] sm:$0xff]
      %272 = vset.pattern.permute.xlu0 0
      %273 = vperm.xlu0 %272, %v270
      %v274 = vpop.permute.xlu0 %273
      %v276 = vadd.f32 %v262, %v274
      %v277 = vadd.f32 %v263, %v274
      %v278 = vadd.f32 %v264, %v274
      %v279 = vadd.f32 %v265, %v274
      %v280 = vadd.f32 %v266, %v274
      %v281 = vadd.f32 %v267, %v274
      %v282 = vadd.f32 %v268, %v274
      %v283 = vadd.f32 %v269, %v274
      %vm284 = vcmp.gt.f32.partialorder %v276, 0.0
      %vm285 = vcmp.gt.f32.partialorder %v277, 0.0
      %vm286 = vcmp.gt.f32.partialorder %v278, 0.0
      %vm287 = vcmp.gt.f32.partialorder %v279, 0.0
      %vm288 = vcmp.gt.f32.partialorder %v280, 0.0
      %vm289 = vcmp.gt.f32.partialorder %v281, 0.0
      %vm290 = vcmp.gt.f32.partialorder %v282, 0.0
      %vm291 = vcmp.gt.f32.partialorder %v283, 0.0
      %v292 = vmul.f32 %v276, 0.01
      %v293 = vmul.f32 %v277, 0.01
      %v294 = vmul.f32 %v278, 0.01
      %v295 = vmul.f32 %v279, 0.01
      %v296 = vmul.f32 %v280, 0.01
      %v297 = vmul.f32 %v281, 0.01
      %v298 = vmul.f32 %v282, 0.01
      %v299 = vmul.f32 %v283, 0.01
      %v300 = vsel %vm284, %v276, %v292
      %v301 = vsel %vm285, %v277, %v293
      %v302 = vsel %vm286, %v278, %v294
      %v303 = vsel %vm287, %v279, %v295
      %v304 = vsel %vm288, %v280, %v296
      %v305 = vsel %vm289, %v281, %v297
      %v306 = vsel %vm290, %v282, %v298
      %v307 = vsel %vm291, %v283, %v299
      %308 = vst [vmem:[%s242] sm:$0xff] %v300
      %309 = vst [vmem:[%s242 + $0x8] sm:$0xff] %v301
      %310 = vst [vmem:[%s242 + $0x10] sm:$0xff] %v302
      %311 = vst [vmem:[%s242 + $0x18] sm:$0xff] %v303
      %312 = vst [vmem:[%s242 + $0x20] sm:$0xff] %v304
      %313 = vst [vmem:[%s242 + $0x28] sm:$0xff] %v305
      %314 = vst [vmem:[%s242 + $0x30] sm:$0xff] %v306
      %315 = vst [vmem:[%s242 + $0x38] sm:$0xff] %v307
      %s316 = smul.u32 8, %s19
      %p317 = scmp.lt.s32.totalorder %s18, 1
      %s318 = scalar_select %p317, %s18, 1
      %p319 = scmp.lt.s32.totalorder %s316, 31
      %s320 = scalar_select %p319, %s316, 31
      %s321 = smul.addr %s318, 32
      %s322 = sadd.s32 %s320, %s321
      %s323 = smul.addr %s322, 8
      %s324 = scalar_lea.vmem %s3, %s323
      // Predicated region
      $region33: #{conv_dropout_insnorm_lrelu_3d.3} parent=31 // pred_check
        %p325 = pneg %p126
      $region34: #{conv_dropout_insnorm_lrelu_3d.3} parent=31 // pred_check_branch
        %327 = sbr.rel (%p325) target = $region36
      $region35: #{conv_dropout_insnorm_lrelu_3d.3} parent=31 // pred_region
        %s328 = smul.u32 8, %s19
      $region36: #{conv_dropout_insnorm_lrelu_3d.3} parent=31 // pred_fallthru
        _
    $region32: #{conv_dropout_insnorm_lrelu_3d.3} parent=5 // pred_fallthru
      _
    %p329 = scmp.le.s32.totalorder 2, %s9
    // Predicated region
    $region37: #{conv_dropout_insnorm_lrelu_3d.3} parent=5 // pred_check
      %p330 = pneg %p329
    $region38: #{conv_dropout_insnorm_lrelu_3d.3} parent=5 // pred_check_branch
      %332 = sbr.rel (%p330) target = $region40
    $region39: #{conv_dropout_insnorm_lrelu_3d.3} parent=5 // pred_region
      %s333 = ssub.s32 %s9, 2
      // Predicated region
      $region41: #{conv_dropout_insnorm_lrelu_3d.3} parent=39 // pred_check
        %p334 = pneg %p132
      $region42: #{conv_dropout_insnorm_lrelu_3d.3} parent=39 // pred_check_branch
        %336 = sbr.rel (%p334) target = $region44
      $region43: #{conv_dropout_insnorm_lrelu_3d.3} parent=39 // pred_region
        %s337 = smul.u32 8, %s21
        %p338 = scmp.lt.s32.totalorder %s20, 1
        %s339 = scalar_select %p338, %s20, 1
        %p340 = scmp.lt.s32.totalorder %s337, 31
        %s341 = scalar_select %p340, %s337, 31
        %s342 = smul.addr %s339, 32
        %s343 = sadd.s32 %s341, %s342
        %s344 = smul.addr %s343, 8
        %s345 = scalar_lea.vmem %s3, %s344
      $region44: #{conv_dropout_insnorm_lrelu_3d.3} parent=39 // pred_fallthru
        _
    $region40: #{conv_dropout_insnorm_lrelu_3d.3} parent=5 // pred_fallthru
      _
  $region6: #{conv_dropout_insnorm_lrelu_3d.3} parent=0 // loop_footer
    %s13 = sadd.s32 1, %s9
  $region7: #{conv_dropout_insnorm_lrelu_3d.3} parent=0 // loop_footer_branch
    %8 = sbr.rel target = $region3
  $region8: #{conv_dropout_insnorm_lrelu_3d.3} parent=0 // loop_exit
    _

// kernel: conv_dropout_insnorm_lrelu_3d.2
$region0: #{conv_dropout_insnorm_lrelu_3d.2}
  #allocation0 [shape = 'u32[]', space=smem, size = 0x4, offset = 0x4, fixed_abs, tag = 'smem constant byte address 0x4 - core index']
  #allocation1 [shape = 'u32[144,128]{1,0:T(1,128)}', space=vmem, size = 0x12000, scoped, tag = 'internal scratch']
  #allocation2 [shape = 'bf16[36,1536]{1,0:T(8,128)(2,1)}', space=vmem, size = 0x1e000, scoped, tag = 'scratch operand']
  %s0 = inlined_call_operand.vmem [shape: f32[2,4,4096], index: 0, kind: input, shape index: {}, may-alias: {0,1,2}]
  %s1 = inlined_call_operand.vmem [shape: f32[2,4,4096], index: 1, kind: input, shape index: {}, may-alias: {0,1,2}]
  %s2 = inlined_call_operand.vmem [shape: f32[2,4,4096], index: 2, kind: input, shape index: {}, may-alias: {0,1,2}]
  %s3 = inlined_call_operand.vmem [shape: bf16[3,8,36], index: 3, kind: input, shape index: {}]
  %s4 = inlined_call_operand.vmem [shape: f32[8,1], index: 4, kind: input, shape index: {}]
  %s5 = inlined_call_operand.vmem [shape: f32[9,1536], index: 5, kind: input, shape index: {}]
  %s6 = inlined_call_operand.vmem [shape: bf16[2,8,4096], index: 6, kind: output, shape index: {0}]
  %s7 = inlined_call_operand.vmem [shape: f32[2,4,8,2], index: 7, kind: output, shape index: {1}]
  %8 = xla_tuple %s6, %s7
  %s9 = sld [smem:[#allocation0]]
  $region65: #{conv_dropout_insnorm_lrelu_3d.2} parent=0
    _
  %s11 = ssub.s32 1, %s9
  %s12 = scalar_select 0, %s11, %s9
  loop: start=0, step=1, limit=10
  $region2: #{conv_dropout_insnorm_lrelu_3d.2} parent=0 // loop_pre_header
    _
  $region3: #{conv_dropout_insnorm_lrelu_3d.2} parent=0 // loop_header
    %s14 = sphi 0, %s18
    %p15 = scmp.ge.s32.totalorder %s14, 10
    %s21 = sphi 0, %s33
    %s22 = sphi 0, %s29
    %s23 = sphi 0, %s21
    %s24 = sphi 0, %s22
    %s25 = sphi 0, %s23
    %s26 = sphi 0, %s24
    %s38 = sphi 0, %s40
    %s41 = sphi 0, %s38
    %s42 = sphi 0, %s41
    %s58 = sphi 0, %s42
    %s74 = sphi 0, %s76
    %s77 = sphi 0, %s74
    %s78 = sphi 0, %s77
    %s94 = sphi 0, %s78
    %s110 = sphi 0, %s112
    %s113 = sphi 0, %s110
    %s114 = sphi 0, %s113
    %s130 = sphi 0, %s114
    %s134 = sphi 0, %s134
    %s136 = sphi 0, %s134
    %s137 = sphi 0, %s136
    %s151 = sphi 0, %s137
    %s155 = sphi 0, %s155
    %s157 = sphi 0, %s155
    %s158 = sphi 0, %s157
    %s172 = sphi 0, %s158
    %s176 = sphi 0, %s176
    %s178 = sphi 0, %s176
    %s179 = sphi 0, %s178
    %s193 = sphi 0, %s179
    %s201 = sphi 0, %s203
    %s204 = sphi 0, %s201
    %s205 = sphi 0, %s204
    %s221 = sphi 0, %s205
    %s229 = sphi 0, %s231
    %s232 = sphi 0, %s229
    %s233 = sphi 0, %s232
    %s249 = sphi 0, %s233
  $region4: #{conv_dropout_insnorm_lrelu_3d.2} parent=0 // loop_header_branch
    %17 = sbr.rel (%p15) target = $region8
  $region5: #{conv_dropout_insnorm_lrelu_3d.2} parent=0 // loop_body
    %s19 = ssub.s32 %s14, 1
    %s20 = ssub.s32 %s14, 2
    %s27 = sadd.s32 1, %s22
    %p28 = scmp.ge.s32.totalorder %s27, 4
    %s29 = scalar_select %p28, 0, %s27
    %s30 = sadd.s32 1, %s21
    %s31 = scalar_select %p28, %s30, %s21
    %p32 = scmp.ge.s32.totalorder %s31, 2
    %s33 = scalar_select %p32, 0, %s31
    %s34 = ssub.s32 %s21, %s33
    %s35 = ssub.s32 %s22, %s29
    %s36 = sor.u32 %s34, %s35
    %p37 = scmp.eq.s32.totalorder %s36, 0
    %s39 = sadd.s32 %s38, 1
    %s40 = scalar_select %p37, %s38, %s39
    %p43 = pneg %p37
    %p44 = scmp.eq.s32.totalorder %s14, 7
    %p45 = por %p43, %p44
    %p46 = scmp.ne.s32.totalorder %s38, %s41
    %p47 = scmp.eq.s32.totalorder %s14, 0
    %p48 = por %p46, %p47
    %p49 = scmp.ne.s32.totalorder %s38, %s41
    %p50 = scmp.eq.s32.totalorder %s19, 7
    %p51 = por %p49, %p50
    %p52 = scmp.ne.s32.totalorder %s41, %s42
    %p53 = scmp.eq.s32.totalorder %s19, 0
    %p54 = por %p52, %p53
    %p55 = scmp.ne.s32.totalorder %s41, %s42
    %p56 = scmp.eq.s32.totalorder %s20, 7
    %p57 = por %p55, %p56
    %p59 = scmp.ne.s32.totalorder %s42, %s58
    %p60 = scmp.eq.s32.totalorder %s20, 0
    %p61 = por %p59, %p60
    %s62 = smul.u32 %s22, 4
    %s63 = ssub.s32 %s62, 1
    %p64 = scmp.gt.s32.totalorder %s63, 0
    %s65 = scalar_select %p64, %s63, 0
    %s66 = smul.u32 %s29, 4
    %s67 = ssub.s32 %s66, 1
    %p68 = scmp.gt.s32.totalorder %s67, 0
    %s69 = scalar_select %p68, %s67, 0
    %s70 = ssub.s32 %s21, %s33
    %s71 = ssub.s32 %s65, %s69
    %s72 = sor.u32 %s70, %s71
    %p73 = scmp.eq.s32.totalorder %s72, 0
    %s75 = sadd.s32 %s74, 1
    %s76 = scalar_select %p73, %s74, %s75
    %p79 = pneg %p73
    %p80 = scmp.eq.s32.totalorder %s14, 7
    %p81 = por %p79, %p80
    %p82 = scmp.ne.s32.totalorder %s74, %s77
    %p83 = scmp.eq.s32.totalorder %s14, 0
    %p84 = por %p82, %p83
    %p85 = scmp.ne.s32.totalorder %s74, %s77
    %p86 = scmp.eq.s32.totalorder %s19, 7
    %p87 = por %p85, %p86
    %p88 = scmp.ne.s32.totalorder %s77, %s78
    %p89 = scmp.eq.s32.totalorder %s19, 0
    %p90 = por %p88, %p89
    %p91 = scmp.ne.s32.totalorder %s77, %s78
    %p92 = scmp.eq.s32.totalorder %s20, 7
    %p93 = por %p91, %p92
    %p95 = scmp.ne.s32.totalorder %s78, %s94
    %p96 = scmp.eq.s32.totalorder %s20, 0
    %p97 = por %p95, %p96
    %s98 = sadd.s32 %s22, 1
    %s99 = smul.u32 %s98, 4
    %p100 = scmp.lt.s32.totalorder %s99, 15
    %s101 = scalar_select %p100, %s99, 15
    %s102 = sadd.s32 %s29, 1
    %s103 = smul.u32 %s102, 4
    %p104 = scmp.lt.s32.totalorder %s103, 15
    %s105 = scalar_select %p104, %s103, 15
    %s106 = ssub.s32 %s21, %s33
    %s107 = ssub.s32 %s101, %s105
    %s108 = sor.u32 %s106, %s107
    %p109 = scmp.eq.s32.totalorder %s108, 0
    %s111 = sadd.s32 %s110, 1
    %s112 = scalar_select %p109, %s110, %s111
    %p115 = pneg %p109
    %p116 = scmp.eq.s32.totalorder %s14, 7
    %p117 = por %p115, %p116
    %p118 = scmp.ne.s32.totalorder %s110, %s113
    %p119 = scmp.eq.s32.totalorder %s14, 0
    %p120 = por %p118, %p119
    %p121 = scmp.ne.s32.totalorder %s110, %s113
    %p122 = scmp.eq.s32.totalorder %s19, 7
    %p123 = por %p121, %p122
    %p124 = scmp.ne.s32.totalorder %s113, %s114
    %p125 = scmp.eq.s32.totalorder %s19, 0
    %p126 = por %p124, %p125
    %p127 = scmp.ne.s32.totalorder %s113, %s114
    %p128 = scmp.eq.s32.totalorder %s20, 7
    %p129 = por %p127, %p128
    %p131 = scmp.ne.s32.totalorder %s114, %s130
    %p132 = scmp.eq.s32.totalorder %s20, 0
    %p133 = por %p131, %p132
    %s135 = sadd.s32 %s134, 1
    %p138 = scmp.eq.s32.totalorder %s14, 7
    %p139 = scmp.ne.s32.totalorder %s134, %s136
    %p140 = scmp.eq.s32.totalorder %s14, 0
    %p141 = por %p139, %p140
    %p142 = scmp.ne.s32.totalorder %s134, %s136
    %p143 = scmp.eq.s32.totalorder %s19, 7
    %p144 = por %p142, %p143
    %p145 = scmp.ne.s32.totalorder %s136, %s137
    %p146 = scmp.eq.s32.totalorder %s19, 0
    %p147 = por %p145, %p146
    %p148 = scmp.ne.s32.totalorder %s136, %s137
    %p149 = scmp.eq.s32.totalorder %s20, 7
    %p150 = por %p148, %p149
    %p152 = scmp.ne.s32.totalorder %s137, %s151
    %p153 = scmp.eq.s32.totalorder %s20, 0
    %p154 = por %p152, %p153
    %s156 = sadd.s32 %s155, 1
    %p159 = scmp.eq.s32.totalorder %s14, 7
    %p160 = scmp.ne.s32.totalorder %s155, %s157
    %p161 = scmp.eq.s32.totalorder %s14, 0
    %p162 = por %p160, %p161
    %p163 = scmp.ne.s32.totalorder %s155, %s157
    %p164 = scmp.eq.s32.totalorder %s19, 7
    %p165 = por %p163, %p164
    %p166 = scmp.ne.s32.totalorder %s157, %s158
    %p167 = scmp.eq.s32.totalorder %s19, 0
    %p168 = por %p166, %p167
    %p169 = scmp.ne.s32.totalorder %s157, %s158
    %p170 = scmp.eq.s32.totalorder %s20, 7
    %p171 = por %p169, %p170
    %p173 = scmp.ne.s32.totalorder %s158, %s172
    %p174 = scmp.eq.s32.totalorder %s20, 0
    %p175 = por %p173, %p174
    %s177 = sadd.s32 %s176, 1
    %p180 = scmp.eq.s32.totalorder %s14, 7
    %p181 = scmp.ne.s32.totalorder %s176, %s178
    %p182 = scmp.eq.s32.totalorder %s14, 0
    %p183 = por %p181, %p182
    %p184 = scmp.ne.s32.totalorder %s176, %s178
    %p185 = scmp.eq.s32.totalorder %s19, 7
    %p186 = por %p184, %p185
    %p187 = scmp.ne.s32.totalorder %s178, %s179
    %p188 = scmp.eq.s32.totalorder %s19, 0
    %p189 = por %p187, %p188
    %p190 = scmp.ne.s32.totalorder %s178, %s179
    %p191 = scmp.eq.s32.totalorder %s20, 7
    %p192 = por %p190, %p191
    %p194 = scmp.ne.s32.totalorder %s179, %s193
    %p195 = scmp.eq.s32.totalorder %s20, 0
    %p196 = por %p194, %p195
    %s197 = ssub.s32 %s21, %s33
    %s198 = ssub.s32 %s22, %s29
    %s199 = sor.u32 %s197, %s198
    %p200 = scmp.eq.s32.totalorder %s199, 0
    %s202 = sadd.s32 %s201, 1
    %s203 = scalar_select %p200, %s201, %s202
    %p206 = pneg %p200
    %p207 = scmp.eq.s32.totalorder %s14, 7
    %p208 = por %p206, %p207
    %p209 = scmp.ne.s32.totalorder %s201, %s204
    %p210 = scmp.eq.s32.totalorder %s14, 0
    %p211 = por %p209, %p210
    %p212 = scmp.ne.s32.totalorder %s201, %s204
    %p213 = scmp.eq.s32.totalorder %s19, 7
    %p214 = por %p212, %p213
    %p215 = scmp.ne.s32.totalorder %s204, %s205
    %p216 = scmp.eq.s32.totalorder %s19, 0
    %p217 = por %p215, %p216
    %p218 = scmp.ne.s32.totalorder %s204, %s205
    %p219 = scmp.eq.s32.totalorder %s20, 7
    %p220 = por %p218, %p219
    %p222 = scmp.ne.s32.totalorder %s205, %s221
    %p223 = scmp.eq.s32.totalorder %s20, 0
    %p224 = por %p222, %p223
    %s225 = ssub.s32 %s21, %s33
    %s226 = ssub.s32 %s22, %s29
    %s227 = sor.u32 %s225, %s226
    %p228 = scmp.eq.s32.totalorder %s227, 0
    %s230 = sadd.s32 %s229, 1
    %s231 = scalar_select %p228, %s229, %s230
    %p234 = pneg %p228
    %p235 = scmp.eq.s32.totalorder %s14, 7
    %p236 = por %p234, %p235
    %p237 = scmp.ne.s32.totalorder %s229, %s232
    %p238 = scmp.eq.s32.totalorder %s14, 0
    %p239 = por %p237, %p238
    %p240 = scmp.ne.s32.totalorder %s229, %s232
    %p241 = scmp.eq.s32.totalorder %s19, 7
    %p242 = por %p240, %p241
    %p243 = scmp.ne.s32.totalorder %s232, %s233
    %p244 = scmp.eq.s32.totalorder %s19, 0
    %p245 = por %p243, %p244
    %p246 = scmp.ne.s32.totalorder %s232, %s233
    %p247 = scmp.eq.s32.totalorder %s20, 7
    %p248 = por %p246, %p247
    %p250 = scmp.ne.s32.totalorder %s233, %s249
    %p251 = scmp.eq.s32.totalorder %s20, 0
    %p252 = por %p250, %p251
    %p253 = scmp.le.s32.totalorder 1, %s14
    %p254 = scmp.lt.s32.totalorder %s14, 9
    %p255 = pnand %p253, %p254
    %p256 = pneg %p255
    // Predicated region
    $region9: #{conv_dropout_insnorm_lrelu_3d.2} parent=5 // pred_check
      _
    $region10: #{conv_dropout_insnorm_lrelu_3d.2} parent=5 // pred_check_branch
      %258 = sbr.rel (%p255) target = $region12
    $region11: #{conv_dropout_insnorm_lrelu_3d.2} parent=5 // pred_region
      %s259 = ssub.s32 %s14, 1
      // Predicated region
      $region13: #{conv_dropout_insnorm_lrelu_3d.2} parent=11 // pred_check
        %p260 = pneg %p147
      $region14: #{conv_dropout_insnorm_lrelu_3d.2} parent=11 // pred_check_branch
        %262 = sbr.rel (%p260) target = $region16
      $region15: #{conv_dropout_insnorm_lrelu_3d.2} parent=11 // pred_region
        _
      $region16: #{conv_dropout_insnorm_lrelu_3d.2} parent=11 // pred_fallthru
        _
      // Predicated region
      $region17: #{conv_dropout_insnorm_lrelu_3d.2} parent=11 // pred_check
        %p263 = pneg %p168
      $region18: #{conv_dropout_insnorm_lrelu_3d.2} parent=11 // pred_check_branch
        %265 = sbr.rel (%p263) target = $region20
      $region19: #{conv_dropout_insnorm_lrelu_3d.2} parent=11 // pred_region
        _
      $region20: #{conv_dropout_insnorm_lrelu_3d.2} parent=11 // pred_fallthru
        _
      // Predicated region
      $region21: #{conv_dropout_insnorm_lrelu_3d.2} parent=11 // pred_check
        %p266 = pneg %p189
      $region22: #{conv_dropout_insnorm_lrelu_3d.2} parent=11 // pred_check_branch
        %268 = sbr.rel (%p266) target = $region24
      $region23: #{conv_dropout_insnorm_lrelu_3d.2} parent=11 // pred_region
        _
      $region24: #{conv_dropout_insnorm_lrelu_3d.2} parent=11 // pred_fallthru
        _
    $region12: #{conv_dropout_insnorm_lrelu_3d.2} parent=5 // pred_fallthru
      _
    %p269 = scmp.lt.s32.totalorder %s14, 8
    // Predicated region
    $region25: #{conv_dropout_insnorm_lrelu_3d.2} parent=5 // pred_check
      %p270 = pneg %p269
    $region26: #{conv_dropout_insnorm_lrelu_3d.2} parent=5 // pred_check_branch
      %272 = sbr.rel (%p270) target = $region28
    $region27: #{conv_dropout_insnorm_lrelu_3d.2} parent=5 // pred_region
      // Predicated region
      $region29: #{conv_dropout_insnorm_lrelu_3d.2} parent=27 // pred_check
        %p273 = pneg %p48
      $region30: #{conv_dropout_insnorm_lrelu_3d.2} parent=27 // pred_check_branch
        %275 = sbr.rel (%p273) target = $region32
      $region31: #{conv_dropout_insnorm_lrelu_3d.2} parent=27 // pred_region
        %s276 = smul.u32 8, %s22
        %p277 = scmp.lt.s32.totalorder %s21, 1
        %s278 = scalar_select %p277, %s21, 1
        %p279 = scmp.lt.s32.totalorder %s276, 31
        %s280 = scalar_select %p279, %s276, 31
        %s281 = smul.addr %s278, 32
        %s282 = sadd.s32 %s280, %s281
        %s283 = smul.addr %s282, 4
        %s284 = scalar_lea.vmem %s0, %s283
        %s285 = smul.u32 8, %s22
      $region32: #{conv_dropout_insnorm_lrelu_3d.2} parent=27 // pred_fallthru
        _
      // Predicated region
      $region33: #{conv_dropout_insnorm_lrelu_3d.2} parent=27 // pred_check
        %p286 = pneg %p84
      $region34: #{conv_dropout_insnorm_lrelu_3d.2} parent=27 // pred_check_branch
        %288 = sbr.rel (%p286) target = $region36
      $region35: #{conv_dropout_insnorm_lrelu_3d.2} parent=27 // pred_region
        %s289 = smul.u32 %s22, 4
        %s290 = ssub.s32 %s289, 1
        %p291 = scmp.gt.s32.totalorder %s290, 0
        %s292 = scalar_select %p291, %s290, 0
        %s293 = smul.u32 2, %s292
        %p294 = scmp.lt.s32.totalorder %s21, 1
        %s295 = scalar_select %p294, %s21, 1
        %p296 = scmp.lt.s32.totalorder %s293, 31
        %s297 = scalar_select %p296, %s293, 31
        %s298 = smul.addr %s295, 32
        %s299 = sadd.s32 %s297, %s298
        %s300 = smul.addr %s299, 4
        %s301 = scalar_lea.vmem %s1, %s300
        %s302 = smul.u32 %s22, 4
        %s303 = ssub.s32 %s302, 1
        %p304 = scmp.gt.s32.totalorder %s303, 0
        %s305 = scalar_select %p304, %s303, 0
        %s306 = smul.u32 2, %s305
      $region36: #{conv_dropout_insnorm_lrelu_3d.2} parent=27 // pred_fallthru
        _
      // Predicated region
      $region37: #{conv_dropout_insnorm_lrelu_3d.2} parent=27 // pred_check
        %p307 = pneg %p120
      $region38: #{conv_dropout_insnorm_lrelu_3d.2} parent=27 // pred_check_branch
        %309 = sbr.rel (%p307) target = $region40
      $region39: #{conv_dropout_insnorm_lrelu_3d.2} parent=27 // pred_region
        %s310 = sadd.s32 %s22, 1
        %s311 = smul.u32 %s310, 4
        %p312 = scmp.lt.s32.totalorder %s311, 15
        %s313 = scalar_select %p312, %s311, 15
        %s314 = smul.u32 2, %s313
        %p315 = scmp.lt.s32.totalorder %s21, 1
        %s316 = scalar_select %p315, %s21, 1
        %p317 = scmp.lt.s32.totalorder %s314, 31
        %s318 = scalar_select %p317, %s314, 31
        %s319 = smul.addr %s316, 32
        %s320 = sadd.s32 %s318, %s319
        %s321 = smul.addr %s320, 4
        %s322 = scalar_lea.vmem %s2, %s321
        %s323 = sadd.s32 %s22, 1
        %s324 = smul.u32 %s323, 4
        %p325 = scmp.lt.s32.totalorder %s324, 15
        %s326 = scalar_select %p325, %s324, 15
        %s327 = smul.u32 2, %s326
      $region40: #{conv_dropout_insnorm_lrelu_3d.2} parent=27 // pred_fallthru
        _
    $region28: #{conv_dropout_insnorm_lrelu_3d.2} parent=5 // pred_fallthru
      _
    %p328 = scmp.le.s32.totalorder 1, %s14
    %p329 = scmp.lt.s32.totalorder %s14, 9
    %p330 = pnand %p328, %p329
    %p331 = pneg %p330
    // Predicated region
    $region41: #{conv_dropout_insnorm_lrelu_3d.2} parent=5 // pred_check
      _
    $region42: #{conv_dropout_insnorm_lrelu_3d.2} parent=5 // pred_check_branch
      %333 = sbr.rel (%p330) target = $region44
    $region43: #{conv_dropout_insnorm_lrelu_3d.2} parent=5 // pred_region
      %s334 = ssub.s32 %s14, 1
      %s335 = smul.u32 8, %s24
      %p336 = scmp.lt.s32.totalorder %s23, 1
      %s337 = scalar_select %p336, %s23, 1
      %p338 = scmp.lt.s32.totalorder %s335, 31
      %s339 = scalar_select %p338, %s335, 31
      %s340 = smul.addr %s337, 32
      %s341 = sadd.s32 %s339, %s340
      %s342 = smul.addr %s341, 4
      %s343 = scalar_lea.vmem %s0, %s342
      %p344 = pneg %p54
      %p345 = pneg %p51
      %s346 = smul.u32 %s24, 4
      %s347 = ssub.s32 %s346, 1
      %p348 = scmp.gt.s32.totalorder %s347, 0
      %s349 = scalar_select %p348, %s347, 0
      %s350 = smul.u32 2, %s349
      %p351 = scmp.lt.s32.totalorder %s23, 1
      %s352 = scalar_select %p351, %s23, 1
      %p353 = scmp.lt.s32.totalorder %s350, 31
      %s354 = scalar_select %p353, %s350, 31
      %s355 = smul.addr %s352, 32
      %s356 = sadd.s32 %s354, %s355
      %s357 = smul.addr %s356, 4
      %s358 = scalar_lea.vmem %s1, %s357
      %p359 = pneg %p90
      %p360 = pneg %p87
      %s361 = sadd.s32 %s24, 1
      %s362 = smul.u32 %s361, 4
      %p363 = scmp.lt.s32.totalorder %s362, 15
      %s364 = scalar_select %p363, %s362, 15
      %s365 = smul.u32 2, %s364
      %p366 = scmp.lt.s32.totalorder %s23, 1
      %s367 = scalar_select %p366, %s23, 1
      %p368 = scmp.lt.s32.totalorder %s365, 31
      %s369 = scalar_select %p368, %s365, 31
      %s370 = smul.addr %s367, 32
      %s371 = sadd.s32 %s369, %s370
      %s372 = smul.addr %s371, 4
      %s373 = scalar_lea.vmem %s2, %s372
      %p374 = pneg %p126
      %p375 = pneg %p123
      %p376 = pneg %p147
      %p377 = pneg %p144
      %p378 = pneg %p168
      %p379 = pneg %p165
      %p380 = pneg %p189
      %p381 = pneg %p186
      %p382 = pneg %p217
      %p383 = pneg %p214
      %s384 = smul.u32 8, %s24
      %p385 = scmp.lt.s32.totalorder %s23, 1
      %s386 = scalar_select %p385, %s23, 1
      %p387 = scmp.lt.s32.totalorder %s384, 31
      %s388 = scalar_select %p387, %s384, 31
      %s389 = smul.addr %s386, 32
      %s390 = sadd.s32 %s388, %s389
      %s391 = smul.addr %s390, 4
      %s392 = scalar_lea.vmem %s6, %s391
      %p393 = pneg %p245
      %p394 = pneg %p242
      %p395 = scmp.lt.s32.totalorder %s23, 1
      %s396 = scalar_select %p395, %s23, 1
      %p397 = scmp.lt.s32.totalorder %s24, 3
      %s398 = scalar_select %p397, %s24, 3
      %s399 = smul.addr %s396, 4
      %s400 = sadd.s32 %s398, %s399
      %s401 = smul.addr %s400, 8
      %s402 = scalar_lea.vmem %s7, %s401
      %s403 = smul.u32 8, %s24
      %p404 = scmp.lt.s32.totalorder %s23, 1
      %s405 = scalar_select %p404, %s23, 1
      %p406 = scmp.lt.s32.totalorder %s403, 31
      %s407 = scalar_select %p406, %s403, 31
      %s408 = smul.addr %s405, 32
      %s409 = sadd.s32 %s407, %s408
      %s410 = smul.addr %s409, 4
      %s411 = scalar_lea.vmem %s0, %s410
      %s412 = smul.u32 8, %s24
      %s413 = smul.u32 %s24, 4
      %s414 = ssub.s32 %s413, 1
      %p415 = scmp.gt.s32.totalorder %s414, 0
      %s416 = scalar_select %p415, %s414, 0
      %s417 = smul.u32 2, %s416
      %p418 = scmp.lt.s32.totalorder %s23, 1
      %s419 = scalar_select %p418, %s23, 1
      %p420 = scmp.lt.s32.totalorder %s417, 31
      %s421 = scalar_select %p420, %s417, 31
      %s422 = smul.addr %s419, 32
      %s423 = sadd.s32 %s421, %s422
      %s424 = smul.addr %s423, 4
      %s425 = scalar_lea.vmem %s1, %s424
      %s426 = smul.u32 %s24, 4
      %s427 = ssub.s32 %s426, 1
      %p428 = scmp.gt.s32.totalorder %s427, 0
      %s429 = scalar_select %p428, %s427, 0
      %s430 = smul.u32 2, %s429
      %s431 = sadd.s32 %s24, 1
      %s432 = smul.u32 %s431, 4
      %p433 = scmp.lt.s32.totalorder %s432, 15
      %s434 = scalar_select %p433, %s432, 15
      %s435 = smul.u32 2, %s434
      %p436 = scmp.lt.s32.totalorder %s23, 1
      %s437 = scalar_select %p436, %s23, 1
      %p438 = scmp.lt.s32.totalorder %s435, 31
      %s439 = scalar_select %p438, %s435, 31
      %s440 = smul.addr %s437, 32
      %s441 = sadd.s32 %s439, %s440
      %s442 = smul.addr %s441, 4
      %s443 = scalar_lea.vmem %s2, %s442
      %s444 = sadd.s32 %s24, 1
      %s445 = smul.u32 %s444, 4
      %p446 = scmp.lt.s32.totalorder %s445, 15
      %s447 = scalar_select %p446, %s445, 15
      %s448 = smul.u32 2, %s447
      %s449 = smul.u32 8, %s24
      %p450 = scmp.lt.s32.totalorder %s23, 1
      %s451 = scalar_select %p450, %s23, 1
      %p452 = scmp.lt.s32.totalorder %s449, 31
      %s453 = scalar_select %p452, %s449, 31
      %s454 = smul.addr %s451, 32
      %s455 = sadd.s32 %s453, %s454
      %s456 = smul.addr %s455, 4
      %s457 = scalar_lea.vmem %s6, %s456
      %s458 = smul.u32 8, %s24
      %p459 = scmp.lt.s32.totalorder %s23, 1
      %s460 = scalar_select %p459, %s23, 1
      %p461 = scmp.lt.s32.totalorder %s24, 3
      %s462 = scalar_select %p461, %s24, 3
      %s463 = smul.addr %s460, 4
      %s464 = sadd.s32 %s462, %s463
      %s465 = smul.addr %s464, 8
      %s466 = scalar_lea.vmem %s7, %s465
      %p468 = scmp.eq.s32.totalorder %s24, 0
      %v469 = vld [vmem:[%s425] sm:$0xff]
      %s470 = scalar_select %p468, 1, 0
      %v471 = vstv %s470
      %vm472 = vcmp.eq.s32.totalorder %v471, 1
      %v473 = vsel %vm472, 0.0, %v469
      %p474 = scmp.eq.s32.totalorder %s24, 3
      %v475 = vld [vmem:[%s443] sm:$0xff]
      %s476 = scalar_select %p474, 1, 0
      %v477 = vstv %s476
      %vm478 = vcmp.eq.s32.totalorder %v477, 1
      %v479 = vsel %vm478, 0.0, %v475
      %v480 = vld [vmem:[%s411] sm:$0xff]
      %v481 = vld [vmem:[%s411 + $0x8] sm:$0xff]
      %v482 = vld [vmem:[%s411 + $0x10] sm:$0xff]
      %v483 = vld [vmem:[%s411 + $0x18] sm:$0xff]
      %v485 = vcombine.high %v473, %v473
      %v491 = vcombine.high %v480, %v480
      %v492 = vcombine.high %v481, %v481
      %v493 = vcombine.high %v482, %v482
      %v494 = vcombine.high %v483, %v483
      %v500 = vcombine.high %v479, %v479
      %502 = vrot.lane.b32.xlu0 %v473, 17
      %v503 = vpop.permute.xlu0 %502
      %504 = vrot.lane.b32.xlu0 %v485, 17
      %v505 = vpop.permute.xlu0 %504
      %506 = vrot.lane.b32.xlu0 %v480, 17
      %v507 = vpop.permute.xlu0 %506
      %508 = vrot.lane.b32.xlu0 %v491, 17
      %v509 = vpop.permute.xlu0 %508
      %510 = vrot.lane.b32.xlu0 %v481, 17
      %v511 = vpop.permute.xlu0 %510
      %512 = vrot.lane.b32.xlu0 %v492, 17
      %v513 = vpop.permute.xlu0 %512
      %514 = vrot.lane.b32.xlu0 %v482, 17
      %v515 = vpop.permute.xlu0 %514
      %516 = vrot.lane.b32.xlu0 %v493, 17
      %v517 = vpop.permute.xlu0 %516
      %518 = vrot.lane.b32.xlu0 %v483, 17
      %v519 = vpop.permute.xlu0 %518
      %520 = vrot.lane.b32.xlu0 %v494, 17
      %v521 = vpop.permute.xlu0 %520
      %522 = vrot.lane.b32.xlu0 %v479, 17
      %v523 = vpop.permute.xlu0 %522
      %524 = vrot.lane.b32.xlu0 %v500, 17
      %v525 = vpop.permute.xlu0 %524
      %v526 = vlaneseq
      %v527 = vand.u32 %v526, 127
      %vm528 = vcmp.lt.s32.totalorder %v527, 17
      %v529 = vsel %vm528, %v523, %v525
      %v530 = vsel %vm528, %v521, %v523
      %v531 = vsel %vm528, %v519, %v521
      %v532 = vsel %vm528, %v517, %v519
      %v533 = vsel %vm528, %v515, %v517
      %v534 = vsel %vm528, %v513, %v515
      %v535 = vsel %vm528, %v511, %v513
      %v536 = vsel %vm528, %v509, %v511
      %v537 = vsel %vm528, %v507, %v509
      %v538 = vsel %vm528, %v505, %v507
      %v539 = vsel %vm528, %v503, %v505
      %v540 = vsel %vm528, %v525, %v503
      %v541 = vld [vmem:[%s5] ss:$8 sm:$0xf]
      %v542 = vld [vmem:[%s5] ss:$8 sm:$0xf0]
      %v543 = vor.u32 %v541, %v542
      %s544 = scalar_lea.vmem %s5, 64
      %v545 = vld [vmem:[%s544] ss:$8 sm:$0xf]
      %v548 = vlaneseq
      %v549 = vshrl.u32 %v548, 7
      %v550 = vsub.s32 0, %v549
      %v551 = vrot.slane %v543, %v550
      %v552 = vlaneseq
      %v553 = vshrl.u32 %v552, 7
      %v554 = vsub.s32 1, %v553
      %v555 = vrot.slane %v543, %v554
      %v556 = vlaneseq
      %v557 = vshrl.u32 %v556, 7
      %v558 = vsub.s32 2, %v557
      %v559 = vrot.slane %v543, %v558
      %v560 = vlaneseq
      %v561 = vshrl.u32 %v560, 7
      %v562 = vsub.s32 3, %v561
      %v563 = vrot.slane %v543, %v562
      %v564 = vlaneseq
      %v565 = vshrl.u32 %v564, 7
      %v566 = vsub.s32 4, %v565
      %v567 = vrot.slane %v543, %v566
      %v568 = vlaneseq
      %v569 = vshrl.u32 %v568, 7
      %v570 = vsub.s32 5, %v569
      %v571 = vrot.slane %v543, %v570
      %v572 = vlaneseq
      %v573 = vshrl.u32 %v572, 7
      %v574 = vsub.s32 6, %v573
      %v575 = vrot.slane %v543, %v574
      %v576 = vlaneseq
      %v577 = vshrl.u32 %v576, 7
      %v578 = vsub.s32 7, %v577
      %v579 = vrot.slane %v543, %v578
      %v580 = vlaneseq
      %v581 = vshrl.u32 %v580, 7
      %v582 = vsub.s32 0, %v581
      %v583 = vrot.slane %v545, %v582
      %v584 = vlaneseq
      %v585 = vshrl.u32 %v584, 7
      %v586 = vsub.s32 1, %v585
      %v587 = vrot.slane %v545, %v586
      %v588 = vlaneseq
      %v589 = vshrl.u32 %v588, 7
      %v590 = vsub.s32 2, %v589
      %v591 = vrot.slane %v545, %v590
      %v592 = vlaneseq
      %v593 = vshrl.u32 %v592, 7
      %v594 = vsub.s32 3, %v593
      %v595 = vrot.slane %v545, %v594
      %v608 = vmul.f32 %v540, %v551
      %v609 = vmul.f32 %v539, %v555
      %v610 = vmul.f32 %v538, %v559
      %v611 = vmul.f32 %v537, %v563
      %v612 = vmul.f32 %v536, %v567
      %v613 = vmul.f32 %v535, %v571
      %v614 = vmul.f32 %v534, %v575
      %v615 = vmul.f32 %v533, %v579
      %v616 = vmul.f32 %v532, %v583
      %v617 = vmul.f32 %v531, %v587
      %v618 = vmul.f32 %v530, %v591
      %v619 = vmul.f32 %v529, %v595
      %v620 = vpack.c.bf16 %v608, %v608
      %v621 = vpack.c.bf16 %v609, %v609
      %v622 = vpack.c.bf16 %v610, %v610
      %v623 = vpack.c.bf16 %v611, %v611
      %v624 = vpack.c.bf16 %v612, %v612
      %v625 = vpack.c.bf16 %v613, %v613
      %v626 = vpack.c.bf16 %v614, %v614
      %v627 = vpack.c.bf16 %v615, %v615
      %v628 = vpack.c.bf16 %v616, %v616
      %v629 = vpack.c.bf16 %v617, %v617
      %v630 = vpack.c.bf16 %v618, %v618
      %v631 = vpack.c.bf16 %v619, %v619
      %v644 = vunpack.c.l.b16 %v620
      %v645 = vunpack.c.l.b16 %v621
      %v646 = vunpack.c.l.b16 %v622
      %v647 = vunpack.c.l.b16 %v623
      %v648 = vunpack.c.l.b16 %v624
      %v649 = vunpack.c.l.b16 %v625
      %v650 = vunpack.c.l.b16 %v626
      %v651 = vunpack.c.l.b16 %v627
      %v652 = vunpack.c.l.b16 %v628
      %v653 = vunpack.c.l.b16 %v629
      %v654 = vunpack.c.l.b16 %v630
      %v655 = vunpack.c.l.b16 %v631
      %v656 = vpack.c.b16 %v645, %v644
      %v657 = vpack.c.b16 %v647, %v646
      %v658 = vpack.c.b16 %v649, %v648
      %v659 = vpack.c.b16 %v651, %v650
      %v660 = vpack.c.b16 %v653, %v652
      %v661 = vpack.c.b16 %v655, %v654
      %668 = vst [vmem:[#allocation2] sm:$0x33] %v656
      %669 = vst [vmem:[#allocation2 + $0x8] sm:$0x33] %v657
      %670 = vst [vmem:[#allocation2 + $0x10] sm:$0x33] %v658
      %671 = vst [vmem:[#allocation2 + $0x18] sm:$0x33] %v659
      %672 = vst [vmem:[#allocation2 + $0x20] sm:$0x33] %v660
      %673 = vst [vmem:[#allocation2 + $0x28] sm:$0x33] %v661
      %674 = vrot.lane.b32.xlu0 %v473, 16
      %v675 = vpop.permute.xlu0 %674
      %676 = vrot.lane.b32.xlu0 %v485, 16
      %v677 = vpop.permute.xlu0 %676
      %678 = vrot.lane.b32.xlu0 %v480, 16
      %v679 = vpop.permute.xlu0 %678
      %680 = vrot.lane.b32.xlu0 %v491, 16
      %v681 = vpop.permute.xlu0 %680
      %682 = vrot.lane.b32.xlu0 %v481, 16
      %v683 = vpop.permute.xlu0 %682
      %684 = vrot.lane.b32.xlu0 %v492, 16
      %v685 = vpop.permute.xlu0 %684
      %686 = vrot.lane.b32.xlu0 %v482, 16
      %v687 = vpop.permute.xlu0 %686
      %688 = vrot.lane.b32.xlu0 %v493, 16
      %v689 = vpop.permute.xlu0 %688
      %690 = vrot.lane.b32.xlu0 %v483, 16
      %v691 = vpop.permute.xlu0 %690
      %692 = vrot.lane.b32.xlu0 %v494, 16
      %v693 = vpop.permute.xlu0 %692
      %694 = vrot.lane.b32.xlu0 %v479, 16
      %v695 = vpop.permute.xlu0 %694
      %696 = vrot.lane.b32.xlu0 %v500, 16
      %v697 = vpop.permute.xlu0 %696
      %vm698 = vcmp.lt.s32.totalorder %v527, 16
      %v699 = vsel %vm698, %v695, %v697
      %v700 = vsel %vm698, %v693, %v695
      %v701 = vsel %vm698, %v691, %v693
      %v702 = vsel %vm698, %v689, %v691
      %v703 = vsel %vm698, %v687, %v689
      %v704 = vsel %vm698, %v685, %v687
      %v705 = vsel %vm698, %v683, %v685
      %v706 = vsel %vm698, %v681, %v683
      %v707 = vsel %vm698, %v679, %v681
      %v708 = vsel %vm698, %v677, %v679
      %v709 = vsel %vm698, %v675, %v677
      %v710 = vsel %vm698, %v697, %v675
      %s711 = scalar_lea.vmem %s5, 1
      %v712 = vld [vmem:[%s711] ss:$8 sm:$0xf]
      %v713 = vld [vmem:[%s711] ss:$8 sm:$0xf0]
      %v714 = vor.u32 %v712, %v713
      %s715 = scalar_lea.vmem %s5, 65
      %v716 = vld [vmem:[%s715] ss:$8 sm:$0xf]
      %v719 = vlaneseq
      %v720 = vshrl.u32 %v719, 7
      %v721 = vsub.s32 0, %v720
      %v722 = vrot.slane %v714, %v721
      %v723 = vlaneseq
      %v724 = vshrl.u32 %v723, 7
      %v725 = vsub.s32 1, %v724
      %v726 = vrot.slane %v714, %v725
      %v727 = vlaneseq
      %v728 = vshrl.u32 %v727, 7
      %v729 = vsub.s32 2, %v728
      %v730 = vrot.slane %v714, %v729
      %v731 = vlaneseq
      %v732 = vshrl.u32 %v731, 7
      %v733 = vsub.s32 3, %v732
      %v734 = vrot.slane %v714, %v733
      %v735 = vlaneseq
      %v736 = vshrl.u32 %v735, 7
      %v737 = vsub.s32 4, %v736
      %v738 = vrot.slane %v714, %v737
      %v739 = vlaneseq
      %v740 = vshrl.u32 %v739, 7
      %v741 = vsub.s32 5, %v740
      %v742 = vrot.slane %v714, %v741
      %v743 = vlaneseq
      %v744 = vshrl.u32 %v743, 7
      %v745 = vsub.s32 6, %v744
      %v746 = vrot.slane %v714, %v745
      %v747 = vlaneseq
      %v748 = vshrl.u32 %v747, 7
      %v749 = vsub.s32 7, %v748
      %v750 = vrot.slane %v714, %v749
      %v751 = vlaneseq
      %v752 = vshrl.u32 %v751, 7
      %v753 = vsub.s32 0, %v752
      %v754 = vrot.slane %v716, %v753
      %v755 = vlaneseq
      %v756 = vshrl.u32 %v755, 7
      %v757 = vsub.s32 1, %v756
      %v758 = vrot.slane %v716, %v757
      %v759 = vlaneseq
      %v760 = vshrl.u32 %v759, 7
      %v761 = vsub.s32 2, %v760
      %v762 = vrot.slane %v716, %v761
      %v763 = vlaneseq
      %v764 = vshrl.u32 %v763, 7
      %v765 = vsub.s32 3, %v764
      %v766 = vrot.slane %v716, %v765
      %v779 = vmul.f32 %v710, %v722
      %v780 = vmul.f32 %v709, %v726
      %v781 = vmul.f32 %v708, %v730
      %v782 = vmul.f32 %v707, %v734
      %v783 = vmul.f32 %v706, %v738
      %v784 = vmul.f32 %v705, %v742
      %v785 = vmul.f32 %v704, %v746
      %v786 = vmul.f32 %v703, %v750
      %v787 = vmul.f32 %v702, %v754
      %v788 = vmul.f32 %v701, %v758
      %v789 = vmul.f32 %v700, %v762
      %v790 = vmul.f32 %v699, %v766
      %v791 = vpack.c.bf16 %v779, %v779
      %v792 = vpack.c.bf16 %v780, %v780
      %v793 = vpack.c.bf16 %v781, %v781
      %v794 = vpack.c.bf16 %v782, %v782
      %v795 = vpack.c.bf16 %v783, %v783
      %v796 = vpack.c.bf16 %v784, %v784
      %v797 = vpack.c.bf16 %v785, %v785
      %v798 = vpack.c.bf16 %v786, %v786
      %v799 = vpack.c.bf16 %v787, %v787
      %v800 = vpack.c.bf16 %v788, %v788
      %v801 = vpack.c.bf16 %v789, %v789
      %v802 = vpack.c.bf16 %v790, %v790
      %v815 = vunpack.c.l.b16 %v791
      %v816 = vunpack.c.l.b16 %v792
      %v817 = vunpack.c.l.b16 %v793
      %v818 = vunpack.c.l.b16 %v794
      %v819 = vunpack.c.l.b16 %v795
      %v820 = vunpack.c.l.b16 %v796
      %v821 = vunpack.c.l.b16 %v797
      %v822 = vunpack.c.l.b16 %v798
      %v823 = vunpack.c.l.b16 %v799
      %v824 = vunpack.c.l.b16 %v800
      %v825 = vunpack.c.l.b16 %v801
      %v826 = vunpack.c.l.b16 %v802
      %v827 = vpack.c.b16 %v816, %v815
      %v828 = vpack.c.b16 %v818, %v817
      %v829 = vpack.c.b16 %v820, %v819
      %v830 = vpack.c.b16 %v822, %v821
      %v831 = vpack.c.b16 %v824, %v823
      %v832 = vpack.c.b16 %v826, %v825
      %v833 = vrot.slane %v827, 6
      %v834 = vrot.slane %v828, 6
      %v835 = vrot.slane %v829, 6
      %v836 = vrot.slane %v830, 6
      %v837 = vrot.slane %v831, 6
      %v838 = vrot.slane %v832, 6
      %845 = vst [vmem:[#allocation2] sm:$0xcc] %v833
      %846 = vst [vmem:[#allocation2 + $0x8] sm:$0xcc] %v834
      %847 = vst [vmem:[#allocation2 + $0x10] sm:$0xcc] %v835
      %848 = vst [vmem:[#allocation2 + $0x18] sm:$0xcc] %v836
      %849 = vst [vmem:[#allocation2 + $0x20] sm:$0xcc] %v837
      %850 = vst [vmem:[#allocation2 + $0x28] sm:$0xcc] %v838
      %851 = vrot.lane.b32.xlu0 %v473, 15
      %v852 = vpop.permute.xlu0 %851
      %853 = vrot.lane.b32.xlu0 %v485, 15
      %v854 = vpop.permute.xlu0 %853
      %855 = vrot.lane.b32.xlu0 %v480, 15
      %v856 = vpop.permute.xlu0 %855
      %857 = vrot.lane.b32.xlu0 %v491, 15
      %v858 = vpop.permute.xlu0 %857
      %859 = vrot.lane.b32.xlu0 %v481, 15
      %v860 = vpop.permute.xlu0 %859
      %861 = vrot.lane.b32.xlu0 %v492, 15
      %v862 = vpop.permute.xlu0 %861
      %863 = vrot.lane.b32.xlu0 %v482, 15
      %v864 = vpop.permute.xlu0 %863
      %865 = vrot.lane.b32.xlu0 %v493, 15
      %v866 = vpop.permute.xlu0 %865
      %867 = vrot.lane.b32.xlu0 %v483, 15
      %v868 = vpop.permute.xlu0 %867
      %869 = vrot.lane.b32.xlu0 %v494, 15
      %v870 = vpop.permute.xlu0 %869
      %871 = vrot.lane.b32.xlu0 %v479, 15
      %v872 = vpop.permute.xlu0 %871
      %873 = vrot.lane.b32.xlu0 %v500, 15
      %v874 = vpop.permute.xlu0 %873
      %vm875 = vcmp.lt.s32.totalorder %v527, 15
      %v876 = vsel %vm875, %v872, %v874
      %v877 = vsel %vm875, %v870, %v872
      %v878 = vsel %vm875, %v868, %v870
      %v879 = vsel %vm875, %v866, %v868
      %v880 = vsel %vm875, %v864, %v866
      %v881 = vsel %vm875, %v862, %v864
      %v882 = vsel %vm875, %v860, %v862
      %v883 = vsel %vm875, %v858, %v860
      %v884 = vsel %vm875, %v856, %v858
      %v885 = vsel %vm875, %v854, %v856
      %v886 = vsel %vm875, %v852, %v854
      %v887 = vsel %vm875, %v874, %v852
      %s888 = scalar_lea.vmem %s5, 2
      %v889 = vld [vmem:[%s888] ss:$8 sm:$0xf]
      %v890 = vld [vmem:[%s888] ss:$8 sm:$0xf0]
      %v891 = vor.u32 %v889, %v890
      %s892 = scalar_lea.vmem %s5, 66
      %v893 = vld [vmem:[%s892] ss:$8 sm:$0xf]
      %v896 = vlaneseq
      %v897 = vshrl.u32 %v896, 7
      %v898 = vsub.s32 0, %v897
      %v899 = vrot.slane %v891, %v898
      %v900 = vlaneseq
      %v901 = vshrl.u32 %v900, 7
      %v902 = vsub.s32 1, %v901
      %v903 = vrot.slane %v891, %v902
      %v904 = vlaneseq
      %v905 = vshrl.u32 %v904, 7
      %v906 = vsub.s32 2, %v905
      %v907 = vrot.slane %v891, %v906
      %v908 = vlaneseq
      %v909 = vshrl.u32 %v908, 7
      %v910 = vsub.s32 3, %v909
      %v911 = vrot.slane %v891, %v910
      %v912 = vlaneseq
      %v913 = vshrl.u32 %v912, 7
      %v914 = vsub.s32 4, %v913
      %v915 = vrot.slane %v891, %v914
      %v916 = vlaneseq
      %v917 = vshrl.u32 %v916, 7
      %v918 = vsub.s32 5, %v917
      %v919 = vrot.slane %v891, %v918
      %v920 = vlaneseq
      %v921 = vshrl.u32 %v920, 7
      %v922 = vsub.s32 6, %v921
      %v923 = vrot.slane %v891, %v922
      %v924 = vlaneseq
      %v925 = vshrl.u32 %v924, 7
      %v926 = vsub.s32 7, %v925
      %v927 = vrot.slane %v891, %v926
      %v928 = vlaneseq
      %v929 = vshrl.u32 %v928, 7
      %v930 = vsub.s32 0, %v929
      %v931 = vrot.slane %v893, %v930
      %v932 = vlaneseq
      %v933 = vshrl.u32 %v932, 7
      %v934 = vsub.s32 1, %v933
      %v935 = vrot.slane %v893, %v934
      %v936 = vlaneseq
      %v937 = vshrl.u32 %v936, 7
      %v938 = vsub.s32 2, %v937
      %v939 = vrot.slane %v893, %v938
      %v940 = vlaneseq
      %v941 = vshrl.u32 %v940, 7
      %v942 = vsub.s32 3, %v941
      %v943 = vrot.slane %v893, %v942
      %v956 = vmul.f32 %v887, %v899
      %v957 = vmul.f32 %v886, %v903
      %v958 = vmul.f32 %v885, %v907
      %v959 = vmul.f32 %v884, %v911
      %v960 = vmul.f32 %v883, %v915
      %v961 = vmul.f32 %v882, %v919
      %v962 = vmul.f32 %v881, %v923
      %v963 = vmul.f32 %v880, %v927
      %v964 = vmul.f32 %v879, %v931
      %v965 = vmul.f32 %v878, %v935
      %v966 = vmul.f32 %v877, %v939
      %v967 = vmul.f32 %v876, %v943
      %v968 = vpack.c.bf16 %v956, %v956
      %v969 = vpack.c.bf16 %v957, %v957
      %v970 = vpack.c.bf16 %v958, %v958
      %v971 = vpack.c.bf16 %v959, %v959
      %v972 = vpack.c.bf16 %v960, %v960
      %v973 = vpack.c.bf16 %v961, %v961
      %v974 = vpack.c.bf16 %v962, %v962
      %v975 = vpack.c.bf16 %v963, %v963
      %v976 = vpack.c.bf16 %v964, %v964
      %v977 = vpack.c.bf16 %v965, %v965
      %v978 = vpack.c.bf16 %v966, %v966
      %v979 = vpack.c.bf16 %v967, %v967
      %v992 = vunpack.c.l.b16 %v968
      %v993 = vunpack.c.l.b16 %v969
      %v994 = vunpack.c.l.b16 %v970
      %v995 = vunpack.c.l.b16 %v971
      %v996 = vunpack.c.l.b16 %v972
      %v997 = vunpack.c.l.b16 %v973
      %v998 = vunpack.c.l.b16 %v974
      %v999 = vunpack.c.l.b16 %v975
      %v1000 = vunpack.c.l.b16 %v976
      %v1001 = vunpack.c.l.b16 %v977
      %v1002 = vunpack.c.l.b16 %v978
      %v1003 = vunpack.c.l.b16 %v979
      %v1004 = vpack.c.b16 %v993, %v992
      %v1005 = vpack.c.b16 %v995, %v994
      %v1006 = vpack.c.b16 %v997, %v996
      %v1007 = vpack.c.b16 %v999, %v998
      %v1008 = vpack.c.b16 %v1001, %v1000
      %v1009 = vpack.c.b16 %v1003, %v1002
      %1016 = vst [vmem:[#allocation2 + $0x30] sm:$0x33] %v1004
      %1017 = vst [vmem:[#allocation2 + $0x38] sm:$0x33] %v1005
      %1018 = vst [vmem:[#allocation2 + $0x40] sm:$0x33] %v1006
      %1019 = vst [vmem:[#allocation2 + $0x48] sm:$0x33] %v1007
      %1020 = vst [vmem:[#allocation2 + $0x50] sm:$0x33] %v1008
      %1021 = vst [vmem:[#allocation2 + $0x58] sm:$0x33] %v1009
      %1022 = vrot.lane.b32.xlu0 %v473, 1
      %v1023 = vpop.permute.xlu0 %1022
      %1024 = vrot.lane.b32.xlu0 %v485, 1
      %v1025 = vpop.permute.xlu0 %1024
      %1026 = vrot.lane.b32.xlu0 %v480, 1
      %v1027 = vpop.permute.xlu0 %1026
      %1028 = vrot.lane.b32.xlu0 %v491, 1
      %v1029 = vpop.permute.xlu0 %1028
      %1030 = vrot.lane.b32.xlu0 %v481, 1
      %v1031 = vpop.permute.xlu0 %1030
      %1032 = vrot.lane.b32.xlu0 %v492, 1
      %v1033 = vpop.permute.xlu0 %1032
      %1034 = vrot.lane.b32.xlu0 %v482, 1
      %v1035 = vpop.permute.xlu0 %1034
      %1036 = vrot.lane.b32.xlu0 %v493, 1
      %v1037 = vpop.permute.xlu0 %1036
      %1038 = vrot.lane.b32.xlu0 %v483, 1
      %v1039 = vpop.permute.xlu0 %1038
      %1040 = vrot.lane.b32.xlu0 %v494, 1
      %v1041 = vpop.permute.xlu0 %1040
      %1042 = vrot.lane.b32.xlu0 %v479, 1
      %v1043 = vpop.permute.xlu0 %1042
      %1044 = vrot.lane.b32.xlu0 %v500, 1
      %v1045 = vpop.permute.xlu0 %1044
      %vm1046 = vcmp.lt.s32.totalorder %v527, 1
      %v1047 = vsel %vm1046, %v1043, %v1045
      %v1048 = vsel %vm1046, %v1041, %v1043
      %v1049 = vsel %vm1046, %v1039, %v1041
      %v1050 = vsel %vm1046, %v1037, %v1039
      %v1051 = vsel %vm1046, %v1035, %v1037
      %v1052 = vsel %vm1046, %v1033, %v1035
      %v1053 = vsel %vm1046, %v1031, %v1033
      %v1054 = vsel %vm1046, %v1029, %v1031
      %v1055 = vsel %vm1046, %v1027, %v1029
      %v1056 = vsel %vm1046, %v1025, %v1027
      %v1057 = vsel %vm1046, %v1023, %v1025
      %v1058 = vsel %vm1046, %v1045, %v1023
      %s1059 = scalar_lea.vmem %s5, 3
      %v1060 = vld [vmem:[%s1059] ss:$8 sm:$0xf]
      %v1061 = vld [vmem:[%s1059] ss:$8 sm:$0xf0]
      %v1062 = vor.u32 %v1060, %v1061
      %s1063 = scalar_lea.vmem %s5, 67
      %v1064 = vld [vmem:[%s1063] ss:$8 sm:$0xf]
      %v1067 = vlaneseq
      %v1068 = vshrl.u32 %v1067, 7
      %v1069 = vsub.s32 0, %v1068
      %v1070 = vrot.slane %v1062, %v1069
      %v1071 = vlaneseq
      %v1072 = vshrl.u32 %v1071, 7
      %v1073 = vsub.s32 1, %v1072
      %v1074 = vrot.slane %v1062, %v1073
      %v1075 = vlaneseq
      %v1076 = vshrl.u32 %v1075, 7
      %v1077 = vsub.s32 2, %v1076
      %v1078 = vrot.slane %v1062, %v1077
      %v1079 = vlaneseq
      %v1080 = vshrl.u32 %v1079, 7
      %v1081 = vsub.s32 3, %v1080
      %v1082 = vrot.slane %v1062, %v1081
      %v1083 = vlaneseq
      %v1084 = vshrl.u32 %v1083, 7
      %v1085 = vsub.s32 4, %v1084
      %v1086 = vrot.slane %v1062, %v1085
      %v1087 = vlaneseq
      %v1088 = vshrl.u32 %v1087, 7
      %v1089 = vsub.s32 5, %v1088
      %v1090 = vrot.slane %v1062, %v1089
      %v1091 = vlaneseq
      %v1092 = vshrl.u32 %v1091, 7
      %v1093 = vsub.s32 6, %v1092
      %v1094 = vrot.slane %v1062, %v1093
      %v1095 = vlaneseq
      %v1096 = vshrl.u32 %v1095, 7
      %v1097 = vsub.s32 7, %v1096
      %v1098 = vrot.slane %v1062, %v1097
      %v1099 = vlaneseq
      %v1100 = vshrl.u32 %v1099, 7
      %v1101 = vsub.s32 0, %v1100
      %v1102 = vrot.slane %v1064, %v1101
      %v1103 = vlaneseq
      %v1104 = vshrl.u32 %v1103, 7
      %v1105 = vsub.s32 1, %v1104
      %v1106 = vrot.slane %v1064, %v1105
      %v1107 = vlaneseq
      %v1108 = vshrl.u32 %v1107, 7
      %v1109 = vsub.s32 2, %v1108
      %v1110 = vrot.slane %v1064, %v1109
      %v1111 = vlaneseq
      %v1112 = vshrl.u32 %v1111, 7
      %v1113 = vsub.s32 3, %v1112
      %v1114 = vrot.slane %v1064, %v1113
      %v1127 = vmul.f32 %v1058, %v1070
      %v1128 = vmul.f32 %v1057, %v1074
      %v1129 = vmul.f32 %v1056, %v1078
      %v1130 = vmul.f32 %v1055, %v1082
      %v1131 = vmul.f32 %v1054, %v1086
      %v1132 = vmul.f32 %v1053, %v1090
      %v1133 = vmul.f32 %v1052, %v1094
      %v1134 = vmul.f32 %v1051, %v1098
      %v1135 = vmul.f32 %v1050, %v1102
      %v1136 = vmul.f32 %v1049, %v1106
      %v1137 = vmul.f32 %v1048, %v1110
      %v1138 = vmul.f32 %v1047, %v1114
      %v1139 = vpack.c.bf16 %v1127, %v1127
      %v1140 = vpack.c.bf16 %v1128, %v1128
      %v1141 = vpack.c.bf16 %v1129, %v1129
      %v1142 = vpack.c.bf16 %v1130, %v1130
      %v1143 = vpack.c.bf16 %v1131, %v1131
      %v1144 = vpack.c.bf16 %v1132, %v1132
      %v1145 = vpack.c.bf16 %v1133, %v1133
      %v1146 = vpack.c.bf16 %v1134, %v1134
      %v1147 = vpack.c.bf16 %v1135, %v1135
      %v1148 = vpack.c.bf16 %v1136, %v1136
      %v1149 = vpack.c.bf16 %v1137, %v1137
      %v1150 = vpack.c.bf16 %v1138, %v1138
      %v1163 = vunpack.c.l.b16 %v1139
      %v1164 = vunpack.c.l.b16 %v1140
      %v1165 = vunpack.c.l.b16 %v1141
      %v1166 = vunpack.c.l.b16 %v1142
      %v1167 = vunpack.c.l.b16 %v1143
      %v1168 = vunpack.c.l.b16 %v1144
      %v1169 = vunpack.c.l.b16 %v1145
      %v1170 = vunpack.c.l.b16 %v1146
      %v1171 = vunpack.c.l.b16 %v1147
      %v1172 = vunpack.c.l.b16 %v1148
      %v1173 = vunpack.c.l.b16 %v1149
      %v1174 = vunpack.c.l.b16 %v1150
      %v1175 = vpack.c.b16 %v1164, %v1163
      %v1176 = vpack.c.b16 %v1166, %v1165
      %v1177 = vpack.c.b16 %v1168, %v1167
      %v1178 = vpack.c.b16 %v1170, %v1169
      %v1179 = vpack.c.b16 %v1172, %v1171
      %v1180 = vpack.c.b16 %v1174, %v1173
      %v1181 = vrot.slane %v1175, 6
      %v1182 = vrot.slane %v1176, 6
      %v1183 = vrot.slane %v1177, 6
      %v1184 = vrot.slane %v1178, 6
      %v1185 = vrot.slane %v1179, 6
      %v1186 = vrot.slane %v1180, 6
      %1193 = vst [vmem:[#allocation2 + $0x30] sm:$0xcc] %v1181
      %1194 = vst [vmem:[#allocation2 + $0x38] sm:$0xcc] %v1182
      %1195 = vst [vmem:[#allocation2 + $0x40] sm:$0xcc] %v1183
      %1196 = vst [vmem:[#allocation2 + $0x48] sm:$0xcc] %v1184
      %1197 = vst [vmem:[#allocation2 + $0x50] sm:$0xcc] %v1185
      %1198 = vst [vmem:[#allocation2 + $0x58] sm:$0xcc] %v1186
      %v1199 = vpack.c.bf16 %v473, %v473
      %v1200 = vpack.c.bf16 %v485, %v485
      %v1201 = vpack.c.bf16 %v480, %v480
      %v1202 = vpack.c.bf16 %v491, %v491
      %v1203 = vpack.c.bf16 %v481, %v481
      %v1204 = vpack.c.bf16 %v492, %v492
      %v1205 = vpack.c.bf16 %v482, %v482
      %v1206 = vpack.c.bf16 %v493, %v493
      %v1207 = vpack.c.bf16 %v483, %v483
      %v1208 = vpack.c.bf16 %v494, %v494
      %v1209 = vpack.c.bf16 %v479, %v479
      %v1210 = vpack.c.bf16 %v500, %v500
      %v1223 = vunpack.c.l.b16 %v1199
      %v1224 = vunpack.c.l.b16 %v1200
      %v1225 = vunpack.c.l.b16 %v1201
      %v1226 = vunpack.c.l.b16 %v1202
      %v1227 = vunpack.c.l.b16 %v1203
      %v1228 = vunpack.c.l.b16 %v1204
      %v1229 = vunpack.c.l.b16 %v1205
      %v1230 = vunpack.c.l.b16 %v1206
      %v1231 = vunpack.c.l.b16 %v1207
      %v1232 = vunpack.c.l.b16 %v1208
      %v1233 = vunpack.c.l.b16 %v1209
      %v1234 = vunpack.c.l.b16 %v1210
      %v1235 = vpack.c.b16 %v1224, %v1223
      %v1236 = vpack.c.b16 %v1226, %v1225
      %v1237 = vpack.c.b16 %v1228, %v1227
      %v1238 = vpack.c.b16 %v1230, %v1229
      %v1239 = vpack.c.b16 %v1232, %v1231
      %v1240 = vpack.c.b16 %v1234, %v1233
      %1247 = vst [vmem:[#allocation2 + $0x60] sm:$0x33] %v1235
      %1248 = vst [vmem:[#allocation2 + $0x68] sm:$0x33] %v1236
      %1249 = vst [vmem:[#allocation2 + $0x70] sm:$0x33] %v1237
      %1250 = vst [vmem:[#allocation2 + $0x78] sm:$0x33] %v1238
      %1251 = vst [vmem:[#allocation2 + $0x80] sm:$0x33] %v1239
      %1252 = vst [vmem:[#allocation2 + $0x88] sm:$0x33] %v1240
      %1253 = vrot.lane.b32.xlu0 %v473, 127
      %v1254 = vpop.permute.xlu0 %1253
      %1255 = vrot.lane.b32.xlu0 %v485, 127
      %v1256 = vpop.permute.xlu0 %1255
      %1257 = vrot.lane.b32.xlu0 %v480, 127
      %v1258 = vpop.permute.xlu0 %1257
      %1259 = vrot.lane.b32.xlu0 %v491, 127
      %v1260 = vpop.permute.xlu0 %1259
      %1261 = vrot.lane.b32.xlu0 %v481, 127
      %v1262 = vpop.permute.xlu0 %1261
      %1263 = vrot.lane.b32.xlu0 %v492, 127
      %v1264 = vpop.permute.xlu0 %1263
      %1265 = vrot.lane.b32.xlu0 %v482, 127
      %v1266 = vpop.permute.xlu0 %1265
      %1267 = vrot.lane.b32.xlu0 %v493, 127
      %v1268 = vpop.permute.xlu0 %1267
      %1269 = vrot.lane.b32.xlu0 %v483, 127
      %v1270 = vpop.permute.xlu0 %1269
      %1271 = vrot.lane.b32.xlu0 %v494, 127
      %v1272 = vpop.permute.xlu0 %1271
      %1273 = vrot.lane.b32.xlu0 %v479, 127
      %v1274 = vpop.permute.xlu0 %1273
      %1275 = vrot.lane.b32.xlu0 %v500, 127
      %v1276 = vpop.permute.xlu0 %1275
      %vm1277 = vcmp.lt.s32.totalorder %v527, 127
      %v1278 = vsel %vm1277, %v1274, %v1276
      %v1279 = vsel %vm1277, %v1272, %v1274
      %v1280 = vsel %vm1277, %v1270, %v1272
      %v1281 = vsel %vm1277, %v1268, %v1270
      %v1282 = vsel %vm1277, %v1266, %v1268
      %v1283 = vsel %vm1277, %v1264, %v1266
      %v1284 = vsel %vm1277, %v1262, %v1264
      %v1285 = vsel %vm1277, %v1260, %v1262
      %v1286 = vsel %vm1277, %v1258, %v1260
      %v1287 = vsel %vm1277, %v1256, %v1258
      %v1288 = vsel %vm1277, %v1254, %v1256
      %v1289 = vsel %vm1277, %v1276, %v1254
      %s1290 = scalar_lea.vmem %s5, 5
      %v1291 = vld [vmem:[%s1290] ss:$8 sm:$0xf]
      %v1292 = vld [vmem:[%s1290] ss:$8 sm:$0xf0]
      %v1293 = vor.u32 %v1291, %v1292
      %s1294 = scalar_lea.vmem %s5, 69
      %v1295 = vld [vmem:[%s1294] ss:$8 sm:$0xf]
      %v1298 = vlaneseq
      %v1299 = vshrl.u32 %v1298, 7
      %v1300 = vsub.s32 0, %v1299
      %v1301 = vrot.slane %v1293, %v1300
      %v1302 = vlaneseq
      %v1303 = vshrl.u32 %v1302, 7
      %v1304 = vsub.s32 1, %v1303
      %v1305 = vrot.slane %v1293, %v1304
      %v1306 = vlaneseq
      %v1307 = vshrl.u32 %v1306, 7
      %v1308 = vsub.s32 2, %v1307
      %v1309 = vrot.slane %v1293, %v1308
      %v1310 = vlaneseq
      %v1311 = vshrl.u32 %v1310, 7
      %v1312 = vsub.s32 3, %v1311
      %v1313 = vrot.slane %v1293, %v1312
      %v1314 = vlaneseq
      %v1315 = vshrl.u32 %v1314, 7
      %v1316 = vsub.s32 4, %v1315
      %v1317 = vrot.slane %v1293, %v1316
      %v1318 = vlaneseq
      %v1319 = vshrl.u32 %v1318, 7
      %v1320 = vsub.s32 5, %v1319
      %v1321 = vrot.slane %v1293, %v1320
      %v1322 = vlaneseq
      %v1323 = vshrl.u32 %v1322, 7
      %v1324 = vsub.s32 6, %v1323
      %v1325 = vrot.slane %v1293, %v1324
      %v1326 = vlaneseq
      %v1327 = vshrl.u32 %v1326, 7
      %v1328 = vsub.s32 7, %v1327
      %v1329 = vrot.slane %v1293, %v1328
      %v1330 = vlaneseq
      %v1331 = vshrl.u32 %v1330, 7
      %v1332 = vsub.s32 0, %v1331
      %v1333 = vrot.slane %v1295, %v1332
      %v1334 = vlaneseq
      %v1335 = vshrl.u32 %v1334, 7
      %v1336 = vsub.s32 1, %v1335
      %v1337 = vrot.slane %v1295, %v1336
      %v1338 = vlaneseq
      %v1339 = vshrl.u32 %v1338, 7
      %v1340 = vsub.s32 2, %v1339
      %v1341 = vrot.slane %v1295, %v1340
      %v1342 = vlaneseq
      %v1343 = vshrl.u32 %v1342, 7
      %v1344 = vsub.s32 3, %v1343
      %v1345 = vrot.slane %v1295, %v1344
      %v1358 = vmul.f32 %v1288, %v1301
      %v1359 = vmul.f32 %v1287, %v1305
      %v1360 = vmul.f32 %v1286, %v1309
      %v1361 = vmul.f32 %v1285, %v1313
      %v1362 = vmul.f32 %v1284, %v1317
      %v1363 = vmul.f32 %v1283, %v1321
      %v1364 = vmul.f32 %v1282, %v1325
      %v1365 = vmul.f32 %v1281, %v1329
      %v1366 = vmul.f32 %v1280, %v1333
      %v1367 = vmul.f32 %v1279, %v1337
      %v1368 = vmul.f32 %v1278, %v1341
      %v1369 = vmul.f32 %v1289, %v1345
      %v1370 = vpack.c.bf16 %v1358, %v1358
      %v1371 = vpack.c.bf16 %v1359, %v1359
      %v1372 = vpack.c.bf16 %v1360, %v1360
      %v1373 = vpack.c.bf16 %v1361, %v1361
      %v1374 = vpack.c.bf16 %v1362, %v1362
      %v1375 = vpack.c.bf16 %v1363, %v1363
      %v1376 = vpack.c.bf16 %v1364, %v1364
      %v1377 = vpack.c.bf16 %v1365, %v1365
      %v1378 = vpack.c.bf16 %v1366, %v1366
      %v1379 = vpack.c.bf16 %v1367, %v1367
      %v1380 = vpack.c.bf16 %v1368, %v1368
      %v1381 = vpack.c.bf16 %v1369, %v1369
      %v1394 = vunpack.c.l.b16 %v1370
      %v1395 = vunpack.c.l.b16 %v1371
      %v1396 = vunpack.c.l.b16 %v1372
      %v1397 = vunpack.c.l.b16 %v1373
      %v1398 = vunpack.c.l.b16 %v1374
      %v1399 = vunpack.c.l.b16 %v1375
      %v1400 = vunpack.c.l.b16 %v1376
      %v1401 = vunpack.c.l.b16 %v1377
      %v1402 = vunpack.c.l.b16 %v1378
      %v1403 = vunpack.c.l.b16 %v1379
      %v1404 = vunpack.c.l.b16 %v1380
      %v1405 = vunpack.c.l.b16 %v1381
      %v1406 = vpack.c.b16 %v1395, %v1394
      %v1407 = vpack.c.b16 %v1397, %v1396
      %v1408 = vpack.c.b16 %v1399, %v1398
      %v1409 = vpack.c.b16 %v1401, %v1400
      %v1410 = vpack.c.b16 %v1403, %v1402
      %v1411 = vpack.c.b16 %v1405, %v1404
      %v1412 = vrot.slane %v1406, 6
      %v1413 = vrot.slane %v1407, 6
      %v1414 = vrot.slane %v1408, 6
      %v1415 = vrot.slane %v1409, 6
      %v1416 = vrot.slane %v1410, 6
      %v1417 = vrot.slane %v1411, 6
      %1424 = vst [vmem:[#allocation2 + $0x60] sm:$0xcc] %v1412
      %1425 = vst [vmem:[#allocation2 + $0x68] sm:$0xcc] %v1413
      %1426 = vst [vmem:[#allocation2 + $0x70] sm:$0xcc] %v1414
      %1427 = vst [vmem:[#allocation2 + $0x78] sm:$0xcc] %v1415
      %1428 = vst [vmem:[#allocation2 + $0x80] sm:$0xcc] %v1416
      %1429 = vst [vmem:[#allocation2 + $0x88] sm:$0xcc] %v1417
      %1430 = vrot.lane.b32.xlu0 %v473, 113
      %v1431 = vpop.permute.xlu0 %1430
      %1432 = vrot.lane.b32.xlu0 %v485, 113
      %v1433 = vpop.permute.xlu0 %1432
      %1434 = vrot.lane.b32.xlu0 %v480, 113
      %v1435 = vpop.permute.xlu0 %1434
      %1436 = vrot.lane.b32.xlu0 %v491, 113
      %v1437 = vpop.permute.xlu0 %1436
      %1438 = vrot.lane.b32.xlu0 %v481, 113
      %v1439 = vpop.permute.xlu0 %1438
      %1440 = vrot.lane.b32.xlu0 %v492, 113
      %v1441 = vpop.permute.xlu0 %1440
      %1442 = vrot.lane.b32.xlu0 %v482, 113
      %v1443 = vpop.permute.xlu0 %1442
      %1444 = vrot.lane.b32.xlu0 %v493, 113
      %v1445 = vpop.permute.xlu0 %1444
      %1446 = vrot.lane.b32.xlu0 %v483, 113
      %v1447 = vpop.permute.xlu0 %1446
      %1448 = vrot.lane.b32.xlu0 %v494, 113
      %v1449 = vpop.permute.xlu0 %1448
      %1450 = vrot.lane.b32.xlu0 %v479, 113
      %v1451 = vpop.permute.xlu0 %1450
      %1452 = vrot.lane.b32.xlu0 %v500, 113
      %v1453 = vpop.permute.xlu0 %1452
      %vm1454 = vcmp.lt.s32.totalorder %v527, 113
      %v1455 = vsel %vm1454, %v1451, %v1453
      %v1456 = vsel %vm1454, %v1449, %v1451
      %v1457 = vsel %vm1454, %v1447, %v1449
      %v1458 = vsel %vm1454, %v1445, %v1447
      %v1459 = vsel %vm1454, %v1443, %v1445
      %v1460 = vsel %vm1454, %v1441, %v1443
      %v1461 = vsel %vm1454, %v1439, %v1441
      %v1462 = vsel %vm1454, %v1437, %v1439
      %v1463 = vsel %vm1454, %v1435, %v1437
      %v1464 = vsel %vm1454, %v1433, %v1435
      %v1465 = vsel %vm1454, %v1431, %v1433
      %v1466 = vsel %vm1454, %v1453, %v1431
      %s1467 = scalar_lea.vmem %s5, 6
      %v1468 = vld [vmem:[%s1467] ss:$8 sm:$0xf]
      %v1469 = vld [vmem:[%s1467] ss:$8 sm:$0xf0]
      %v1470 = vor.u32 %v1468, %v1469
      %s1471 = scalar_lea.vmem %s5, 70
      %v1472 = vld [vmem:[%s1471] ss:$8 sm:$0xf]
      %v1475 = vlaneseq
      %v1476 = vshrl.u32 %v1475, 7
      %v1477 = vsub.s32 0, %v1476
      %v1478 = vrot.slane %v1470, %v1477
      %v1479 = vlaneseq
      %v1480 = vshrl.u32 %v1479, 7
      %v1481 = vsub.s32 1, %v1480
      %v1482 = vrot.slane %v1470, %v1481
      %v1483 = vlaneseq
      %v1484 = vshrl.u32 %v1483, 7
      %v1485 = vsub.s32 2, %v1484
      %v1486 = vrot.slane %v1470, %v1485
      %v1487 = vlaneseq
      %v1488 = vshrl.u32 %v1487, 7
      %v1489 = vsub.s32 3, %v1488
      %v1490 = vrot.slane %v1470, %v1489
      %v1491 = vlaneseq
      %v1492 = vshrl.u32 %v1491, 7
      %v1493 = vsub.s32 4, %v1492
      %v1494 = vrot.slane %v1470, %v1493
      %v1495 = vlaneseq
      %v1496 = vshrl.u32 %v1495, 7
      %v1497 = vsub.s32 5, %v1496
      %v1498 = vrot.slane %v1470, %v1497
      %v1499 = vlaneseq
      %v1500 = vshrl.u32 %v1499, 7
      %v1501 = vsub.s32 6, %v1500
      %v1502 = vrot.slane %v1470, %v1501
      %v1503 = vlaneseq
      %v1504 = vshrl.u32 %v1503, 7
      %v1505 = vsub.s32 7, %v1504
      %v1506 = vrot.slane %v1470, %v1505
      %v1507 = vlaneseq
      %v1508 = vshrl.u32 %v1507, 7
      %v1509 = vsub.s32 0, %v1508
      %v1510 = vrot.slane %v1472, %v1509
      %v1511 = vlaneseq
      %v1512 = vshrl.u32 %v1511, 7
      %v1513 = vsub.s32 1, %v1512
      %v1514 = vrot.slane %v1472, %v1513
      %v1515 = vlaneseq
      %v1516 = vshrl.u32 %v1515, 7
      %v1517 = vsub.s32 2, %v1516
      %v1518 = vrot.slane %v1472, %v1517
      %v1519 = vlaneseq
      %v1520 = vshrl.u32 %v1519, 7
      %v1521 = vsub.s32 3, %v1520
      %v1522 = vrot.slane %v1472, %v1521
      %v1535 = vmul.f32 %v1465, %v1478
      %v1536 = vmul.f32 %v1464, %v1482
      %v1537 = vmul.f32 %v1463, %v1486
      %v1538 = vmul.f32 %v1462, %v1490
      %v1539 = vmul.f32 %v1461, %v1494
      %v1540 = vmul.f32 %v1460, %v1498
      %v1541 = vmul.f32 %v1459, %v1502
      %v1542 = vmul.f32 %v1458, %v1506
      %v1543 = vmul.f32 %v1457, %v1510
      %v1544 = vmul.f32 %v1456, %v1514
      %v1545 = vmul.f32 %v1455, %v1518
      %v1546 = vmul.f32 %v1466, %v1522
      %v1547 = vpack.c.bf16 %v1535, %v1535
      %v1548 = vpack.c.bf16 %v1536, %v1536
      %v1549 = vpack.c.bf16 %v1537, %v1537
      %v1550 = vpack.c.bf16 %v1538, %v1538
      %v1551 = vpack.c.bf16 %v1539, %v1539
      %v1552 = vpack.c.bf16 %v1540, %v1540
      %v1553 = vpack.c.bf16 %v1541, %v1541
      %v1554 = vpack.c.bf16 %v1542, %v1542
      %v1555 = vpack.c.bf16 %v1543, %v1543
      %v1556 = vpack.c.bf16 %v1544, %v1544
      %v1557 = vpack.c.bf16 %v1545, %v1545
      %v1558 = vpack.c.bf16 %v1546, %v1546
      %v1571 = vunpack.c.l.b16 %v1547
      %v1572 = vunpack.c.l.b16 %v1548
      %v1573 = vunpack.c.l.b16 %v1549
      %v1574 = vunpack.c.l.b16 %v1550
      %v1575 = vunpack.c.l.b16 %v1551
      %v1576 = vunpack.c.l.b16 %v1552
      %v1577 = vunpack.c.l.b16 %v1553
      %v1578 = vunpack.c.l.b16 %v1554
      %v1579 = vunpack.c.l.b16 %v1555
      %v1580 = vunpack.c.l.b16 %v1556
      %v1581 = vunpack.c.l.b16 %v1557
      %v1582 = vunpack.c.l.b16 %v1558
      %v1583 = vpack.c.b16 %v1572, %v1571
      %v1584 = vpack.c.b16 %v1574, %v1573
      %v1585 = vpack.c.b16 %v1576, %v1575
      %v1586 = vpack.c.b16 %v1578, %v1577
      %v1587 = vpack.c.b16 %v1580, %v1579
      %v1588 = vpack.c.b16 %v1582, %v1581
      %1595 = vst [vmem:[#allocation2 + $0x90] sm:$0x33] %v1583
      %1596 = vst [vmem:[#allocation2 + $0x98] sm:$0x33] %v1584
      %1597 = vst [vmem:[#allocation2 + $0xa0] sm:$0x33] %v1585
      %1598 = vst [vmem:[#allocation2 + $0xa8] sm:$0x33] %v1586
      %1599 = vst [vmem:[#allocation2 + $0xb0] sm:$0x33] %v1587
      %1600 = vst [vmem:[#allocation2 + $0xb8] sm:$0x33] %v1588
      %1601 = vrot.lane.b32.xlu0 %v473, 112
      %v1602 = vpop.permute.xlu0 %1601
      %1603 = vrot.lane.b32.xlu0 %v485, 112
      %v1604 = vpop.permute.xlu0 %1603
      %1605 = vrot.lane.b32.xlu0 %v480, 112
      %v1606 = vpop.permute.xlu0 %1605
      %1607 = vrot.lane.b32.xlu0 %v491, 112
      %v1608 = vpop.permute.xlu0 %1607
      %1609 = vrot.lane.b32.xlu0 %v481, 112
      %v1610 = vpop.permute.xlu0 %1609
      %1611 = vrot.lane.b32.xlu0 %v492, 112
      %v1612 = vpop.permute.xlu0 %1611
      %1613 = vrot.lane.b32.xlu0 %v482, 112
      %v1614 = vpop.permute.xlu0 %1613
      %1615 = vrot.lane.b32.xlu0 %v493, 112
      %v1616 = vpop.permute.xlu0 %1615
      %1617 = vrot.lane.b32.xlu0 %v483, 112
      %v1618 = vpop.permute.xlu0 %1617
      %1619 = vrot.lane.b32.xlu0 %v494, 112
      %v1620 = vpop.permute.xlu0 %1619
      %1621 = vrot.lane.b32.xlu0 %v479, 112
      %v1622 = vpop.permute.xlu0 %1621
      %1623 = vrot.lane.b32.xlu0 %v500, 112
      %v1624 = vpop.permute.xlu0 %1623
      %vm1625 = vcmp.lt.s32.totalorder %v527, 112
      %v1626 = vsel %vm1625, %v1622, %v1624
      %v1627 = vsel %vm1625, %v1620, %v1622
      %v1628 = vsel %vm1625, %v1618, %v1620
      %v1629 = vsel %vm1625, %v1616, %v1618
      %v1630 = vsel %vm1625, %v1614, %v1616
      %v1631 = vsel %vm1625, %v1612, %v1614
      %v1632 = vsel %vm1625, %v1610, %v1612
      %v1633 = vsel %vm1625, %v1608, %v1610
      %v1634 = vsel %vm1625, %v1606, %v1608
      %v1635 = vsel %vm1625, %v1604, %v1606
      %v1636 = vsel %vm1625, %v1602, %v1604
      %v1637 = vsel %vm1625, %v1624, %v1602
      %s1638 = scalar_lea.vmem %s5, 7
      %v1639 = vld [vmem:[%s1638] ss:$8 sm:$0xf]
      %v1640 = vld [vmem:[%s1638] ss:$8 sm:$0xf0]
      %v1641 = vor.u32 %v1639, %v1640
      %s1642 = scalar_lea.vmem %s5, 71
      %v1643 = vld [vmem:[%s1642] ss:$8 sm:$0xf]
      %v1646 = vlaneseq
      %v1647 = vshrl.u32 %v1646, 7
      %v1648 = vsub.s32 0, %v1647
      %v1649 = vrot.slane %v1641, %v1648
      %v1650 = vlaneseq
      %v1651 = vshrl.u32 %v1650, 7
      %v1652 = vsub.s32 1, %v1651
      %v1653 = vrot.slane %v1641, %v1652
      %v1654 = vlaneseq
      %v1655 = vshrl.u32 %v1654, 7
      %v1656 = vsub.s32 2, %v1655
      %v1657 = vrot.slane %v1641, %v1656
      %v1658 = vlaneseq
      %v1659 = vshrl.u32 %v1658, 7
      %v1660 = vsub.s32 3, %v1659
      %v1661 = vrot.slane %v1641, %v1660
      %v1662 = vlaneseq
      %v1663 = vshrl.u32 %v1662, 7
      %v1664 = vsub.s32 4, %v1663
      %v1665 = vrot.slane %v1641, %v1664
      %v1666 = vlaneseq
      %v1667 = vshrl.u32 %v1666, 7
      %v1668 = vsub.s32 5, %v1667
      %v1669 = vrot.slane %v1641, %v1668
      %v1670 = vlaneseq
      %v1671 = vshrl.u32 %v1670, 7
      %v1672 = vsub.s32 6, %v1671
      %v1673 = vrot.slane %v1641, %v1672
      %v1674 = vlaneseq
      %v1675 = vshrl.u32 %v1674, 7
      %v1676 = vsub.s32 7, %v1675
      %v1677 = vrot.slane %v1641, %v1676
      %v1678 = vlaneseq
      %v1679 = vshrl.u32 %v1678, 7
      %v1680 = vsub.s32 0, %v1679
      %v1681 = vrot.slane %v1643, %v1680
      %v1682 = vlaneseq
      %v1683 = vshrl.u32 %v1682, 7
      %v1684 = vsub.s32 1, %v1683
      %v1685 = vrot.slane %v1643, %v1684
      %v1686 = vlaneseq
      %v1687 = vshrl.u32 %v1686, 7
      %v1688 = vsub.s32 2, %v1687
      %v1689 = vrot.slane %v1643, %v1688
      %v1690 = vlaneseq
      %v1691 = vshrl.u32 %v1690, 7
      %v1692 = vsub.s32 3, %v1691
      %v1693 = vrot.slane %v1643, %v1692
      %v1706 = vmul.f32 %v1636, %v1649
      %v1707 = vmul.f32 %v1635, %v1653
      %v1708 = vmul.f32 %v1634, %v1657
      %v1709 = vmul.f32 %v1633, %v1661
      %v1710 = vmul.f32 %v1632, %v1665
      %v1711 = vmul.f32 %v1631, %v1669
      %v1712 = vmul.f32 %v1630, %v1673
      %v1713 = vmul.f32 %v1629, %v1677
      %v1714 = vmul.f32 %v1628, %v1681
      %v1715 = vmul.f32 %v1627, %v1685
      %v1716 = vmul.f32 %v1626, %v1689
      %v1717 = vmul.f32 %v1637, %v1693
      %v1718 = vpack.c.bf16 %v1706, %v1706
      %v1719 = vpack.c.bf16 %v1707, %v1707
      %v1720 = vpack.c.bf16 %v1708, %v1708
      %v1721 = vpack.c.bf16 %v1709, %v1709
      %v1722 = vpack.c.bf16 %v1710, %v1710
      %v1723 = vpack.c.bf16 %v1711, %v1711
      %v1724 = vpack.c.bf16 %v1712, %v1712
      %v1725 = vpack.c.bf16 %v1713, %v1713
      %v1726 = vpack.c.bf16 %v1714, %v1714
      %v1727 = vpack.c.bf16 %v1715, %v1715
      %v1728 = vpack.c.bf16 %v1716, %v1716
      %v1729 = vpack.c.bf16 %v1717, %v1717
      %v1742 = vunpack.c.l.b16 %v1718
      %v1743 = vunpack.c.l.b16 %v1719
      %v1744 = vunpack.c.l.b16 %v1720
      %v1745 = vunpack.c.l.b16 %v1721
      %v1746 = vunpack.c.l.b16 %v1722
      %v1747 = vunpack.c.l.b16 %v1723
      %v1748 = vunpack.c.l.b16 %v1724
      %v1749 = vunpack.c.l.b16 %v1725
      %v1750 = vunpack.c.l.b16 %v1726
      %v1751 = vunpack.c.l.b16 %v1727
      %v1752 = vunpack.c.l.b16 %v1728
      %v1753 = vunpack.c.l.b16 %v1729
      %v1754 = vpack.c.b16 %v1743, %v1742
      %v1755 = vpack.c.b16 %v1745, %v1744
      %v1756 = vpack.c.b16 %v1747, %v1746
      %v1757 = vpack.c.b16 %v1749, %v1748
      %v1758 = vpack.c.b16 %v1751, %v1750
      %v1759 = vpack.c.b16 %v1753, %v1752
      %v1760 = vrot.slane %v1754, 6
      %v1761 = vrot.slane %v1755, 6
      %v1762 = vrot.slane %v1756, 6
      %v1763 = vrot.slane %v1757, 6
      %v1764 = vrot.slane %v1758, 6
      %v1765 = vrot.slane %v1759, 6
      %1772 = vst [vmem:[#allocation2 + $0x90] sm:$0xcc] %v1760
      %1773 = vst [vmem:[#allocation2 + $0x98] sm:$0xcc] %v1761
      %1774 = vst [vmem:[#allocation2 + $0xa0] sm:$0xcc] %v1762
      %1775 = vst [vmem:[#allocation2 + $0xa8] sm:$0xcc] %v1763
      %1776 = vst [vmem:[#allocation2 + $0xb0] sm:$0xcc] %v1764
      %1777 = vst [vmem:[#allocation2 + $0xb8] sm:$0xcc] %v1765
      %1778 = vrot.lane.b32.xlu0 %v473, 111
      %v1779 = vpop.permute.xlu0 %1778
      %1780 = vrot.lane.b32.xlu0 %v485, 111
      %v1781 = vpop.permute.xlu0 %1780
      %1782 = vrot.lane.b32.xlu0 %v480, 111
      %v1783 = vpop.permute.xlu0 %1782
      %1784 = vrot.lane.b32.xlu0 %v491, 111
      %v1785 = vpop.permute.xlu0 %1784
      %1786 = vrot.lane.b32.xlu0 %v481, 111
      %v1787 = vpop.permute.xlu0 %1786
      %1788 = vrot.lane.b32.xlu0 %v492, 111
      %v1789 = vpop.permute.xlu0 %1788
      %1790 = vrot.lane.b32.xlu0 %v482, 111
      %v1791 = vpop.permute.xlu0 %1790
      %1792 = vrot.lane.b32.xlu0 %v493, 111
      %v1793 = vpop.permute.xlu0 %1792
      %1794 = vrot.lane.b32.xlu0 %v483, 111
      %v1795 = vpop.permute.xlu0 %1794
      %1796 = vrot.lane.b32.xlu0 %v494, 111
      %v1797 = vpop.permute.xlu0 %1796
      %1798 = vrot.lane.b32.xlu0 %v479, 111
      %v1799 = vpop.permute.xlu0 %1798
      %1800 = vrot.lane.b32.xlu0 %v500, 111
      %v1801 = vpop.permute.xlu0 %1800
      %vm1802 = vcmp.lt.s32.totalorder %v527, 111
      %v1803 = vsel %vm1802, %v1799, %v1801
      %v1804 = vsel %vm1802, %v1797, %v1799
      %v1805 = vsel %vm1802, %v1795, %v1797
      %v1806 = vsel %vm1802, %v1793, %v1795
      %v1807 = vsel %vm1802, %v1791, %v1793
      %v1808 = vsel %vm1802, %v1789, %v1791
      %v1809 = vsel %vm1802, %v1787, %v1789
      %v1810 = vsel %vm1802, %v1785, %v1787
      %v1811 = vsel %vm1802, %v1783, %v1785
      %v1812 = vsel %vm1802, %v1781, %v1783
      %v1813 = vsel %vm1802, %v1779, %v1781
      %v1814 = vsel %vm1802, %v1801, %v1779
      %s1815 = scalar_lea.vmem %s5, 96
      %v1816 = vld [vmem:[%s1815] ss:$8 sm:$0xf]
      %v1817 = vld [vmem:[%s1815] ss:$8 sm:$0xf0]
      %v1818 = vor.u32 %v1816, %v1817
      %s1819 = scalar_lea.vmem %s5, 160
      %v1820 = vld [vmem:[%s1819] ss:$8 sm:$0xf]
      %v1823 = vlaneseq
      %v1824 = vshrl.u32 %v1823, 7
      %v1825 = vsub.s32 0, %v1824
      %v1826 = vrot.slane %v1818, %v1825
      %v1827 = vlaneseq
      %v1828 = vshrl.u32 %v1827, 7
      %v1829 = vsub.s32 1, %v1828
      %v1830 = vrot.slane %v1818, %v1829
      %v1831 = vlaneseq
      %v1832 = vshrl.u32 %v1831, 7
      %v1833 = vsub.s32 2, %v1832
      %v1834 = vrot.slane %v1818, %v1833
      %v1835 = vlaneseq
      %v1836 = vshrl.u32 %v1835, 7
      %v1837 = vsub.s32 3, %v1836
      %v1838 = vrot.slane %v1818, %v1837
      %v1839 = vlaneseq
      %v1840 = vshrl.u32 %v1839, 7
      %v1841 = vsub.s32 4, %v1840
      %v1842 = vrot.slane %v1818, %v1841
      %v1843 = vlaneseq
      %v1844 = vshrl.u32 %v1843, 7
      %v1845 = vsub.s32 5, %v1844
      %v1846 = vrot.slane %v1818, %v1845
      %v1847 = vlaneseq
      %v1848 = vshrl.u32 %v1847, 7
      %v1849 = vsub.s32 6, %v1848
      %v1850 = vrot.slane %v1818, %v1849
      %v1851 = vlaneseq
      %v1852 = vshrl.u32 %v1851, 7
      %v1853 = vsub.s32 7, %v1852
      %v1854 = vrot.slane %v1818, %v1853
      %v1855 = vlaneseq
      %v1856 = vshrl.u32 %v1855, 7
      %v1857 = vsub.s32 0, %v1856
      %v1858 = vrot.slane %v1820, %v1857
      %v1859 = vlaneseq
      %v1860 = vshrl.u32 %v1859, 7
      %v1861 = vsub.s32 1, %v1860
      %v1862 = vrot.slane %v1820, %v1861
      %v1863 = vlaneseq
      %v1864 = vshrl.u32 %v1863, 7
      %v1865 = vsub.s32 2, %v1864
      %v1866 = vrot.slane %v1820, %v1865
      %v1867 = vlaneseq
      %v1868 = vshrl.u32 %v1867, 7
      %v1869 = vsub.s32 3, %v1868
      %v1870 = vrot.slane %v1820, %v1869
      %v1883 = vmul.f32 %v1813, %v1826
      %v1884 = vmul.f32 %v1812, %v1830
      %v1885 = vmul.f32 %v1811, %v1834
      %v1886 = vmul.f32 %v1810, %v1838
      %v1887 = vmul.f32 %v1809, %v1842
      %v1888 = vmul.f32 %v1808, %v1846
      %v1889 = vmul.f32 %v1807, %v1850
      %v1890 = vmul.f32 %v1806, %v1854
      %v1891 = vmul.f32 %v1805, %v1858
      %v1892 = vmul.f32 %v1804, %v1862
      %v1893 = vmul.f32 %v1803, %v1866
      %v1894 = vmul.f32 %v1814, %v1870
      %v1895 = vpack.c.bf16 %v1883, %v1883
      %v1896 = vpack.c.bf16 %v1884, %v1884
      %v1897 = vpack.c.bf16 %v1885, %v1885
      %v1898 = vpack.c.bf16 %v1886, %v1886
      %v1899 = vpack.c.bf16 %v1887, %v1887
      %v1900 = vpack.c.bf16 %v1888, %v1888
      %v1901 = vpack.c.bf16 %v1889, %v1889
      %v1902 = vpack.c.bf16 %v1890, %v1890
      %v1903 = vpack.c.bf16 %v1891, %v1891
      %v1904 = vpack.c.bf16 %v1892, %v1892
      %v1905 = vpack.c.bf16 %v1893, %v1893
      %v1906 = vpack.c.bf16 %v1894, %v1894
      %v1919 = vunpack.c.l.b16 %v1895
      %v1920 = vunpack.c.l.b16 %v1896
      %v1921 = vunpack.c.l.b16 %v1897
      %v1922 = vunpack.c.l.b16 %v1898
      %v1923 = vunpack.c.l.b16 %v1899
      %v1924 = vunpack.c.l.b16 %v1900
      %v1925 = vunpack.c.l.b16 %v1901
      %v1926 = vunpack.c.l.b16 %v1902
      %v1927 = vunpack.c.l.b16 %v1903
      %v1928 = vunpack.c.l.b16 %v1904
      %v1929 = vunpack.c.l.b16 %v1905
      %v1930 = vunpack.c.l.b16 %v1906
      %v1931 = vpack.c.b16 %v1920, %v1919
      %v1932 = vpack.c.b16 %v1922, %v1921
      %v1933 = vpack.c.b16 %v1924, %v1923
      %v1934 = vpack.c.b16 %v1926, %v1925
      %v1935 = vpack.c.b16 %v1928, %v1927
      %v1936 = vpack.c.b16 %v1930, %v1929
      %1943 = vst [vmem:[#allocation2 + $0xc0] sm:$0x33] %v1931
      %1944 = vst [vmem:[#allocation2 + $0xc8] sm:$0x33] %v1932
      %1945 = vst [vmem:[#allocation2 + $0xd0] sm:$0x33] %v1933
      %1946 = vst [vmem:[#allocation2 + $0xd8] sm:$0x33] %v1934
      %1947 = vst [vmem:[#allocation2 + $0xe0] sm:$0x33] %v1935
      %1948 = vst [vmem:[#allocation2 + $0xe8] sm:$0x33] %v1936
      %v1949 = vld [vmem:[%s3] sm:$0xf]
      %v1950 = vld [vmem:[#allocation2] sm:$0xff]
      %v1951 = vld [vmem:[#allocation2 + $0x8] sm:$0xff]
      %v1952 = vld [vmem:[#allocation2 + $0x10] sm:$0xff]
      %v1953 = vld [vmem:[#allocation2 + $0x18] sm:$0xff]
      %v1954 = vld [vmem:[#allocation2 + $0x30] sm:$0xff]
      %v1955 = vld [vmem:[#allocation2 + $0x38] sm:$0xff]
      %v1956 = vld [vmem:[#allocation2 + $0x40] sm:$0xff]
      %v1957 = vld [vmem:[#allocation2 + $0x48] sm:$0xff]
      %v1958 = vld [vmem:[#allocation2 + $0x60] sm:$0xff]
      %v1959 = vld [vmem:[#allocation2 + $0x68] sm:$0xff]
      %v1960 = vld [vmem:[#allocation2 + $0x70] sm:$0xff]
      %v1961 = vld [vmem:[#allocation2 + $0x78] sm:$0xff]
      %v1962 = vld [vmem:[#allocation2 + $0x90] sm:$0xff]
      %v1963 = vld [vmem:[#allocation2 + $0x98] sm:$0xff]
      %v1964 = vld [vmem:[#allocation2 + $0xa0] sm:$0xff]
      %v1965 = vld [vmem:[#allocation2 + $0xa8] sm:$0xff]
      %v1966 = vld [vmem:[#allocation2 + $0xc0] sm:$0x33]
      %v1967 = vld [vmem:[#allocation2 + $0xc8] sm:$0x33]
      %v1968 = vld [vmem:[#allocation2 + $0xd0] sm:$0x33]
      %v1969 = vld [vmem:[#allocation2 + $0xd8] sm:$0x33]
      %s1970 = scalar_lea.vmem %s3, 4
      %v1971 = vld [vmem:[%s1970] sm:$0xf]
      %v1972 = vld [vmem:[#allocation2 + $0x20] sm:$0xff]
      %v1973 = vld [vmem:[#allocation2 + $0x50] sm:$0xff]
      %v1974 = vld [vmem:[#allocation2 + $0x80] sm:$0xff]
      %v1975 = vld [vmem:[#allocation2 + $0xb0] sm:$0xff]
      %v1976 = vld [vmem:[#allocation2 + $0xe0] sm:$0x33]
      %v1997 = vunpack.c.l.b16 %v1951
      %v1998 = vunpack.c.h.b16 %v1951
      %v1999 = vunpack.c.l.b16 %v1952
      %v2000 = vunpack.c.h.b16 %v1952
      %v2001 = vunpack.c.l.b16 %v1953
      %v2002 = vunpack.c.h.b16 %v1953
      %v2003 = vunpack.c.l.b16 %v1972
      %v2004 = vunpack.c.h.b16 %v1972
      %v2005 = vunpack.c.l.b16 %v1955
      %v2006 = vunpack.c.h.b16 %v1955
      %v2007 = vunpack.c.l.b16 %v1956
      %v2008 = vunpack.c.h.b16 %v1956
      %v2009 = vunpack.c.l.b16 %v1957
      %v2010 = vunpack.c.h.b16 %v1957
      %v2011 = vunpack.c.l.b16 %v1973
      %v2012 = vunpack.c.h.b16 %v1973
      %v2013 = vunpack.c.l.b16 %v1959
      %v2014 = vunpack.c.h.b16 %v1959
      %v2015 = vunpack.c.l.b16 %v1960
      %v2016 = vunpack.c.h.b16 %v1960
      %v2017 = vunpack.c.l.b16 %v1961
      %v2018 = vunpack.c.h.b16 %v1961
      %v2019 = vunpack.c.l.b16 %v1974
      %v2020 = vunpack.c.h.b16 %v1974
      %v2021 = vunpack.c.l.b16 %v1963
      %v2022 = vunpack.c.h.b16 %v1963
      %v2023 = vunpack.c.l.b16 %v1964
      %v2024 = vunpack.c.h.b16 %v1964
      %v2025 = vunpack.c.l.b16 %v1965
      %v2026 = vunpack.c.h.b16 %v1965
      %v2027 = vunpack.c.l.b16 %v1975
      %v2028 = vunpack.c.h.b16 %v1975
      %v2029 = vunpack.c.l.b16 %v1967
      %v2030 = vunpack.c.h.b16 %v1967
      %v2031 = vunpack.c.l.b16 %v1968
      %v2032 = vunpack.c.h.b16 %v1968
      %v2033 = vunpack.c.l.b16 %v1969
      %v2034 = vunpack.c.h.b16 %v1969
      %v2035 = vunpack.c.l.b16 %v1976
      %v2036 = vunpack.c.h.b16 %v1976
      %v2037 = vpack.c.b16 %v2005, %v1997
      %v2038 = vpack.c.b16 %v2006, %v1998
      %v2039 = vpack.c.b16 %v2007, %v1999
      %v2040 = vpack.c.b16 %v2008, %v2000
      %v2041 = vpack.c.b16 %v2009, %v2001
      %v2042 = vpack.c.b16 %v2010, %v2002
      %v2043 = vpack.c.b16 %v2011, %v2003
      %v2044 = vpack.c.b16 %v2012, %v2004
      %v2045 = vpack.c.b16 %v2021, %v2013
      %v2046 = vpack.c.b16 %v2022, %v2014
      %v2047 = vpack.c.b16 %v2023, %v2015
      %v2048 = vpack.c.b16 %v2024, %v2016
      %v2049 = vpack.c.b16 %v2025, %v2017
      %v2050 = vpack.c.b16 %v2026, %v2018
      %v2051 = vpack.c.b16 %v2027, %v2019
      %v2052 = vpack.c.b16 %v2028, %v2020
      %v2053 = vpack.c.b16 %v2029, %v2029
      %v2054 = vpack.c.b16 %v2030, %v2030
      %v2055 = vpack.c.b16 %v2031, %v2031
      %v2056 = vpack.c.b16 %v2032, %v2032
      %v2057 = vpack.c.b16 %v2033, %v2033
      %v2058 = vpack.c.b16 %v2034, %v2034
      %v2059 = vpack.c.b16 %v2035, %v2035
      %v2060 = vpack.c.b16 %v2036, %v2036
      %vm2077 = vcmask 293888
      %v2079 = vsel %vm2077, %v1971, 0
      %vm2081 = vcmask 1041408
      %v2083 = vsel %vm2081, %v2053, 0
      %v2086 = vsel %vm2081, %v2054, 0
      %v2089 = vsel %vm2081, %v2055, 0
      %v2092 = vsel %vm2081, %v2056, 0
      %v2095 = vsel %vm2081, %v2057, 0
      %v2098 = vsel %vm2081, %v2058, 0
      %v2101 = vsel %vm2081, %v2059, 0
      %v2104 = vsel %vm2081, %v2060, 0
      %2106 = vmatprep.subr.bf16.mxu0 %v2038
      %2107 = vmatpush1.bf16.msra.mxu0 %v2037
      %2108 = vmatprep.subr.bf16.mxu0 %v2046
      %2109 = vmatpush1.bf16.msra.mxu0 %v2045
      %2110 = vmatprep.subr.bf16.mxu0 %v2086
      %2111 = vmatpush1.bf16.msra.mxu0 %v2083
      %2112 = vmatprep.subr.bf16.mxu0 0
      %2113 = vmatpush1.bf16.msra.mxu0 0
      %2114 = vmatprep.subr.bf16.mxu0 0
      %2115 = vmatpush1.bf16.msra.mxu0 0
      %2116 = vmatprep.subr.bf16.mxu0 0
      %2117 = vmatpush1.bf16.msra.mxu0 0
      %2118 = vmatprep.subr.bf16.mxu0 0
      %2119 = vmatpush1.bf16.msra.mxu0 0
      %2120 = vmatprep.subr.bf16.mxu0 0
      %2121 = vmatpush1.bf16.msra.mxu0 0
      %2122 = vmatprep.subr.bf16.mxu0 0
      %2123 = vmatpush1.bf16.msra.mxu0 0
      %2124 = vmatprep.subr.bf16.mxu0 0
      %2125 = vmatpush1.bf16.msra.mxu0 0
      %2126 = vmatprep.subr.bf16.mxu0 0
      %2127 = vmatpush1.bf16.msra.mxu0 0
      %2128 = vmatprep.subr.bf16.mxu0 0
      %2129 = vmatpush1.bf16.msra.mxu0 0
      %2130 = vmatprep.subr.bf16.mxu0 0
      %2131 = vmatpush1.bf16.msra.mxu0 0
      %2132 = vmatprep.subr.bf16.mxu0 0
      %2133 = vmatpush1.bf16.msra.mxu0 0
      %2134 = vmatprep.subr.bf16.mxu0 0
      %2135 = vmatpush1.bf16.msra.mxu0 0
      %2136 = vmatprep.subr.bf16.mxu0 0
      %2137 = vmatpush1.bf16.msra.mxu0 0
      %2138 = vmatprep.mubr.bf16.mxu0 0
      %2139 = vmatmul.mubr.bf16.gmra.mrb[0].mxu0 %v2079
      %v2140 = vpop.f32.mrb[0].mxu0
      %v2141 = vadd.f32 0.0, %v2140
      %v2142 = vpop.f32.mrb[0].mxu0
      %v2143 = vadd.f32 0.0, %v2142
      %v2144 = vpop.f32.mrb[0].mxu0
      %v2145 = vpop.f32.mrb[0].mxu0
      %2146 = vdwg.mxu0
      %2147 = vmatprep.subr.bf16.mxu0 %v2040
      %2148 = vmatpush1.bf16.msra.mxu0 %v2039
      %2149 = vmatprep.subr.bf16.mxu0 %v2048
      %2150 = vmatpush1.bf16.msra.mxu0 %v2047
      %2151 = vmatprep.subr.bf16.mxu0 %v2092
      %2152 = vmatpush1.bf16.msra.mxu0 %v2089
      %2153 = vmatprep.subr.bf16.mxu0 0
      %2154 = vmatpush1.bf16.msra.mxu0 0
      %2155 = vmatprep.subr.bf16.mxu0 0
      %2156 = vmatpush1.bf16.msra.mxu0 0
      %2157 = vmatprep.subr.bf16.mxu0 0
      %2158 = vmatpush1.bf16.msra.mxu0 0
      %2159 = vmatprep.subr.bf16.mxu0 0
      %2160 = vmatpush1.bf16.msra.mxu0 0
      %2161 = vmatprep.subr.bf16.mxu0 0
      %2162 = vmatpush1.bf16.msra.mxu0 0
      %2163 = vmatprep.subr.bf16.mxu0 0
      %2164 = vmatpush1.bf16.msra.mxu0 0
      %2165 = vmatprep.subr.bf16.mxu0 0
      %2166 = vmatpush1.bf16.msra.mxu0 0
      %2167 = vmatprep.subr.bf16.mxu0 0
      %2168 = vmatpush1.bf16.msra.mxu0 0
      %2169 = vmatprep.subr.bf16.mxu0 0
      %2170 = vmatpush1.bf16.msra.mxu0 0
      %2171 = vmatprep.subr.bf16.mxu0 0
      %2172 = vmatpush1.bf16.msra.mxu0 0
      %2173 = vmatprep.subr.bf16.mxu0 0
      %2174 = vmatpush1.bf16.msra.mxu0 0
      %2175 = vmatprep.subr.bf16.mxu0 0
      %2176 = vmatpush1.bf16.msra.mxu0 0
      %2177 = vmatprep.subr.bf16.mxu0 0
      %2178 = vmatpush1.bf16.msra.mxu0 0
      %2179 = vmatprep.mubr.bf16.mxu0 0
      %2180 = vmatmul.mubr.bf16.gmra.mrb[0].mxu0 %v2079
      %v2181 = vpop.f32.mrb[0].mxu0
      %v2182 = vadd.f32 0.0, %v2181
      %v2183 = vpop.f32.mrb[0].mxu0
      %v2184 = vadd.f32 0.0, %v2183
      %v2185 = vpop.f32.mrb[0].mxu0
      %v2186 = vpop.f32.mrb[0].mxu0
      %2187 = vdwg.mxu0
      %2188 = vmatprep.subr.bf16.mxu0 %v2042
      %2189 = vmatpush1.bf16.msra.mxu0 %v2041
      %2190 = vmatprep.subr.bf16.mxu0 %v2050
      %2191 = vmatpush1.bf16.msra.mxu0 %v2049
      %2192 = vmatprep.subr.bf16.mxu0 %v2098
      %2193 = vmatpush1.bf16.msra.mxu0 %v2095
      %2194 = vmatprep.subr.bf16.mxu0 0
      %2195 = vmatpush1.bf16.msra.mxu0 0
      %2196 = vmatprep.subr.bf16.mxu0 0
      %2197 = vmatpush1.bf16.msra.mxu0 0
      %2198 = vmatprep.subr.bf16.mxu0 0
      %2199 = vmatpush1.bf16.msra.mxu0 0
      %2200 = vmatprep.subr.bf16.mxu0 0
      %2201 = vmatpush1.bf16.msra.mxu0 0
      %2202 = vmatprep.subr.bf16.mxu0 0
      %2203 = vmatpush1.bf16.msra.mxu0 0
      %2204 = vmatprep.subr.bf16.mxu0 0
      %2205 = vmatpush1.bf16.msra.mxu0 0
      %2206 = vmatprep.subr.bf16.mxu0 0
      %2207 = vmatpush1.bf16.msra.mxu0 0
      %2208 = vmatprep.subr.bf16.mxu0 0
      %2209 = vmatpush1.bf16.msra.mxu0 0
      %2210 = vmatprep.subr.bf16.mxu0 0
      %2211 = vmatpush1.bf16.msra.mxu0 0
      %2212 = vmatprep.subr.bf16.mxu0 0
      %2213 = vmatpush1.bf16.msra.mxu0 0
      %2214 = vmatprep.subr.bf16.mxu0 0
      %2215 = vmatpush1.bf16.msra.mxu0 0
      %2216 = vmatprep.subr.bf16.mxu0 0
      %2217 = vmatpush1.bf16.msra.mxu0 0
      %2218 = vmatprep.subr.bf16.mxu0 0
      %2219 = vmatpush1.bf16.msra.mxu0 0
      %2220 = vmatprep.mubr.bf16.mxu0 0
      %2221 = vmatmul.mubr.bf16.gmra.mrb[0].mxu0 %v2079
      %v2222 = vpop.f32.mrb[0].mxu0
      %v2223 = vadd.f32 0.0, %v2222
      %v2224 = vpop.f32.mrb[0].mxu0
      %v2225 = vadd.f32 0.0, %v2224
      %v2226 = vpop.f32.mrb[0].mxu0
      %v2227 = vpop.f32.mrb[0].mxu0
      %2228 = vdwg.mxu0
      %2229 = vmatprep.subr.bf16.mxu0 %v2044
      %2230 = vmatpush1.bf16.msra.mxu0 %v2043
      %2231 = vmatprep.subr.bf16.mxu0 %v2052
      %2232 = vmatpush1.bf16.msra.mxu0 %v2051
      %2233 = vmatprep.subr.bf16.mxu0 %v2104
      %2234 = vmatpush1.bf16.msra.mxu0 %v2101
      %2235 = vmatprep.subr.bf16.mxu0 0
      %2236 = vmatpush1.bf16.msra.mxu0 0
      %2237 = vmatprep.subr.bf16.mxu0 0
      %2238 = vmatpush1.bf16.msra.mxu0 0
      %2239 = vmatprep.subr.bf16.mxu0 0
      %2240 = vmatpush1.bf16.msra.mxu0 0
      %2241 = vmatprep.subr.bf16.mxu0 0
      %2242 = vmatpush1.bf16.msra.mxu0 0
      %2243 = vmatprep.subr.bf16.mxu0 0
      %2244 = vmatpush1.bf16.msra.mxu0 0
      %2245 = vmatprep.subr.bf16.mxu0 0
      %2246 = vmatpush1.bf16.msra.mxu0 0
      %2247 = vmatprep.subr.bf16.mxu0 0
      %2248 = vmatpush1.bf16.msra.mxu0 0
      %2249 = vmatprep.subr.bf16.mxu0 0
      %2250 = vmatpush1.bf16.msra.mxu0 0
      %2251 = vmatprep.subr.bf16.mxu0 0
      %2252 = vmatpush1.bf16.msra.mxu0 0
      %2253 = vmatprep.subr.bf16.mxu0 0
      %2254 = vmatpush1.bf16.msra.mxu0 0
      %2255 = vmatprep.subr.bf16.mxu0 0
      %2256 = vmatpush1.bf16.msra.mxu0 0
      %2257 = vmatprep.subr.bf16.mxu0 0
      %2258 = vmatpush1.bf16.msra.mxu0 0
      %2259 = vmatprep.subr.bf16.mxu0 0
      %2260 = vmatpush1.bf16.msra.mxu0 0
      %2261 = vmatprep.mubr.bf16.mxu0 0
      %2262 = vmatmul.mubr.bf16.gmra.mrb[0].mxu0 %v2079
      %v2263 = vpop.f32.mrb[0].mxu0
      %v2264 = vadd.f32 0.0, %v2263
      %v2265 = vpop.f32.mrb[0].mxu0
      %v2266 = vadd.f32 0.0, %v2265
      %v2267 = vpop.f32.mrb[0].mxu0
      %v2268 = vpop.f32.mrb[0].mxu0
      %2269 = vdwg.mxu0
      %v2275 = vunpack.c.l.b16 %v1950
      %v2276 = vunpack.c.h.b16 %v1950
      %v2277 = vunpack.c.l.b16 %v1954
      %v2278 = vunpack.c.h.b16 %v1954
      %v2279 = vunpack.c.l.b16 %v1958
      %v2280 = vunpack.c.h.b16 %v1958
      %v2281 = vunpack.c.l.b16 %v1962
      %v2282 = vunpack.c.h.b16 %v1962
      %v2283 = vunpack.c.l.b16 %v1966
      %v2284 = vunpack.c.h.b16 %v1966
      %v2285 = vpack.c.b16 %v2277, %v2275
      %v2286 = vpack.c.b16 %v2278, %v2276
      %v2287 = vpack.c.b16 %v2281, %v2279
      %v2288 = vpack.c.b16 %v2282, %v2280
      %v2289 = vpack.c.b16 %v2283, %v2283
      %v2290 = vpack.c.b16 %v2284, %v2284
      %v2296 = vsel %vm2077, %v1949, 0
      %v2299 = vsel %vm2081, %v2289, 0
      %v2302 = vsel %vm2081, %v2290, 0
      %2304 = vmatprep.subr.bf16.mxu0 %v2286
      %2305 = vmatpush1.bf16.msra.mxu0 %v2285
      %2306 = vmatprep.subr.bf16.mxu0 %v2288
      %2307 = vmatpush1.bf16.msra.mxu0 %v2287
      %2308 = vmatprep.subr.bf16.mxu0 %v2302
      %2309 = vmatpush1.bf16.msra.mxu0 %v2299
      %2310 = vmatprep.subr.bf16.mxu0 0
      %2311 = vmatpush1.bf16.msra.mxu0 0
      %2312 = vmatprep.subr.bf16.mxu0 0
      %2313 = vmatpush1.bf16.msra.mxu0 0
      %2314 = vmatprep.subr.bf16.mxu0 0
      %2315 = vmatpush1.bf16.msra.mxu0 0
      %2316 = vmatprep.subr.bf16.mxu0 0
      %2317 = vmatpush1.bf16.msra.mxu0 0
      %2318 = vmatprep.subr.bf16.mxu0 0
      %2319 = vmatpush1.bf16.msra.mxu0 0
      %2320 = vmatprep.subr.bf16.mxu0 0
      %2321 = vmatpush1.bf16.msra.mxu0 0
      %2322 = vmatprep.subr.bf16.mxu0 0
      %2323 = vmatpush1.bf16.msra.mxu0 0
      %2324 = vmatprep.subr.bf16.mxu0 0
      %2325 = vmatpush1.bf16.msra.mxu0 0
      %2326 = vmatprep.subr.bf16.mxu0 0
      %2327 = vmatpush1.bf16.msra.mxu0 0
      %2328 = vmatprep.subr.bf16.mxu0 0
      %2329 = vmatpush1.bf16.msra.mxu0 0
      %2330 = vmatprep.subr.bf16.mxu0 0
      %2331 = vmatpush1.bf16.msra.mxu0 0
      %2332 = vmatprep.subr.bf16.mxu0 0
      %2333 = vmatpush1.bf16.msra.mxu0 0
      %2334 = vmatprep.subr.bf16.mxu0 0
      %2335 = vmatpush1.bf16.msra.mxu0 0
      %2336 = vmatprep.mubr.bf16.mxu0 0
      %2337 = vmatmul.mubr.bf16.gmra.mrb[0].mxu0 %v2296
      %v2338 = vpop.f32.mrb[0].mxu0
      %v2339 = vadd.f32 %v2141, %v2338
      %v2340 = vpop.f32.mrb[0].mxu0
      %v2341 = vadd.f32 %v2143, %v2340
      %v2342 = vpop.f32.mrb[0].mxu0
      %v2343 = vpop.f32.mrb[0].mxu0
      %2344 = vdwg.mxu0
      %2345 = vmatprep.subr.bf16.mxu0 %v2038
      %2346 = vmatpush1.bf16.msra.mxu0 %v2037
      %2347 = vmatprep.subr.bf16.mxu0 %v2046
      %2348 = vmatpush1.bf16.msra.mxu0 %v2045
      %2349 = vmatprep.subr.bf16.mxu0 %v2086
      %2350 = vmatpush1.bf16.msra.mxu0 %v2083
      %2351 = vmatprep.subr.bf16.mxu0 0
      %2352 = vmatpush1.bf16.msra.mxu0 0
      %2353 = vmatprep.subr.bf16.mxu0 0
      %2354 = vmatpush1.bf16.msra.mxu0 0
      %2355 = vmatprep.subr.bf16.mxu0 0
      %2356 = vmatpush1.bf16.msra.mxu0 0
      %2357 = vmatprep.subr.bf16.mxu0 0
      %2358 = vmatpush1.bf16.msra.mxu0 0
      %2359 = vmatprep.subr.bf16.mxu0 0
      %2360 = vmatpush1.bf16.msra.mxu0 0
      %2361 = vmatprep.subr.bf16.mxu0 0
      %2362 = vmatpush1.bf16.msra.mxu0 0
      %2363 = vmatprep.subr.bf16.mxu0 0
      %2364 = vmatpush1.bf16.msra.mxu0 0
      %2365 = vmatprep.subr.bf16.mxu0 0
      %2366 = vmatpush1.bf16.msra.mxu0 0
      %2367 = vmatprep.subr.bf16.mxu0 0
      %2368 = vmatpush1.bf16.msra.mxu0 0
      %2369 = vmatprep.subr.bf16.mxu0 0
      %2370 = vmatpush1.bf16.msra.mxu0 0
      %2371 = vmatprep.subr.bf16.mxu0 0
      %2372 = vmatpush1.bf16.msra.mxu0 0
      %2373 = vmatprep.subr.bf16.mxu0 0
      %2374 = vmatpush1.bf16.msra.mxu0 0
      %2375 = vmatprep.subr.bf16.mxu0 0
      %2376 = vmatpush1.bf16.msra.mxu0 0
      %2377 = vmatprep.mubr.bf16.mxu0 0
      %2378 = vmatmul.mubr.bf16.gmra.mrb[0].mxu0 %v2296
      %v2379 = vpop.f32.mrb[0].mxu0
      %v2380 = vadd.f32 %v2182, %v2379
      %v2381 = vpop.f32.mrb[0].mxu0
      %v2382 = vadd.f32 %v2184, %v2381
      %v2383 = vpop.f32.mrb[0].mxu0
      %v2384 = vpop.f32.mrb[0].mxu0
      %2385 = vdwg.mxu0
      %2386 = vmatprep.subr.bf16.mxu0 %v2040
      %2387 = vmatpush1.bf16.msra.mxu0 %v2039
      %2388 = vmatprep.subr.bf16.mxu0 %v2048
      %2389 = vmatpush1.bf16.msra.mxu0 %v2047
      %2390 = vmatprep.subr.bf16.mxu0 %v2092
      %2391 = vmatpush1.bf16.msra.mxu0 %v2089
      %2392 = vmatprep.subr.bf16.mxu0 0
      %2393 = vmatpush1.bf16.msra.mxu0 0
      %2394 = vmatprep.subr.bf16.mxu0 0
      %2395 = vmatpush1.bf16.msra.mxu0 0
      %2396 = vmatprep.subr.bf16.mxu0 0
      %2397 = vmatpush1.bf16.msra.mxu0 0
      %2398 = vmatprep.subr.bf16.mxu0 0
      %2399 = vmatpush1.bf16.msra.mxu0 0
      %2400 = vmatprep.subr.bf16.mxu0 0
      %2401 = vmatpush1.bf16.msra.mxu0 0
      %2402 = vmatprep.subr.bf16.mxu0 0
      %2403 = vmatpush1.bf16.msra.mxu0 0
      %2404 = vmatprep.subr.bf16.mxu0 0
      %2405 = vmatpush1.bf16.msra.mxu0 0
      %2406 = vmatprep.subr.bf16.mxu0 0
      %2407 = vmatpush1.bf16.msra.mxu0 0
      %2408 = vmatprep.subr.bf16.mxu0 0
      %2409 = vmatpush1.bf16.msra.mxu0 0
      %2410 = vmatprep.subr.bf16.mxu0 0
      %2411 = vmatpush1.bf16.msra.mxu0 0
      %2412 = vmatprep.subr.bf16.mxu0 0
      %2413 = vmatpush1.bf16.msra.mxu0 0
      %2414 = vmatprep.subr.bf16.mxu0 0
      %2415 = vmatpush1.bf16.msra.mxu0 0
      %2416 = vmatprep.subr.bf16.mxu0 0
      %2417 = vmatpush1.bf16.msra.mxu0 0
      %2418 = vmatprep.mubr.bf16.mxu0 0
      %2419 = vmatmul.mubr.bf16.gmra.mrb[0].mxu0 %v2296
      %v2420 = vpop.f32.mrb[0].mxu0
      %v2421 = vadd.f32 %v2223, %v2420
      %v2422 = vpop.f32.mrb[0].mxu0
      %v2423 = vadd.f32 %v2225, %v2422
      %v2424 = vpop.f32.mrb[0].mxu0
      %v2425 = vpop.f32.mrb[0].mxu0
      %2426 = vdwg.mxu0
      %2427 = vmatprep.subr.bf16.mxu0 %v2042
      %2428 = vmatpush1.bf16.msra.mxu0 %v2041
      %2429 = vmatprep.subr.bf16.mxu0 %v2050
      %2430 = vmatpush1.bf16.msra.mxu0 %v2049
      %2431 = vmatprep.subr.bf16.mxu0 %v2098
      %2432 = vmatpush1.bf16.msra.mxu0 %v2095
      %2433 = vmatprep.subr.bf16.mxu0 0
      %2434 = vmatpush1.bf16.msra.mxu0 0
      %2435 = vmatprep.subr.bf16.mxu0 0
      %2436 = vmatpush1.bf16.msra.mxu0 0
      %2437 = vmatprep.subr.bf16.mxu0 0
      %2438 = vmatpush1.bf16.msra.mxu0 0
      %2439 = vmatprep.subr.bf16.mxu0 0
      %2440 = vmatpush1.bf16.msra.mxu0 0
      %2441 = vmatprep.subr.bf16.mxu0 0
      %2442 = vmatpush1.bf16.msra.mxu0 0
      %2443 = vmatprep.subr.bf16.mxu0 0
      %2444 = vmatpush1.bf16.msra.mxu0 0
      %2445 = vmatprep.subr.bf16.mxu0 0
      %2446 = vmatpush1.bf16.msra.mxu0 0
      %2447 = vmatprep.subr.bf16.mxu0 0
      %2448 = vmatpush1.bf16.msra.mxu0 0
      %2449 = vmatprep.subr.bf16.mxu0 0
      %2450 = vmatpush1.bf16.msra.mxu0 0
      %2451 = vmatprep.subr.bf16.mxu0 0
      %2452 = vmatpush1.bf16.msra.mxu0 0
      %2453 = vmatprep.subr.bf16.mxu0 0
      %2454 = vmatpush1.bf16.msra.mxu0 0
      %2455 = vmatprep.subr.bf16.mxu0 0
      %2456 = vmatpush1.bf16.msra.mxu0 0
      %2457 = vmatprep.subr.bf16.mxu0 0
      %2458 = vmatpush1.bf16.msra.mxu0 0
      %2459 = vmatprep.mubr.bf16.mxu0 0
      %2460 = vmatmul.mubr.bf16.gmra.mrb[0].mxu0 %v2296
      %v2461 = vpop.f32.mrb[0].mxu0
      %v2462 = vadd.f32 %v2264, %v2461
      %v2463 = vpop.f32.mrb[0].mxu0
      %v2464 = vadd.f32 %v2266, %v2463
      %v2465 = vpop.f32.mrb[0].mxu0
      %v2466 = vpop.f32.mrb[0].mxu0
      %2467 = vdwg.mxu0
      %s2468 = scalar_lea.vmem %s3, 8
      %v2469 = vld [vmem:[%s2468] sm:$0xf]
      %v2470 = vld [vmem:[#allocation2 + $0x10] sm:$0xff]
      %v2471 = vld [vmem:[#allocation2 + $0x18] sm:$0xff]
      %v2472 = vld [vmem:[#allocation2 + $0x20] sm:$0xff]
      %v2473 = vld [vmem:[#allocation2 + $0x28] sm:$0xff]
      %v2474 = vld [vmem:[#allocation2 + $0x40] sm:$0xff]
      %v2475 = vld [vmem:[#allocation2 + $0x48] sm:$0xff]
      %v2476 = vld [vmem:[#allocation2 + $0x50] sm:$0xff]
      %v2477 = vld [vmem:[#allocation2 + $0x58] sm:$0xff]
      %v2478 = vld [vmem:[#allocation2 + $0x70] sm:$0xff]
      %v2479 = vld [vmem:[#allocation2 + $0x78] sm:$0xff]
      %v2480 = vld [vmem:[#allocation2 + $0x80] sm:$0xff]
      %v2481 = vld [vmem:[#allocation2 + $0x88] sm:$0xff]
      %v2482 = vld [vmem:[#allocation2 + $0xa0] sm:$0xff]
      %v2483 = vld [vmem:[#allocation2 + $0xa8] sm:$0xff]
      %v2484 = vld [vmem:[#allocation2 + $0xb0] sm:$0xff]
      %v2485 = vld [vmem:[#allocation2 + $0xb8] sm:$0xff]
      %v2486 = vld [vmem:[#allocation2 + $0xd0] sm:$0x33]
      %v2487 = vld [vmem:[#allocation2 + $0xd8] sm:$0x33]
      %v2488 = vld [vmem:[#allocation2 + $0xe0] sm:$0x33]
      %v2489 = vld [vmem:[#allocation2 + $0xe8] sm:$0x33]
      %v2510 = vunpack.c.l.b16 %v2470
      %v2511 = vunpack.c.h.b16 %v2470
      %v2512 = vunpack.c.l.b16 %v2471
      %v2513 = vunpack.c.h.b16 %v2471
      %v2514 = vunpack.c.l.b16 %v2472
      %v2515 = vunpack.c.h.b16 %v2472
      %v2516 = vunpack.c.l.b16 %v2473
      %v2517 = vunpack.c.h.b16 %v2473
      %v2518 = vunpack.c.l.b16 %v2474
      %v2519 = vunpack.c.h.b16 %v2474
      %v2520 = vunpack.c.l.b16 %v2475
      %v2521 = vunpack.c.h.b16 %v2475
      %v2522 = vunpack.c.l.b16 %v2476
      %v2523 = vunpack.c.h.b16 %v2476
      %v2524 = vunpack.c.l.b16 %v2477
      %v2525 = vunpack.c.h.b16 %v2477
      %v2526 = vunpack.c.l.b16 %v2478
      %v2527 = vunpack.c.h.b16 %v2478
      %v2528 = vunpack.c.l.b16 %v2479
      %v2529 = vunpack.c.h.b16 %v2479
      %v2530 = vunpack.c.l.b16 %v2480
      %v2531 = vunpack.c.h.b16 %v2480
      %v2532 = vunpack.c.l.b16 %v2481
      %v2533 = vunpack.c.h.b16 %v2481
      %v2534 = vunpack.c.l.b16 %v2482
      %v2535 = vunpack.c.h.b16 %v2482
      %v2536 = vunpack.c.l.b16 %v2483
      %v2537 = vunpack.c.h.b16 %v2483
      %v2538 = vunpack.c.l.b16 %v2484
      %v2539 = vunpack.c.h.b16 %v2484
      %v2540 = vunpack.c.l.b16 %v2485
      %v2541 = vunpack.c.h.b16 %v2485
      %v2542 = vunpack.c.l.b16 %v2486
      %v2543 = vunpack.c.h.b16 %v2486
      %v2544 = vunpack.c.l.b16 %v2487
      %v2545 = vunpack.c.h.b16 %v2487
      %v2546 = vunpack.c.l.b16 %v2488
      %v2547 = vunpack.c.h.b16 %v2488
      %v2548 = vunpack.c.l.b16 %v2489
      %v2549 = vunpack.c.h.b16 %v2489
      %v2550 = vpack.c.b16 %v2518, %v2510
      %v2551 = vpack.c.b16 %v2519, %v2511
      %v2552 = vpack.c.b16 %v2520, %v2512
      %v2553 = vpack.c.b16 %v2521, %v2513
      %v2554 = vpack.c.b16 %v2522, %v2514
      %v2555 = vpack.c.b16 %v2523, %v2515
      %v2556 = vpack.c.b16 %v2524, %v2516
      %v2557 = vpack.c.b16 %v2525, %v2517
      %v2558 = vpack.c.b16 %v2534, %v2526
      %v2559 = vpack.c.b16 %v2535, %v2527
      %v2560 = vpack.c.b16 %v2536, %v2528
      %v2561 = vpack.c.b16 %v2537, %v2529
      %v2562 = vpack.c.b16 %v2538, %v2530
      %v2563 = vpack.c.b16 %v2539, %v2531
      %v2564 = vpack.c.b16 %v2540, %v2532
      %v2565 = vpack.c.b16 %v2541, %v2533
      %v2566 = vpack.c.b16 %v2542, %v2542
      %v2567 = vpack.c.b16 %v2543, %v2543
      %v2568 = vpack.c.b16 %v2544, %v2544
      %v2569 = vpack.c.b16 %v2545, %v2545
      %v2570 = vpack.c.b16 %v2546, %v2546
      %v2571 = vpack.c.b16 %v2547, %v2547
      %v2572 = vpack.c.b16 %v2548, %v2548
      %v2573 = vpack.c.b16 %v2549, %v2549
      %v2591 = vsel %vm2077, %v2469, 0
      %v2594 = vsel %vm2081, %v2566, 0
      %v2597 = vsel %vm2081, %v2567, 0
      %v2600 = vsel %vm2081, %v2568, 0
      %v2603 = vsel %vm2081, %v2569, 0
      %v2606 = vsel %vm2081, %v2570, 0
      %v2609 = vsel %vm2081, %v2571, 0
      %v2612 = vsel %vm2081, %v2572, 0
      %v2615 = vsel %vm2081, %v2573, 0
      %2617 = vmatprep.subr.bf16.mxu0 %v2551
      %2618 = vmatpush1.bf16.msra.mxu0 %v2550
      %2619 = vmatprep.subr.bf16.mxu0 %v2559
      %2620 = vmatpush1.bf16.msra.mxu0 %v2558
      %2621 = vmatprep.subr.bf16.mxu0 %v2597
      %2622 = vmatpush1.bf16.msra.mxu0 %v2594
      %2623 = vmatprep.subr.bf16.mxu0 0
      %2624 = vmatpush1.bf16.msra.mxu0 0
      %2625 = vmatprep.subr.bf16.mxu0 0
      %2626 = vmatpush1.bf16.msra.mxu0 0
      %2627 = vmatprep.subr.bf16.mxu0 0
      %2628 = vmatpush1.bf16.msra.mxu0 0
      %2629 = vmatprep.subr.bf16.mxu0 0
      %2630 = vmatpush1.bf16.msra.mxu0 0
      %2631 = vmatprep.subr.bf16.mxu0 0
      %2632 = vmatpush1.bf16.msra.mxu0 0
      %2633 = vmatprep.subr.bf16.mxu0 0
      %2634 = vmatpush1.bf16.msra.mxu0 0
      %2635 = vmatprep.subr.bf16.mxu0 0
      %2636 = vmatpush1.bf16.msra.mxu0 0
      %2637 = vmatprep.subr.bf16.mxu0 0
      %2638 = vmatpush1.bf16.msra.mxu0 0
      %2639 = vmatprep.subr.bf16.mxu0 0
      %2640 = vmatpush1.bf16.msra.mxu0 0
      %2641 = vmatprep.subr.bf16.mxu0 0
      %2642 = vmatpush1.bf16.msra.mxu0 0
      %2643 = vmatprep.subr.bf16.mxu0 0
      %2644 = vmatpush1.bf16.msra.mxu0 0
      %2645 = vmatprep.subr.bf16.mxu0 0
      %2646 = vmatpush1.bf16.msra.mxu0 0
      %2647 = vmatprep.subr.bf16.mxu0 0
      %2648 = vmatpush1.bf16.msra.mxu0 0
      %2649 = vmatprep.mubr.bf16.mxu0 0
      %2650 = vmatmul.mubr.bf16.gmra.mrb[0].mxu0 %v2591
      %v2651 = vpop.f32.mrb[0].mxu0
      %v2652 = vadd.f32 0.0, %v2651
      %v2653 = vpop.f32.mrb[0].mxu0
      %v2654 = vadd.f32 0.0, %v2653
      %v2655 = vpop.f32.mrb[0].mxu0
      %v2656 = vpop.f32.mrb[0].mxu0
      %2657 = vdwg.mxu0
      %2658 = vmatprep.subr.bf16.mxu0 %v2553
      %2659 = vmatpush1.bf16.msra.mxu0 %v2552
      %2660 = vmatprep.subr.bf16.mxu0 %v2561
      %2661 = vmatpush1.bf16.msra.mxu0 %v2560
      %2662 = vmatprep.subr.bf16.mxu0 %v2603
      %2663 = vmatpush1.bf16.msra.mxu0 %v2600
      %2664 = vmatprep.subr.bf16.mxu0 0
      %2665 = vmatpush1.bf16.msra.mxu0 0
      %2666 = vmatprep.subr.bf16.mxu0 0
      %2667 = vmatpush1.bf16.msra.mxu0 0
      %2668 = vmatprep.subr.bf16.mxu0 0
      %2669 = vmatpush1.bf16.msra.mxu0 0
      %2670 = vmatprep.subr.bf16.mxu0 0
      %2671 = vmatpush1.bf16.msra.mxu0 0
      %2672 = vmatprep.subr.bf16.mxu0 0
      %2673 = vmatpush1.bf16.msra.mxu0 0
      %2674 = vmatprep.subr.bf16.mxu0 0
      %2675 = vmatpush1.bf16.msra.mxu0 0
      %2676 = vmatprep.subr.bf16.mxu0 0
      %2677 = vmatpush1.bf16.msra.mxu0 0
      %2678 = vmatprep.subr.bf16.mxu0 0
      %2679 = vmatpush1.bf16.msra.mxu0 0
      %2680 = vmatprep.subr.bf16.mxu0 0
      %2681 = vmatpush1.bf16.msra.mxu0 0
      %2682 = vmatprep.subr.bf16.mxu0 0
      %2683 = vmatpush1.bf16.msra.mxu0 0
      %2684 = vmatprep.subr.bf16.mxu0 0
      %2685 = vmatpush1.bf16.msra.mxu0 0
      %2686 = vmatprep.subr.bf16.mxu0 0
      %2687 = vmatpush1.bf16.msra.mxu0 0
      %2688 = vmatprep.subr.bf16.mxu0 0
      %2689 = vmatpush1.bf16.msra.mxu0 0
      %2690 = vmatprep.mubr.bf16.mxu0 0
      %2691 = vmatmul.mubr.bf16.gmra.mrb[0].mxu0 %v2591
      %v2692 = vpop.f32.mrb[0].mxu0
      %v2693 = vadd.f32 0.0, %v2692
      %v2694 = vpop.f32.mrb[0].mxu0
      %v2695 = vadd.f32 0.0, %v2694
      %v2696 = vpop.f32.mrb[0].mxu0
      %v2697 = vpop.f32.mrb[0].mxu0
      %2698 = vdwg.mxu0
      %2699 = vmatprep.subr.bf16.mxu0 %v2555
      %2700 = vmatpush1.bf16.msra.mxu0 %v2554
      %2701 = vmatprep.subr.bf16.mxu0 %v2563
      %2702 = vmatpush1.bf16.msra.mxu0 %v2562
      %2703 = vmatprep.subr.bf16.mxu0 %v2609
      %2704 = vmatpush1.bf16.msra.mxu0 %v2606
      %2705 = vmatprep.subr.bf16.mxu0 0
      %2706 = vmatpush1.bf16.msra.mxu0 0
      %2707 = vmatprep.subr.bf16.mxu0 0
      %2708 = vmatpush1.bf16.msra.mxu0 0
      %2709 = vmatprep.subr.bf16.mxu0 0
      %2710 = vmatpush1.bf16.msra.mxu0 0
      %2711 = vmatprep.subr.bf16.mxu0 0
      %2712 = vmatpush1.bf16.msra.mxu0 0
      %2713 = vmatprep.subr.bf16.mxu0 0
      %2714 = vmatpush1.bf16.msra.mxu0 0
      %2715 = vmatprep.subr.bf16.mxu0 0
      %2716 = vmatpush1.bf16.msra.mxu0 0
      %2717 = vmatprep.subr.bf16.mxu0 0
      %2718 = vmatpush1.bf16.msra.mxu0 0
      %2719 = vmatprep.subr.bf16.mxu0 0
      %2720 = vmatpush1.bf16.msra.mxu0 0
      %2721 = vmatprep.subr.bf16.mxu0 0
      %2722 = vmatpush1.bf16.msra.mxu0 0
      %2723 = vmatprep.subr.bf16.mxu0 0
      %2724 = vmatpush1.bf16.msra.mxu0 0
      %2725 = vmatprep.subr.bf16.mxu0 0
      %2726 = vmatpush1.bf16.msra.mxu0 0
      %2727 = vmatprep.subr.bf16.mxu0 0
      %2728 = vmatpush1.bf16.msra.mxu0 0
      %2729 = vmatprep.subr.bf16.mxu0 0
      %2730 = vmatpush1.bf16.msra.mxu0 0
      %2731 = vmatprep.mubr.bf16.mxu0 0
      %2732 = vmatmul.mubr.bf16.gmra.mrb[0].mxu0 %v2591
      %v2733 = vpop.f32.mrb[0].mxu0
      %v2734 = vadd.f32 0.0, %v2733
      %v2735 = vpop.f32.mrb[0].mxu0
      %v2736 = vadd.f32 0.0, %v2735
      %v2737 = vpop.f32.mrb[0].mxu0
      %v2738 = vpop.f32.mrb[0].mxu0
      %2739 = vdwg.mxu0
      %2740 = vmatprep.subr.bf16.mxu0 %v2557
      %2741 = vmatpush1.bf16.msra.mxu0 %v2556
      %2742 = vmatprep.subr.bf16.mxu0 %v2565
      %2743 = vmatpush1.bf16.msra.mxu0 %v2564
      %2744 = vmatprep.subr.bf16.mxu0 %v2615
      %2745 = vmatpush1.bf16.msra.mxu0 %v2612
      %2746 = vmatprep.subr.bf16.mxu0 0
      %2747 = vmatpush1.bf16.msra.mxu0 0
      %2748 = vmatprep.subr.bf16.mxu0 0
      %2749 = vmatpush1.bf16.msra.mxu0 0
      %2750 = vmatprep.subr.bf16.mxu0 0
      %2751 = vmatpush1.bf16.msra.mxu0 0
      %2752 = vmatprep.subr.bf16.mxu0 0
      %2753 = vmatpush1.bf16.msra.mxu0 0
      %2754 = vmatprep.subr.bf16.mxu0 0
      %2755 = vmatpush1.bf16.msra.mxu0 0
      %2756 = vmatprep.subr.bf16.mxu0 0
      %2757 = vmatpush1.bf16.msra.mxu0 0
      %2758 = vmatprep.subr.bf16.mxu0 0
      %2759 = vmatpush1.bf16.msra.mxu0 0
      %2760 = vmatprep.subr.bf16.mxu0 0
      %2761 = vmatpush1.bf16.msra.mxu0 0
      %2762 = vmatprep.subr.bf16.mxu0 0
      %2763 = vmatpush1.bf16.msra.mxu0 0
      %2764 = vmatprep.subr.bf16.mxu0 0
      %2765 = vmatpush1.bf16.msra.mxu0 0
      %2766 = vmatprep.subr.bf16.mxu0 0
      %2767 = vmatpush1.bf16.msra.mxu0 0
      %2768 = vmatprep.subr.bf16.mxu0 0
      %2769 = vmatpush1.bf16.msra.mxu0 0
      %2770 = vmatprep.subr.bf16.mxu0 0
      %2771 = vmatpush1.bf16.msra.mxu0 0
      %2772 = vmatprep.mubr.bf16.mxu0 0
      %2773 = vmatmul.mubr.bf16.gmra.mrb[0].mxu0 %v2591
      %v2774 = vpop.f32.mrb[0].mxu0
      %v2775 = vadd.f32 0.0, %v2774
      %v2776 = vpop.f32.mrb[0].mxu0
      %v2777 = vadd.f32 0.0, %v2776
      %v2778 = vpop.f32.mrb[0].mxu0
      %v2779 = vpop.f32.mrb[0].mxu0
      %2780 = vdwg.mxu0
      %v2781 = vadd.f32 %v2339, %v2652
      %v2782 = vadd.f32 %v2341, %v2654
      %v2783 = vadd.f32 %v2380, %v2693
      %v2784 = vadd.f32 %v2382, %v2695
      %v2785 = vadd.f32 %v2421, %v2734
      %v2786 = vadd.f32 %v2423, %v2736
      %v2787 = vadd.f32 %v2462, %v2775
      %v2788 = vadd.f32 %v2464, %v2777
      %v2789 = vadd.f32 %v2781, %v2782
      %v2790 = vadd.f32 %v2789, %v2783
      %v2791 = vadd.f32 %v2790, %v2784
      %v2792 = vadd.f32 %v2791, %v2785
      %v2793 = vadd.f32 %v2792, %v2786
      %v2794 = vadd.f32 %v2793, %v2787
      %v2795 = vadd.f32 %v2794, %v2788
      %2796 = vadd.xlane.f32.xlu0 %v2795
      %v2797 = vpop.xlane.xlu0 %2796
      %vm2798 = vcmask 7168
      %2799 = vst.msk [vmem:[%s466] sm:$0xff] %vm2798, %v2797
      %v2800 = vmul.f32 %v2781, %v2781
      %v2801 = vmul.f32 %v2782, %v2782
      %v2802 = vmul.f32 %v2783, %v2783
      %v2803 = vmul.f32 %v2784, %v2784
      %v2804 = vmul.f32 %v2785, %v2785
      %v2805 = vmul.f32 %v2786, %v2786
      %v2806 = vmul.f32 %v2787, %v2787
      %v2807 = vmul.f32 %v2788, %v2788
      %v2808 = vadd.f32 %v2800, %v2801
      %v2809 = vadd.f32 %v2808, %v2802
      %v2810 = vadd.f32 %v2809, %v2803
      %v2811 = vadd.f32 %v2810, %v2804
      %v2812 = vadd.f32 %v2811, %v2805
      %v2813 = vadd.f32 %v2812, %v2806
      %v2814 = vadd.f32 %v2813, %v2807
      %2815 = vadd.xlane.f32.xlu0 %v2814
      %v2816 = vpop.xlane.xlu0 %2815
      %vm2817 = vcmask 15368
      %2818 = vst.msk [vmem:[%s466] sm:$0xff] %vm2817, %v2816
      %v2819 = vld [vmem:[%s4] sm:$0xff]
      %2821 = vset.pattern.permute.xlu0 0
      %2822 = vperm.xlu0 %2821, %v2819
      %v2823 = vpop.permute.xlu0 %2822
      %v2825 = vadd.f32 %v2781, %v2823
      %v2826 = vadd.f32 %v2782, %v2823
      %v2827 = vadd.f32 %v2783, %v2823
      %v2828 = vadd.f32 %v2784, %v2823
      %v2829 = vadd.f32 %v2785, %v2823
      %v2830 = vadd.f32 %v2786, %v2823
      %v2831 = vadd.f32 %v2787, %v2823
      %v2832 = vadd.f32 %v2788, %v2823
      %v2833 = vpack.c.bf16 %v2825, %v2825
      %v2834 = vpack.c.bf16 %v2826, %v2826
      %v2835 = vpack.c.bf16 %v2827, %v2827
      %v2836 = vpack.c.bf16 %v2828, %v2828
      %v2837 = vpack.c.bf16 %v2829, %v2829
      %v2838 = vpack.c.bf16 %v2830, %v2830
      %v2839 = vpack.c.bf16 %v2831, %v2831
      %v2840 = vpack.c.bf16 %v2832, %v2832
      %v2849 = vunpack.c.l.b16 %v2833
      %v2850 = vunpack.c.l.b16 %v2834
      %v2851 = vunpack.c.l.b16 %v2835
      %v2852 = vunpack.c.l.b16 %v2836
      %v2853 = vunpack.c.l.b16 %v2837
      %v2854 = vunpack.c.l.b16 %v2838
      %v2855 = vunpack.c.l.b16 %v2839
      %v2856 = vunpack.c.l.b16 %v2840
      %v2857 = vpack.c.b16 %v2850, %v2849
      %v2858 = vpack.c.b16 %v2852, %v2851
      %v2859 = vpack.c.b16 %v2854, %v2853
      %v2860 = vpack.c.b16 %v2856, %v2855
      %2865 = vst [vmem:[%s457] sm:$0xff] %v2857
      %2866 = vst [vmem:[%s457 + $0x8] sm:$0xff] %v2858
      %2867 = vst [vmem:[%s457 + $0x10] sm:$0xff] %v2859
      %2868 = vst [vmem:[%s457 + $0x18] sm:$0xff] %v2860
      %s2869 = smul.u32 8, %s24
      %p2870 = scmp.lt.s32.totalorder %s23, 1
      %s2871 = scalar_select %p2870, %s23, 1
      %p2872 = scmp.lt.s32.totalorder %s2869, 31
      %s2873 = scalar_select %p2872, %s2869, 31
      %s2874 = smul.addr %s2871, 32
      %s2875 = sadd.s32 %s2873, %s2874
      %s2876 = smul.addr %s2875, 4
      %s2877 = scalar_lea.vmem %s6, %s2876
      %p2878 = scmp.lt.s32.totalorder %s23, 1
      %s2879 = scalar_select %p2878, %s23, 1
      %p2880 = scmp.lt.s32.totalorder %s24, 3
      %s2881 = scalar_select %p2880, %s24, 3
      %s2882 = smul.addr %s2879, 4
      %s2883 = sadd.s32 %s2881, %s2882
      %s2884 = smul.addr %s2883, 8
      %s2885 = scalar_lea.vmem %s7, %s2884
      // Predicated region
      $region45: #{conv_dropout_insnorm_lrelu_3d.2} parent=43 // pred_check
        %p2886 = pneg %p214
      $region46: #{conv_dropout_insnorm_lrelu_3d.2} parent=43 // pred_check_branch
        %2888 = sbr.rel (%p2886) target = $region48
      $region47: #{conv_dropout_insnorm_lrelu_3d.2} parent=43 // pred_region
        %s2889 = smul.u32 8, %s24
      $region48: #{conv_dropout_insnorm_lrelu_3d.2} parent=43 // pred_fallthru
        _
      // Predicated region
      $region49: #{conv_dropout_insnorm_lrelu_3d.2} parent=43 // pred_check
        %p2890 = pneg %p242
      $region50: #{conv_dropout_insnorm_lrelu_3d.2} parent=43 // pred_check_branch
        %2892 = sbr.rel (%p2890) target = $region52
      $region51: #{conv_dropout_insnorm_lrelu_3d.2} parent=43 // pred_region
        _
      $region52: #{conv_dropout_insnorm_lrelu_3d.2} parent=43 // pred_fallthru
        _
    $region44: #{conv_dropout_insnorm_lrelu_3d.2} parent=5 // pred_fallthru
      _
    %p2893 = scmp.le.s32.totalorder 2, %s14
    // Predicated region
    $region53: #{conv_dropout_insnorm_lrelu_3d.2} parent=5 // pred_check
      %p2894 = pneg %p2893
    $region54: #{conv_dropout_insnorm_lrelu_3d.2} parent=5 // pred_check_branch
      %2896 = sbr.rel (%p2894) target = $region56
    $region55: #{conv_dropout_insnorm_lrelu_3d.2} parent=5 // pred_region
      %s2897 = ssub.s32 %s14, 2
      // Predicated region
      $region57: #{conv_dropout_insnorm_lrelu_3d.2} parent=55 // pred_check
        %p2898 = pneg %p220
      $region58: #{conv_dropout_insnorm_lrelu_3d.2} parent=55 // pred_check_branch
        %2900 = sbr.rel (%p2898) target = $region60
      $region59: #{conv_dropout_insnorm_lrelu_3d.2} parent=55 // pred_region
        %s2901 = smul.u32 8, %s26
        %p2902 = scmp.lt.s32.totalorder %s25, 1
        %s2903 = scalar_select %p2902, %s25, 1
        %p2904 = scmp.lt.s32.totalorder %s2901, 31
        %s2905 = scalar_select %p2904, %s2901, 31
        %s2906 = smul.addr %s2903, 32
        %s2907 = sadd.s32 %s2905, %s2906
        %s2908 = smul.addr %s2907, 4
        %s2909 = scalar_lea.vmem %s6, %s2908
      $region60: #{conv_dropout_insnorm_lrelu_3d.2} parent=55 // pred_fallthru
        _
      // Predicated region
      $region61: #{conv_dropout_insnorm_lrelu_3d.2} parent=55 // pred_check
        %p2910 = pneg %p248
      $region62: #{conv_dropout_insnorm_lrelu_3d.2} parent=55 // pred_check_branch
        %2912 = sbr.rel (%p2910) target = $region64
      $region63: #{conv_dropout_insnorm_lrelu_3d.2} parent=55 // pred_region
        %p2913 = scmp.lt.s32.totalorder %s25, 1
        %s2914 = scalar_select %p2913, %s25, 1
        %p2915 = scmp.lt.s32.totalorder %s26, 3
        %s2916 = scalar_select %p2915, %s26, 3
        %s2917 = smul.addr %s2914, 4
        %s2918 = sadd.s32 %s2916, %s2917
        %s2919 = smul.addr %s2918, 8
        %s2920 = scalar_lea.vmem %s7, %s2919
      $region64: #{conv_dropout_insnorm_lrelu_3d.2} parent=55 // pred_fallthru
        _
    $region56: #{conv_dropout_insnorm_lrelu_3d.2} parent=5 // pred_fallthru
      _
  $region6: #{conv_dropout_insnorm_lrelu_3d.2} parent=0 // loop_footer
    %s18 = sadd.s32 1, %s14
  $region7: #{conv_dropout_insnorm_lrelu_3d.2} parent=0 // loop_footer_branch
    %13 = sbr.rel target = $region3
  $region8: #{conv_dropout_insnorm_lrelu_3d.2} parent=0 // loop_exit
    _

</llo_original>
